<compile_context>
chip_gen: v7x
topology: tpu7x:2x2x1
jax: 0.10.0
libtpu: 0.0.40
codegen_flags: <defaults>
</compile_context>

<pallas_src>
import functools
import math

import jax
import jax.numpy as jnp
from jax import lax
from jax.experimental import pallas as pl
from jax.experimental.pallas import tpu as pltpu

DTYPE = jnp.float32          # activations / LayerNorm / softmax math
W_DTYPE = jnp.bfloat16       # MXU operand dtype (f32 accumulation)
LN_EPS = 1e-5                # torch.nn.LayerNorm default


# ----------------------------------------------------------------------------
# In-kernel helpers (traced into the single fused decoder kernel)
# ----------------------------------------------------------------------------
def _mm(a_b, w_b):
    """(M,K) @ (K,N) on the MXU: bf16 operands already, f32 accumulation."""
    return lax.dot_general(a_b, w_b, (((1,), (0,)), ((), ())),
                           preferred_element_type=jnp.float32)


def _layernorm(z, g, b):
    mu = jnp.mean(z, axis=-1, keepdims=True)
    var = jnp.mean(jnp.square(z - mu), axis=-1, keepdims=True)
    return (z - mu) * lax.rsqrt(var + LN_EPS) * g + b


# ----------------------------------------------------------------------------
# Fused decoder kernel: one grid step = one decoder block over the whole batch
# ----------------------------------------------------------------------------
def _decoder_kernel(x_ref, z_ref,
                    wqkv1_ref, bqkv1_ref, wo1_ref, bo1_ref,
                    wq2_ref, bq2_ref, wkv2_ref, bkv2_ref, wo2_ref, bo2_ref,
                    w1_ref, b1_ref, w2_ref, b2_ref,
                    g1_ref, be1_ref, g2_ref, be2_ref, g3_ref, be3_ref,
                    o_ref,
                    y_scr, attn_scr, mask_scr,
                    *, heads, num_hiddens, ffn_chunk, causal):
    D = num_hiddens
    B, S, _ = x_ref.shape
    Se = z_ref.shape[1]
    BS = B * S
    d = D // heads
    l = pl.program_id(0)

    @pl.when(l == 0)
    def _():
        # One (B*S, D) copy per forward pass (not per batch element).
        y_scr[...] = x_ref[...].reshape(BS, D)
        if causal:
            row = lax.broadcasted_iota(jnp.int32, (S, S), 0)
            col = lax.broadcasted_iota(jnp.int32, (S, S), 1)
            mask_scr[...] = jnp.where(col > row, -1e30, 0.0).astype(jnp.float32)

    X = y_scr[...]                       # (BS, D) f32, carried across layers
    Xb = X.astype(W_DTYPE)               # single cast, reused by QKV proj

    def attention(qsrc, kvsrc, off_k, off_v, use_mask):
        """All heads, batched over B; head outputs land in attn_scr slices.

        qsrc:  (B, Sq, *) bf16 with Q at lanes [0, D)
        kvsrc: (B, Sk, *) bf16 with K at lanes [off_k, off_k+D),
                                 V at lanes [off_v, off_v+D)
        The 1/sqrt(d) scale is pre-folded into Wq/bq at packing time.
        """
        for h in range(heads):           # static unroll (heads is small)
            lo = h * d
            qh = qsrc[:, :, lo:lo + d]
            kh = kvsrc[:, :, off_k + lo:off_k + lo + d]
            vh = kvsrc[:, :, off_v + lo:off_v + lo + d]
            s = jnp.einsum('bqd,bkd->bqk', qh, kh,
                           preferred_element_type=jnp.float32)
            if use_mask:
                s = s + mask_scr[...]    # (S,S) broadcast over batch
            s = s - jnp.max(s, axis=-1, keepdims=True)
            p = jnp.exp(s)
            p = p * pl.reciprocal(jnp.sum(p, axis=-1, keepdims=True),
                                  approx=True)
            attn_scr[:, :, lo:lo + d] = jnp.einsum(
                'bqk,bkd->bqd', p.astype(W_DTYPE), vh,
                preferred_element_type=jnp.float32)
        return attn_scr[...].reshape(BS, D)

    # ---- self-attention + AddNorm (dropout = identity, eval mode) ----
    qkv = _mm(Xb, wqkv1_ref[...]) + bqkv1_ref[...]          # (BS, 3D) f32
    qkvb = qkv.astype(W_DTYPE).reshape(B, S, 3 * D)         # one bf16 cast
    a1 = attention(qkvb, qkvb, D, 2 * D, causal)            # (BS, D) f32
    a1 = _mm(a1.astype(W_DTYPE), wo1_ref[...]) + bo1_ref[...]
    Y = _layernorm(X + a1, g1_ref[...], be1_ref[...])
    Yb = Y.astype(W_DTYPE)

    # ---- cross-attention on zelta + AddNorm ----
    q2 = _mm(Yb, wq2_ref[...]) + bq2_ref[...]               # (BS, D)
    Zb = z_ref[...].reshape(B * Se, -1)                     # bf16 already
    kv2 = _mm(Zb, wkv2_ref[...]) + bkv2_ref[...]            # (B*Se, 2D)
    q2b = q2.astype(W_DTYPE).reshape(B, S, D)
    kv2b = kv2.astype(W_DTYPE).reshape(B, Se, 2 * D)
    a2 = attention(q2b, kv2b, 0, D, False)
    a2 = _mm(a2.astype(W_DTYPE), wo2_ref[...]) + bo2_ref[...]
    Y2 = _layernorm(Y + a2, g2_ref[...], be2_ref[...])
    Y2b = Y2.astype(W_DTYPE)

    # ---- position-wise FFN (hidden axis tiled) + AddNorm ----
    Ftot = w1_ref.shape[1]
    chunk = ffn_chunk if (ffn_chunk > 0 and Ftot % ffn_chunk == 0) else Ftot
    acc = jnp.zeros((BS, D), jnp.float32)
    for c0 in range(0, Ftot, chunk):     # static unroll; bounds live (BS,4D)
        hblk = jnp.maximum(_mm(Y2b, w1_ref[:, c0:c0 + chunk])
                           + b1_ref[:, c0:c0 + chunk], 0.0)
        acc = acc + _mm(hblk.astype(W_DTYPE), w2_ref[c0:c0 + chunk, :])
    out = _layernorm(Y2 + acc + b2_ref[...], g3_ref[...], be3_ref[...])

    y_scr[...] = out                     # carry to the next decoder block

    @pl.when(l == pl.num_programs(0) - 1)
    def _():
        o_ref[...] = out.reshape(B, S, D).astype(o_ref.dtype)


def decoder_forward(X, zelta, packed, heads, *, causal_self_attn=False,
                    ffn_chunk=512):
    """Full Decoder forward in a single fused pallas_call, grid over layers."""
    B, S, D = X.shape
    Se, Dk = zelta.shape[1], zelta.shape[2]
    L = packed["wqkv1"].shape[0]
    assert packed["wqkv1"].shape[1] == D, "query_size must equal num_hiddens"
    assert D % heads == 0

    names = ["wqkv1", "bqkv1", "wo1", "bo1", "wq2", "bq2", "wkv2", "bkv2",
             "wo2", "bo2", "w1", "b1", "w2", "b2",
             "g1", "be1", "g2", "be2", "g3", "be3"]
    weights = [packed[n] for n in names]

    def w_spec(arr):                 # one layer-slice of a stacked parameter
        return pl.BlockSpec((None,) + tuple(arr.shape[1:]),
                            lambda l: (l, 0, 0))

    # VMEM budget: double-buffered per-layer weights + activations + scratch,
    # with headroom, clamped to a ceiling that is safe on v7x (64 MiB phys).
    per_layer_w = sum(math.prod(a.shape[1:]) * a.dtype.itemsize
                      for a in weights)
    ffn_hidden = packed["w1"].shape[2]
    act_bytes = 4 * B * S * (8 * D + min(ffn_hidden, max(ffn_chunk, 1)))
    act_bytes += 4 * B * Se * 2 * D
    scr_bytes = 4 * (2 * B * S * D + S * S)
    io_bytes = 4 * B * S * D * 2 + 2 * B * Se * Dk
    est = 2 * per_layer_w + act_bytes + scr_bytes + io_bytes
    vmem_limit = int(min(max(2 * est, 32 * 2 ** 20), 56 * 2 ** 20))

    kernel = functools.partial(_decoder_kernel, heads=heads, num_hiddens=D,
                               ffn_chunk=ffn_chunk, causal=causal_self_attn)
    return pl.pallas_call(
        kernel,
        out_shape=jax.ShapeDtypeStruct((B, S, D), DTYPE),
        grid=(L,),
        in_specs=[pl.BlockSpec((B, S, D), lambda l: (0, 0, 0)),
                  pl.BlockSpec((B, Se, Dk), lambda l: (0, 0, 0))]
                 + [w_spec(a) for a in weights],
        out_specs=pl.BlockSpec((B, S, D), lambda l: (0, 0, 0)),
        scratch_shapes=[pltpu.VMEM((B * S, D), jnp.float32),   # carried act
                        pltpu.VMEM((B, S, D), jnp.float32),    # head outputs
                        pltpu.VMEM((S, S), jnp.float32)],      # causal mask
        compiler_params=pltpu.CompilerParams(
            dimension_semantics=("arbitrary",),
            vmem_limit_bytes=vmem_limit),
    )(X, zelta.astype(W_DTYPE), *weights)


# ----------------------------------------------------------------------------
# Parameter init (deterministic) and packing for the kernel
# ----------------------------------------------------------------------------
def _dense(key, din, dout):
    w = 0.02 * jax.random.normal(key, (din, dout), DTYPE)
    b = jnp.zeros((dout,), DTYPE)
    return w, b


def _attn_params(key, q_size, k_size, v_size, H):
    ks = jax.random.split(key, 4)
    Wq, bq = _dense(ks[0], q_size, H)
    Wk, bk = _dense(ks[1], k_size, H)
    Wv, bv = _dense(ks[2], v_size, H)
    Wo, bo = _dense(ks[3], H, H)
    return dict(Wq=Wq, bq=bq, Wk=Wk, bk=bk, Wv=Wv, bv=bv, Wo=Wo, bo=bo)


def init_decoder_params(key, query_size, key_size, value_size, num_hiddens,
                        num_blocks, ffn_hidden):
    params = []
    for blk in range(num_blocks):
        bkey = jax.random.fold_in(key, blk)
        ks = jax.random.split(bkey, 4)
        W1, b1 = _dense(ks[2], num_hiddens, ffn_hidden)
        W2, b2 = _dense(ks[3], ffn_hidden, num_hiddens)
        params.append(dict(
            attn1=_attn_params(ks[0], query_size, query_size, query_size, num_hiddens),
            attn2=_attn_params(ks[1], num_hiddens, key_size, value_size, num_hiddens),
            W1=W1, b1=b1, W2=W2, b2=b2,
            ln1_g=jnp.ones((num_hiddens,), DTYPE), ln1_b=jnp.zeros((num_hiddens,), DTYPE),
            ln2_g=jnp.ones((num_hiddens,), DTYPE), ln2_b=jnp.zeros((num_hiddens,), DTYPE),
            ln3_g=jnp.ones((num_hiddens,), DTYPE), ln3_b=jnp.zeros((num_hiddens,), DTYPE),
        ))
    return params


def pack_params(blocks_params, heads, num_hiddens):
    """Stack per-layer params, fuse QKV / KV weights, fold 1/sqrt(d) into Wq,
    cast matmul weights to bf16 (halves weight DMA), keep biases/LN in f32."""
    d = num_hiddens // heads
    scale = 1.0 / math.sqrt(d)

    def stack(fn):
        return jnp.stack([fn(p) for p in blocks_params], axis=0)

    def as_row(x):
        return x.reshape(1, -1).astype(DTYPE)

    return dict(
        wqkv1=stack(lambda p: jnp.concatenate(
            [p["attn1"]["Wq"] * scale, p["attn1"]["Wk"], p["attn1"]["Wv"]],
            axis=1).astype(W_DTYPE)),
        bqkv1=stack(lambda p: as_row(jnp.concatenate(
            [p["attn1"]["bq"] * scale, p["attn1"]["bk"], p["attn1"]["bv"]]))),
        wo1=stack(lambda p: p["attn1"]["Wo"].astype(W_DTYPE)),
        bo1=stack(lambda p: as_row(p["attn1"]["bo"])),
        wq2=stack(lambda p: (p["attn2"]["Wq"] * scale).astype(W_DTYPE)),
        bq2=stack(lambda p: as_row(p["attn2"]["bq"] * scale)),
        wkv2=stack(lambda p: jnp.concatenate(
            [p["attn2"]["Wk"], p["attn2"]["Wv"]], axis=1).astype(W_DTYPE)),
        bkv2=stack(lambda p: as_row(jnp.concatenate(
            [p["attn2"]["bk"], p["attn2"]["bv"]]))),
        wo2=stack(lambda p: p["attn2"]["Wo"].astype(W_DTYPE)),
        bo2=stack(lambda p: as_row(p["attn2"]["bo"])),
        w1=stack(lambda p: p["W1"].astype(W_DTYPE)),
        b1=stack(lambda p: as_row(p["b1"])),
        w2=stack(lambda p: p["W2"].astype(W_DTYPE)),
        b2=stack(lambda p: as_row(p["b2"])),
        g1=stack(lambda p: as_row(p["ln1_g"])),
        be1=stack(lambda p: as_row(p["ln1_b"])),
        g2=stack(lambda p: as_row(p["ln2_g"])),
        be2=stack(lambda p: as_row(p["ln2_b"])),
        g3=stack(lambda p: as_row(p["ln3_g"])),
        be3=stack(lambda p: as_row(p["ln3_b"])),
    )


# ----------------------------------------------------------------------------
# Pure-JAX f32 reference (same math, unpacked params) for a sanity check
# ----------------------------------------------------------------------------
def reference_forward(X, zelta, blocks_params, heads):
    def mha(q_in, k_in, v_in, p):
        B, Sq, _ = q_in.shape
        Sk = k_in.shape[1]
        H = p["Wq"].shape[1]
        d = H // heads
        Q = q_in @ p["Wq"] + p["bq"]
        K = k_in @ p["Wk"] + p["bk"]
        V = v_in @ p["Wv"] + p["bv"]
        Qh = Q.reshape(B, Sq, heads, d).transpose(0, 2, 1, 3)
        Kh = K.reshape(B, Sk, heads, d).transpose(0, 2, 1, 3)
        Vh = V.reshape(B, Sk, heads, d).transpose(0, 2, 1, 3)
        s = jnp.einsum("bhqd,bhkd->bhqk", Qh, Kh) / math.sqrt(d)
        pr = jax.nn.softmax(s, axis=-1)
        O = jnp.einsum("bhqk,bhkd->bhqd", pr, Vh)
        O = O.transpose(0, 2, 1, 3).reshape(B, Sq, H)
        return O @ p["Wo"] + p["bo"]

    def ln(z, g, b):
        mu = jnp.mean(z, -1, keepdims=True)
        var = jnp.mean((z - mu) ** 2, -1, keepdims=True)
        return (z - mu) * jax.lax.rsqrt(var + LN_EPS) * g + b

    for p in blocks_params:
        Y = ln(X + mha(X, X, X, p["attn1"]), p["ln1_g"], p["ln1_b"])
        Y2 = ln(Y + mha(Y, zelta, zelta, p["attn2"]), p["ln2_g"], p["ln2_b"])
        f = jnp.maximum(Y2 @ p["W1"] + p["b1"], 0.0) @ p["W2"] + p["b2"]
        X = ln(Y2 + f, p["ln3_g"], p["ln3_b"])
    return X


# ----------------------------------------------------------------------------
if __name__ == "__main__":
    B, S_dec, S_enc = 2, 8, 8
    query_size = key_size = value_size = num_hiddens = 32
    heads = 4
    num_blocks = 2
    ffn_hidden = 4 * num_hiddens
    # dropout = 0.1 in the module, identity at inference.

    root = jax.random.PRNGKey(0)
    kx, kz, kp = jax.random.split(root, 3)
    X = jax.random.normal(kx, (B, S_dec, num_hiddens), DTYPE)
    zelta = jax.random.normal(kz, (B, S_enc, key_size), DTYPE)
    params = init_decoder_params(kp, query_size, key_size, value_size,
                                 num_hiddens, num_blocks, ffn_hidden)
    packed = pack_params(params, heads, num_hiddens)

    out = decoder_forward(X, zelta, packed, heads)
    out = jax.block_until_ready(out)
    assert out.shape == (B, S_dec, num_hiddens)
    assert bool(jnp.all(jnp.isfinite(out)))

    # bf16 MXU operands + approx reciprocal give ~1e-3-level deviation from
    # the f32 reference; 5e-2 tolerance is ample at these sizes.
    ref = reference_forward(X, zelta, params, heads)
    max_err = float(jnp.max(jnp.abs(out - ref)))
    assert max_err < 5e-2, f"mismatch vs f32 reference: {max_err}"

    print("KERNEL_OK")
</pallas_src>

<mosaic_0001>
module attributes {stable_mosaic.version = 11 : i64} {
  func.func @_decoder_kernel(%arg0: i32, %arg1: memref<2x8x32xf32, #tpu.memory_space<vmem>>, %arg2: memref<2x8x32xbf16, #tpu.memory_space<vmem>>, %arg3: memref<1x32x96xbf16, #tpu.memory_space<vmem>>, %arg4: memref<1x1x96xf32, #tpu.memory_space<vmem>>, %arg5: memref<1x32x32xbf16, #tpu.memory_space<vmem>>, %arg6: memref<1x1x32xf32, #tpu.memory_space<vmem>>, %arg7: memref<1x32x32xbf16, #tpu.memory_space<vmem>>, %arg8: memref<1x1x32xf32, #tpu.memory_space<vmem>>, %arg9: memref<1x32x64xbf16, #tpu.memory_space<vmem>>, %arg10: memref<1x1x64xf32, #tpu.memory_space<vmem>>, %arg11: memref<1x32x32xbf16, #tpu.memory_space<vmem>>, %arg12: memref<1x1x32xf32, #tpu.memory_space<vmem>>, %arg13: memref<1x32x128xbf16, #tpu.memory_space<vmem>>, %arg14: memref<1x1x128xf32, #tpu.memory_space<vmem>>, %arg15: memref<1x128x32xbf16, #tpu.memory_space<vmem>>, %arg16: memref<1x1x32xf32, #tpu.memory_space<vmem>>, %arg17: memref<1x1x32xf32, #tpu.memory_space<vmem>>, %arg18: memref<1x1x32xf32, #tpu.memory_space<vmem>>, %arg19: memref<1x1x32xf32, #tpu.memory_space<vmem>>, %arg20: memref<1x1x32xf32, #tpu.memory_space<vmem>>, %arg21: memref<1x1x32xf32, #tpu.memory_space<vmem>>, %arg22: memref<1x1x32xf32, #tpu.memory_space<vmem>>, %arg23: memref<2x8x32xf32, #tpu.memory_space<vmem>>, %arg24: memref<16x32xf32, #tpu.memory_space<vmem>>, %arg25: memref<2x8x32xf32, #tpu.memory_space<vmem>>, %arg26: memref<8x8xf32, #tpu.memory_space<vmem>>) attributes {dimension_semantics = [#tpu.dimension_semantics<arbitrary>], iteration_bounds = array<i64: 2>, scalar_prefetch = 0 : i64, scratch_operands = 3 : i64, tpu.core_type = #tpu.core_type<tc>, window_params = [{pipeline_mode = #tpu.pipeline_mode<synchronous>, transform_indices = @transform_0, window_bounds = array<i64: 2, 8, 32>}, {pipeline_mode = #tpu.pipeline_mode<synchronous>, transform_indices = @transform_1, window_bounds = array<i64: 2, 8, 32>}, {transform_indices = @transform_2, window_bounds = array<i64: 1, 32, 96>}, {transform_indices = @transform_3, window_bounds = array<i64: 1, 1, 96>}, {transform_indices = @transform_4, window_bounds = array<i64: 1, 32, 32>}, {transform_indices = @transform_5, window_bounds = array<i64: 1, 1, 32>}, {transform_indices = @transform_6, window_bounds = array<i64: 1, 32, 32>}, {transform_indices = @transform_7, window_bounds = array<i64: 1, 1, 32>}, {transform_indices = @transform_8, window_bounds = array<i64: 1, 32, 64>}, {transform_indices = @transform_9, window_bounds = array<i64: 1, 1, 64>}, {transform_indices = @transform_10, window_bounds = array<i64: 1, 32, 32>}, {transform_indices = @transform_11, window_bounds = array<i64: 1, 1, 32>}, {transform_indices = @transform_12, window_bounds = array<i64: 1, 32, 128>}, {transform_indices = @transform_13, window_bounds = array<i64: 1, 1, 128>}, {transform_indices = @transform_14, window_bounds = array<i64: 1, 128, 32>}, {transform_indices = @transform_15, window_bounds = array<i64: 1, 1, 32>}, {transform_indices = @transform_16, window_bounds = array<i64: 1, 1, 32>}, {transform_indices = @transform_17, window_bounds = array<i64: 1, 1, 32>}, {transform_indices = @transform_18, window_bounds = array<i64: 1, 1, 32>}, {transform_indices = @transform_19, window_bounds = array<i64: 1, 1, 32>}, {transform_indices = @transform_20, window_bounds = array<i64: 1, 1, 32>}, {transform_indices = @transform_21, window_bounds = array<i64: 1, 1, 32>}, {pipeline_mode = #tpu.pipeline_mode<synchronous>, transform_indices = @transform_22, window_bounds = array<i64: 2, 8, 32>}]} {
    %c0_i32 = arith.constant 0 : i32
    %0 = arith.cmpi eq, %arg0, %c0_i32 : i32
    %1 = arith.extui %0 : i1 to i32
    %c0_i32_0 = arith.constant 0 : i32
    %2 = arith.cmpi ne, %1, %c0_i32_0 : i32
    scf.if %2 {
      %c0_150 = arith.constant 0 : index
      %c0_151 = arith.constant 0 : index
      %c0_152 = arith.constant 0 : index
      %296 = vector.load %arg1[%c0_150, %c0_151, %c0_152] : memref<2x8x32xf32, #tpu.memory_space<vmem>>, vector<2x8x32xf32>
      %297 = vector.shape_cast %296 : vector<2x8x32xf32> to vector<16x32xf32>
      %c0_153 = arith.constant 0 : index
      %c0_154 = arith.constant 0 : index
      %298 = vector.load %arg24[%c0_153, %c0_154] : memref<16x32xf32, #tpu.memory_space<vmem>>, vector<16x32xf32>
      tpu.vector_store %arg24[%c0_153, %c0_154], %297 {strides = array<i32>} : memref<16x32xf32, #tpu.memory_space<vmem>>, vector<16x32xf32>,
    } else {
    }
    %c0 = arith.constant 0 : index
    %c0_1 = arith.constant 0 : index
    %3 = vector.load %arg24[%c0, %c0_1] : memref<16x32xf32, #tpu.memory_space<vmem>>, vector<16x32xf32>
    %4 = arith.truncf %3 : vector<16x32xf32> to vector<16x32xbf16>
    %c0_2 = arith.constant 0 : index
    %c0_3 = arith.constant 0 : index
    %c0_4 = arith.constant 0 : index
    %5 = vector.load %arg3[%c0_2, %c0_3, %c0_4] : memref<1x32x96xbf16, #tpu.memory_space<vmem>>, vector<1x32x96xbf16>
    %6 = vector.shape_cast %5 : vector<1x32x96xbf16> to vector<32x96xbf16>
    %cst = arith.constant dense<0.000000e+00> : vector<16x96xf32>
    %7 = tpu.matmul %4, %6, %cst {dimension_numbers = #tpu.dot_dimension_numbers<[1], [0], [0], [1], [0, 0, 1, 1], [], []>} : vector<16x32xbf16>, vector<32x96xbf16>, vector<16x96xf32> -> vector<16x96xf32>
    %c0_5 = arith.constant 0 : index
    %c0_6 = arith.constant 0 : index
    %c0_7 = arith.constant 0 : index
    %8 = vector.load %arg4[%c0_5, %c0_6, %c0_7] : memref<1x1x96xf32, #tpu.memory_space<vmem>>, vector<1x1x96xf32>
    %9 = vector.shape_cast %8 : vector<1x1x96xf32> to vector<1x96xf32>
    %10 = vector.broadcast %9 : vector<1x96xf32> to vector<16x96xf32>
    %11 = arith.addf %7, %10 : vector<16x96xf32>
    %12 = arith.truncf %11 : vector<16x96xf32> to vector<16x96xbf16>
    %13 = vector.shape_cast %12 : vector<16x96xbf16> to vector<2x8x96xbf16>
    %14 = vector.extract_strided_slice %13 {offsets = [0, 0, 0], sizes = [2, 8, 8], strides = [1, 1, 1]} : vector<2x8x96xbf16> to vector<2x8x8xbf16>
    %15 = vector.extract_strided_slice %13 {offsets = [0, 0, 32], sizes = [2, 8, 8], strides = [1, 1, 1]} : vector<2x8x96xbf16> to vector<2x8x8xbf16>
    %16 = vector.extract_strided_slice %13 {offsets = [0, 0, 64], sizes = [2, 8, 8], strides = [1, 1, 1]} : vector<2x8x96xbf16> to vector<2x8x8xbf16>
    "tpu.trace_start"() <{level = 10 : i32, message = "bqd,bkd->bqk"}> : () -> ()
    %cst_8 = arith.constant dense<0.000000e+00> : vector<2x8x8xf32>
    %17 = tpu.matmul %14, %15, %cst_8 {dimension_numbers = #tpu.dot_dimension_numbers<[2], [2], [1], [1], [0, 0, 0, 1, 1, 1], [0], [0]>} : vector<2x8x8xbf16>, vector<2x8x8xbf16>, vector<2x8x8xf32> -> vector<2x8x8xf32>
    "tpu.trace_stop"() : () -> ()
    %cst_9 = arith.constant dense<0xFF800000> : vector<2x8xf32>
    %18 = vector.multi_reduction <maximumf>, %17, %cst_9 [2] : vector<2x8x8xf32> to vector<2x8xf32>
    %19 = vector.shape_cast %18 : vector<2x8xf32> to vector<2x8x1xf32>
    %20 = vector.broadcast %19 : vector<2x8x1xf32> to vector<2x8x8xf32>
    %21 = arith.subf %17, %20 : vector<2x8x8xf32>
    %22 = math.exp %21 : vector<2x8x8xf32>
    %cst_10 = arith.constant dense<0.000000e+00> : vector<2x8xf32>
    %23 = vector.multi_reduction <add>, %22, %cst_10 [2] : vector<2x8x8xf32> to vector<2x8xf32>
    %24 = vector.shape_cast %23 : vector<2x8xf32> to vector<2x8x1xf32>
    %25 = tpu.reciprocal %24 {approx = true} : vector<2x8x1xf32> -> vector<2x8x1xf32>
    %26 = vector.broadcast %25 : vector<2x8x1xf32> to vector<2x8x8xf32>
    %27 = arith.mulf %22, %26 : vector<2x8x8xf32>
    %28 = arith.truncf %27 : vector<2x8x8xf32> to vector<2x8x8xbf16>
    "tpu.trace_start"() <{level = 10 : i32, message = "bqk,bkd->bqd"}> : () -> ()
    %cst_11 = arith.constant dense<0.000000e+00> : vector<2x8x8xf32>
    %29 = tpu.matmul %28, %16, %cst_11 {dimension_numbers = #tpu.dot_dimension_numbers<[2], [1], [1], [2], [0, 0, 0, 1, 1, 2], [0], [0]>} : vector<2x8x8xbf16>, vector<2x8x8xbf16>, vector<2x8x8xf32> -> vector<2x8x8xf32>
    "tpu.trace_stop"() : () -> ()
    %c0_12 = arith.constant 0 : index
    %c0_13 = arith.constant 0 : index
    %c0_14 = arith.constant 0 : index
    %30 = vector.load %arg25[%c0_12, %c0_13, %c0_14] : memref<2x8x32xf32, #tpu.memory_space<vmem>>, vector<2x8x8xf32>
    tpu.vector_store %arg25[%c0_12, %c0_13, %c0_14], %29 {strides = array<i32>} : memref<2x8x32xf32, #tpu.memory_space<vmem>>, vector<2x8x8xf32>,
    %31 = vector.extract_strided_slice %13 {offsets = [0, 0, 8], sizes = [2, 8, 8], strides = [1, 1, 1]} : vector<2x8x96xbf16> to vector<2x8x8xbf16>
    %32 = vector.extract_strided_slice %13 {offsets = [0, 0, 40], sizes = [2, 8, 8], strides = [1, 1, 1]} : vector<2x8x96xbf16> to vector<2x8x8xbf16>
    %33 = vector.extract_strided_slice %13 {offsets = [0, 0, 72], sizes = [2, 8, 8], strides = [1, 1, 1]} : vector<2x8x96xbf16> to vector<2x8x8xbf16>
    "tpu.trace_start"() <{level = 10 : i32, message = "bqd,bkd->bqk"}> : () -> ()
    %cst_15 = arith.constant dense<0.000000e+00> : vector<2x8x8xf32>
    %34 = tpu.matmul %31, %32, %cst_15 {dimension_numbers = #tpu.dot_dimension_numbers<[2], [2], [1], [1], [0, 0, 0, 1, 1, 1], [0], [0]>} : vector<2x8x8xbf16>, vector<2x8x8xbf16>, vector<2x8x8xf32> -> vector<2x8x8xf32>
    "tpu.trace_stop"() : () -> ()
    %cst_16 = arith.constant dense<0xFF800000> : vector<2x8xf32>
    %35 = vector.multi_reduction <maximumf>, %34, %cst_16 [2] : vector<2x8x8xf32> to vector<2x8xf32>
    %36 = vector.shape_cast %35 : vector<2x8xf32> to vector<2x8x1xf32>
    %37 = vector.broadcast %36 : vector<2x8x1xf32> to vector<2x8x8xf32>
    %38 = arith.subf %34, %37 : vector<2x8x8xf32>
    %39 = math.exp %38 : vector<2x8x8xf32>
    %cst_17 = arith.constant dense<0.000000e+00> : vector<2x8xf32>
    %40 = vector.multi_reduction <add>, %39, %cst_17 [2] : vector<2x8x8xf32> to vector<2x8xf32>
    %41 = vector.shape_cast %40 : vector<2x8xf32> to vector<2x8x1xf32>
    %42 = tpu.reciprocal %41 {approx = true} : vector<2x8x1xf32> -> vector<2x8x1xf32>
    %43 = vector.broadcast %42 : vector<2x8x1xf32> to vector<2x8x8xf32>
    %44 = arith.mulf %39, %43 : vector<2x8x8xf32>
    %45 = arith.truncf %44 : vector<2x8x8xf32> to vector<2x8x8xbf16>
    "tpu.trace_start"() <{level = 10 : i32, message = "bqk,bkd->bqd"}> : () -> ()
    %cst_18 = arith.constant dense<0.000000e+00> : vector<2x8x8xf32>
    %46 = tpu.matmul %45, %33, %cst_18 {dimension_numbers = #tpu.dot_dimension_numbers<[2], [1], [1], [2], [0, 0, 0, 1, 1, 2], [0], [0]>} : vector<2x8x8xbf16>, vector<2x8x8xbf16>, vector<2x8x8xf32> -> vector<2x8x8xf32>
    "tpu.trace_stop"() : () -> ()
    %c0_19 = arith.constant 0 : index
    %c0_20 = arith.constant 0 : index
    %c8 = arith.constant 8 : index
    %47 = vector.load %arg25[%c0_19, %c0_20, %c8] : memref<2x8x32xf32, #tpu.memory_space<vmem>>, vector<2x8x8xf32>
    tpu.vector_store %arg25[%c0_19, %c0_20, %c8], %46 {strides = array<i32>} : memref<2x8x32xf32, #tpu.memory_space<vmem>>, vector<2x8x8xf32>,
    %48 = vector.extract_strided_slice %13 {offsets = [0, 0, 16], sizes = [2, 8, 8], strides = [1, 1, 1]} : vector<2x8x96xbf16> to vector<2x8x8xbf16>
    %49 = vector.extract_strided_slice %13 {offsets = [0, 0, 48], sizes = [2, 8, 8], strides = [1, 1, 1]} : vector<2x8x96xbf16> to vector<2x8x8xbf16>
    %50 = vector.extract_strided_slice %13 {offsets = [0, 0, 80], sizes = [2, 8, 8], strides = [1, 1, 1]} : vector<2x8x96xbf16> to vector<2x8x8xbf16>
    "tpu.trace_start"() <{level = 10 : i32, message = "bqd,bkd->bqk"}> : () -> ()
    %cst_21 = arith.constant dense<0.000000e+00> : vector<2x8x8xf32>
    %51 = tpu.matmul %48, %49, %cst_21 {dimension_numbers = #tpu.dot_dimension_numbers<[2], [2], [1], [1], [0, 0, 0, 1, 1, 1], [0], [0]>} : vector<2x8x8xbf16>, vector<2x8x8xbf16>, vector<2x8x8xf32> -> vector<2x8x8xf32>
    "tpu.trace_stop"() : () -> ()
    %cst_22 = arith.constant dense<0xFF800000> : vector<2x8xf32>
    %52 = vector.multi_reduction <maximumf>, %51, %cst_22 [2] : vector<2x8x8xf32> to vector<2x8xf32>
    %53 = vector.shape_cast %52 : vector<2x8xf32> to vector<2x8x1xf32>
    %54 = vector.broadcast %53 : vector<2x8x1xf32> to vector<2x8x8xf32>
    %55 = arith.subf %51, %54 : vector<2x8x8xf32>
    %56 = math.exp %55 : vector<2x8x8xf32>
    %cst_23 = arith.constant dense<0.000000e+00> : vector<2x8xf32>
    %57 = vector.multi_reduction <add>, %56, %cst_23 [2] : vector<2x8x8xf32> to vector<2x8xf32>
    %58 = vector.shape_cast %57 : vector<2x8xf32> to vector<2x8x1xf32>
    %59 = tpu.reciprocal %58 {approx = true} : vector<2x8x1xf32> -> vector<2x8x1xf32>
    %60 = vector.broadcast %59 : vector<2x8x1xf32> to vector<2x8x8xf32>
    %61 = arith.mulf %56, %60 : vector<2x8x8xf32>
    %62 = arith.truncf %61 : vector<2x8x8xf32> to vector<2x8x8xbf16>
    "tpu.trace_start"() <{level = 10 : i32, message = "bqk,bkd->bqd"}> : () -> ()
    %cst_24 = arith.constant dense<0.000000e+00> : vector<2x8x8xf32>
    %63 = tpu.matmul %62, %50, %cst_24 {dimension_numbers = #tpu.dot_dimension_numbers<[2], [1], [1], [2], [0, 0, 0, 1, 1, 2], [0], [0]>} : vector<2x8x8xbf16>, vector<2x8x8xbf16>, vector<2x8x8xf32> -> vector<2x8x8xf32>
    "tpu.trace_stop"() : () -> ()
    %c0_25 = arith.constant 0 : index
    %c0_26 = arith.constant 0 : index
    %c16 = arith.constant 16 : index
    %64 = vector.load %arg25[%c0_25, %c0_26, %c16] : memref<2x8x32xf32, #tpu.memory_space<vmem>>, vector<2x8x8xf32>
    tpu.vector_store %arg25[%c0_25, %c0_26, %c16], %63 {strides = array<i32>} : memref<2x8x32xf32, #tpu.memory_space<vmem>>, vector<2x8x8xf32>,
    %65 = vector.extract_strided_slice %13 {offsets = [0, 0, 24], sizes = [2, 8, 8], strides = [1, 1, 1]} : vector<2x8x96xbf16> to vector<2x8x8xbf16>
    %66 = vector.extract_strided_slice %13 {offsets = [0, 0, 56], sizes = [2, 8, 8], strides = [1, 1, 1]} : vector<2x8x96xbf16> to vector<2x8x8xbf16>
    %67 = vector.extract_strided_slice %13 {offsets = [0, 0, 88], sizes = [2, 8, 8], strides = [1, 1, 1]} : vector<2x8x96xbf16> to vector<2x8x8xbf16>
    "tpu.trace_start"() <{level = 10 : i32, message = "bqd,bkd->bqk"}> : () -> ()
    %cst_27 = arith.constant dense<0.000000e+00> : vector<2x8x8xf32>
    %68 = tpu.matmul %65, %66, %cst_27 {dimension_numbers = #tpu.dot_dimension_numbers<[2], [2], [1], [1], [0, 0, 0, 1, 1, 1], [0], [0]>} : vector<2x8x8xbf16>, vector<2x8x8xbf16>, vector<2x8x8xf32> -> vector<2x8x8xf32>
    "tpu.trace_stop"() : () -> ()
    %cst_28 = arith.constant dense<0xFF800000> : vector<2x8xf32>
    %69 = vector.multi_reduction <maximumf>, %68, %cst_28 [2] : vector<2x8x8xf32> to vector<2x8xf32>
    %70 = vector.shape_cast %69 : vector<2x8xf32> to vector<2x8x1xf32>
    %71 = vector.broadcast %70 : vector<2x8x1xf32> to vector<2x8x8xf32>
    %72 = arith.subf %68, %71 : vector<2x8x8xf32>
    %73 = math.exp %72 : vector<2x8x8xf32>
    %cst_29 = arith.constant dense<0.000000e+00> : vector<2x8xf32>
    %74 = vector.multi_reduction <add>, %73, %cst_29 [2] : vector<2x8x8xf32> to vector<2x8xf32>
    %75 = vector.shape_cast %74 : vector<2x8xf32> to vector<2x8x1xf32>
    %76 = tpu.reciprocal %75 {approx = true} : vector<2x8x1xf32> -> vector<2x8x1xf32>
    %77 = vector.broadcast %76 : vector<2x8x1xf32> to vector<2x8x8xf32>
    %78 = arith.mulf %73, %77 : vector<2x8x8xf32>
    %79 = arith.truncf %78 : vector<2x8x8xf32> to vector<2x8x8xbf16>
    "tpu.trace_start"() <{level = 10 : i32, message = "bqk,bkd->bqd"}> : () -> ()
    %cst_30 = arith.constant dense<0.000000e+00> : vector<2x8x8xf32>
    %80 = tpu.matmul %79, %67, %cst_30 {dimension_numbers = #tpu.dot_dimension_numbers<[2], [1], [1], [2], [0, 0, 0, 1, 1, 2], [0], [0]>} : vector<2x8x8xbf16>, vector<2x8x8xbf16>, vector<2x8x8xf32> -> vector<2x8x8xf32>
    "tpu.trace_stop"() : () -> ()
    %c0_31 = arith.constant 0 : index
    %c0_32 = arith.constant 0 : index
    %c24 = arith.constant 24 : index
    %81 = vector.load %arg25[%c0_31, %c0_32, %c24] : memref<2x8x32xf32, #tpu.memory_space<vmem>>, vector<2x8x8xf32>
    tpu.vector_store %arg25[%c0_31, %c0_32, %c24], %80 {strides = array<i32>} : memref<2x8x32xf32, #tpu.memory_space<vmem>>, vector<2x8x8xf32>,
    %c0_33 = arith.constant 0 : index
    %c0_34 = arith.constant 0 : index
    %c0_35 = arith.constant 0 : index
    %82 = vector.load %arg25[%c0_33, %c0_34, %c0_35] : memref<2x8x32xf32, #tpu.memory_space<vmem>>, vector<2x8x32xf32>
    %83 = vector.shape_cast %82 : vector<2x8x32xf32> to vector<16x32xf32>
    %84 = arith.truncf %83 : vector<16x32xf32> to vector<16x32xbf16>
    %c0_36 = arith.constant 0 : index
    %c0_37 = arith.constant 0 : index
    %c0_38 = arith.constant 0 : index
    %85 = vector.load %arg5[%c0_36, %c0_37, %c0_38] : memref<1x32x32xbf16, #tpu.memory_space<vmem>>, vector<1x32x32xbf16>
    %86 = vector.shape_cast %85 : vector<1x32x32xbf16> to vector<32x32xbf16>
    %cst_39 = arith.constant dense<0.000000e+00> : vector<16x32xf32>
    %87 = tpu.matmul %84, %86, %cst_39 {dimension_numbers = #tpu.dot_dimension_numbers<[1], [0], [0], [1], [0, 0, 1, 1], [], []>} : vector<16x32xbf16>, vector<32x32xbf16>, vector<16x32xf32> -> vector<16x32xf32>
    %c0_40 = arith.constant 0 : index
    %c0_41 = arith.constant 0 : index
    %c0_42 = arith.constant 0 : index
    %88 = vector.load %arg6[%c0_40, %c0_41, %c0_42] : memref<1x1x32xf32, #tpu.memory_space<vmem>>, vector<1x1x32xf32>
    %89 = vector.shape_cast %88 : vector<1x1x32xf32> to vector<1x32xf32>
    %90 = vector.broadcast %89 : vector<1x32xf32> to vector<16x32xf32>
    %91 = arith.addf %87, %90 : vector<16x32xf32>
    %92 = arith.addf %3, %91 : vector<16x32xf32>
    %c0_43 = arith.constant 0 : index
    %c0_44 = arith.constant 0 : index
    %c0_45 = arith.constant 0 : index
    %93 = vector.load %arg17[%c0_43, %c0_44, %c0_45] : memref<1x1x32xf32, #tpu.memory_space<vmem>>, vector<1x1x32xf32>
    %94 = vector.shape_cast %93 : vector<1x1x32xf32> to vector<1x32xf32>
    %c0_46 = arith.constant 0 : index
    %c0_47 = arith.constant 0 : index
    %c0_48 = arith.constant 0 : index
    %95 = vector.load %arg18[%c0_46, %c0_47, %c0_48] : memref<1x1x32xf32, #tpu.memory_space<vmem>>, vector<1x1x32xf32>
    %96 = vector.shape_cast %95 : vector<1x1x32xf32> to vector<1x32xf32>
    %cst_49 = arith.constant dense<0.000000e+00> : vector<16xf32>
    %97 = vector.multi_reduction <add>, %92, %cst_49 [1] : vector<16x32xf32> to vector<16xf32>
    %98 = vector.shape_cast %97 : vector<16xf32> to vector<16x1xf32>
    %cst_50 = arith.constant 3.200000e+01 : f32
    %99 = vector.broadcast %cst_50 : f32 to vector<16x1xf32>
    %100 = arith.divf %98, %99 : vector<16x1xf32>
    %101 = vector.broadcast %100 : vector<16x1xf32> to vector<16x32xf32>
    %102 = arith.subf %92, %101 : vector<16x32xf32>
    %103 = arith.mulf %102, %102 : vector<16x32xf32>
    %cst_51 = arith.constant dense<0.000000e+00> : vector<16xf32>
    %104 = vector.multi_reduction <add>, %103, %cst_51 [1] : vector<16x32xf32> to vector<16xf32>
    %105 = vector.shape_cast %104 : vector<16xf32> to vector<16x1xf32>
    %cst_52 = arith.constant 3.200000e+01 : f32
    %106 = vector.broadcast %cst_52 : f32 to vector<16x1xf32>
    %107 = arith.divf %105, %106 : vector<16x1xf32>
    %108 = vector.broadcast %100 : vector<16x1xf32> to vector<16x32xf32>
    %109 = arith.subf %92, %108 : vector<16x32xf32>
    %cst_53 = arith.constant 9.99999974E-6 : f32
    %110 = vector.broadcast %cst_53 : f32 to vector<16x1xf32>
    %111 = arith.addf %107, %110 : vector<16x1xf32>
    %112 = math.rsqrt %111 : vector<16x1xf32>
    %113 = vector.broadcast %112 : vector<16x1xf32> to vector<16x32xf32>
    %114 = arith.mulf %109, %113 : vector<16x32xf32>
    %115 = vector.broadcast %94 : vector<1x32xf32> to vector<16x32xf32>
    %116 = arith.mulf %114, %115 : vector<16x32xf32>
    %117 = vector.broadcast %96 : vector<1x32xf32> to vector<16x32xf32>
    %118 = arith.addf %116, %117 : vector<16x32xf32>
    %119 = arith.truncf %118 : vector<16x32xf32> to vector<16x32xbf16>
    %c0_54 = arith.constant 0 : index
    %c0_55 = arith.constant 0 : index
    %c0_56 = arith.constant 0 : index
    %120 = vector.load %arg7[%c0_54, %c0_55, %c0_56] : memref<1x32x32xbf16, #tpu.memory_space<vmem>>, vector<1x32x32xbf16>
    %121 = vector.shape_cast %120 : vector<1x32x32xbf16> to vector<32x32xbf16>
    %cst_57 = arith.constant dense<0.000000e+00> : vector<16x32xf32>
    %122 = tpu.matmul %119, %121, %cst_57 {dimension_numbers = #tpu.dot_dimension_numbers<[1], [0], [0], [1], [0, 0, 1, 1], [], []>} : vector<16x32xbf16>, vector<32x32xbf16>, vector<16x32xf32> -> vector<16x32xf32>
    %c0_58 = arith.constant 0 : index
    %c0_59 = arith.constant 0 : index
    %c0_60 = arith.constant 0 : index
    %123 = vector.load %arg8[%c0_58, %c0_59, %c0_60] : memref<1x1x32xf32, #tpu.memory_space<vmem>>, vector<1x1x32xf32>
    %124 = vector.shape_cast %123 : vector<1x1x32xf32> to vector<1x32xf32>
    %125 = vector.broadcast %124 : vector<1x32xf32> to vector<16x32xf32>
    %126 = arith.addf %122, %125 : vector<16x32xf32>
    %c0_61 = arith.constant 0 : index
    %c0_62 = arith.constant 0 : index
    %c0_63 = arith.constant 0 : index
    %127 = vector.load %arg2[%c0_61, %c0_62, %c0_63] : memref<2x8x32xbf16, #tpu.memory_space<vmem>>, vector<2x8x32xbf16>
    %128 = vector.shape_cast %127 : vector<2x8x32xbf16> to vector<16x32xbf16>
    %c0_64 = arith.constant 0 : index
    %c0_65 = arith.constant 0 : index
    %c0_66 = arith.constant 0 : index
    %129 = vector.load %arg9[%c0_64, %c0_65, %c0_66] : memref<1x32x64xbf16, #tpu.memory_space<vmem>>, vector<1x32x64xbf16>
    %130 = vector.shape_cast %129 : vector<1x32x64xbf16> to vector<32x64xbf16>
    %cst_67 = arith.constant dense<0.000000e+00> : vector<16x64xf32>
    %131 = tpu.matmul %128, %130, %cst_67 {dimension_numbers = #tpu.dot_dimension_numbers<[1], [0], [0], [1], [0, 0, 1, 1], [], []>} : vector<16x32xbf16>, vector<32x64xbf16>, vector<16x64xf32> -> vector<16x64xf32>
    %c0_68 = arith.constant 0 : index
    %c0_69 = arith.constant 0 : index
    %c0_70 = arith.constant 0 : index
    %132 = vector.load %arg10[%c0_68, %c0_69, %c0_70] : memref<1x1x64xf32, #tpu.memory_space<vmem>>, vector<1x1x64xf32>
    %133 = vector.shape_cast %132 : vector<1x1x64xf32> to vector<1x64xf32>
    %134 = vector.broadcast %133 : vector<1x64xf32> to vector<16x64xf32>
    %135 = arith.addf %131, %134 : vector<16x64xf32>
    %136 = arith.truncf %126 : vector<16x32xf32> to vector<16x32xbf16>
    %137 = vector.shape_cast %136 : vector<16x32xbf16> to vector<2x8x32xbf16>
    %138 = arith.truncf %135 : vector<16x64xf32> to vector<16x64xbf16>
    %139 = vector.shape_cast %138 : vector<16x64xbf16> to vector<2x8x64xbf16>
    %140 = vector.extract_strided_slice %137 {offsets = [0, 0, 0], sizes = [2, 8, 8], strides = [1, 1, 1]} : vector<2x8x32xbf16> to vector<2x8x8xbf16>
    %141 = vector.extract_strided_slice %139 {offsets = [0, 0, 0], sizes = [2, 8, 8], strides = [1, 1, 1]} : vector<2x8x64xbf16> to vector<2x8x8xbf16>
    %142 = vector.extract_strided_slice %139 {offsets = [0, 0, 32], sizes = [2, 8, 8], strides = [1, 1, 1]} : vector<2x8x64xbf16> to vector<2x8x8xbf16>
    "tpu.trace_start"() <{level = 10 : i32, message = "bqd,bkd->bqk"}> : () -> ()
    %cst_71 = arith.constant dense<0.000000e+00> : vector<2x8x8xf32>
    %143 = tpu.matmul %140, %141, %cst_71 {dimension_numbers = #tpu.dot_dimension_numbers<[2], [2], [1], [1], [0, 0, 0, 1, 1, 1], [0], [0]>} : vector<2x8x8xbf16>, vector<2x8x8xbf16>, vector<2x8x8xf32> -> vector<2x8x8xf32>
    "tpu.trace_stop"() : () -> ()
    %cst_72 = arith.constant dense<0xFF800000> : vector<2x8xf32>
    %144 = vector.multi_reduction <maximumf>, %143, %cst_72 [2] : vector<2x8x8xf32> to vector<2x8xf32>
    %145 = vector.shape_cast %144 : vector<2x8xf32> to vector<2x8x1xf32>
    %146 = vector.broadcast %145 : vector<2x8x1xf32> to vector<2x8x8xf32>
    %147 = arith.subf %143, %146 : vector<2x8x8xf32>
    %148 = math.exp %147 : vector<2x8x8xf32>
    %cst_73 = arith.constant dense<0.000000e+00> : vector<2x8xf32>
    %149 = vector.multi_reduction <add>, %148, %cst_73 [2] : vector<2x8x8xf32> to vector<2x8xf32>
    %150 = vector.shape_cast %149 : vector<2x8xf32> to vector<2x8x1xf32>
    %151 = tpu.reciprocal %150 {approx = true} : vector<2x8x1xf32> -> vector<2x8x1xf32>
    %152 = vector.broadcast %151 : vector<2x8x1xf32> to vector<2x8x8xf32>
    %153 = arith.mulf %148, %152 : vector<2x8x8xf32>
    %154 = arith.truncf %153 : vector<2x8x8xf32> to vector<2x8x8xbf16>
    "tpu.trace_start"() <{level = 10 : i32, message = "bqk,bkd->bqd"}> : () -> ()
    %cst_74 = arith.constant dense<0.000000e+00> : vector<2x8x8xf32>
    %155 = tpu.matmul %154, %142, %cst_74 {dimension_numbers = #tpu.dot_dimension_numbers<[2], [1], [1], [2], [0, 0, 0, 1, 1, 2], [0], [0]>} : vector<2x8x8xbf16>, vector<2x8x8xbf16>, vector<2x8x8xf32> -> vector<2x8x8xf32>
    "tpu.trace_stop"() : () -> ()
    %c0_75 = arith.constant 0 : index
    %c0_76 = arith.constant 0 : index
    %c0_77 = arith.constant 0 : index
    %156 = vector.load %arg25[%c0_75, %c0_76, %c0_77] : memref<2x8x32xf32, #tpu.memory_space<vmem>>, vector<2x8x8xf32>
    tpu.vector_store %arg25[%c0_75, %c0_76, %c0_77], %155 {strides = array<i32>} : memref<2x8x32xf32, #tpu.memory_space<vmem>>, vector<2x8x8xf32>,
    %157 = vector.extract_strided_slice %137 {offsets = [0, 0, 8], sizes = [2, 8, 8], strides = [1, 1, 1]} : vector<2x8x32xbf16> to vector<2x8x8xbf16>
    %158 = vector.extract_strided_slice %139 {offsets = [0, 0, 8], sizes = [2, 8, 8], strides = [1, 1, 1]} : vector<2x8x64xbf16> to vector<2x8x8xbf16>
    %159 = vector.extract_strided_slice %139 {offsets = [0, 0, 40], sizes = [2, 8, 8], strides = [1, 1, 1]} : vector<2x8x64xbf16> to vector<2x8x8xbf16>
    "tpu.trace_start"() <{level = 10 : i32, message = "bqd,bkd->bqk"}> : () -> ()
    %cst_78 = arith.constant dense<0.000000e+00> : vector<2x8x8xf32>
    %160 = tpu.matmul %157, %158, %cst_78 {dimension_numbers = #tpu.dot_dimension_numbers<[2], [2], [1], [1], [0, 0, 0, 1, 1, 1], [0], [0]>} : vector<2x8x8xbf16>, vector<2x8x8xbf16>, vector<2x8x8xf32> -> vector<2x8x8xf32>
    "tpu.trace_stop"() : () -> ()
    %cst_79 = arith.constant dense<0xFF800000> : vector<2x8xf32>
    %161 = vector.multi_reduction <maximumf>, %160, %cst_79 [2] : vector<2x8x8xf32> to vector<2x8xf32>
    %162 = vector.shape_cast %161 : vector<2x8xf32> to vector<2x8x1xf32>
    %163 = vector.broadcast %162 : vector<2x8x1xf32> to vector<2x8x8xf32>
    %164 = arith.subf %160, %163 : vector<2x8x8xf32>
    %165 = math.exp %164 : vector<2x8x8xf32>
    %cst_80 = arith.constant dense<0.000000e+00> : vector<2x8xf32>
    %166 = vector.multi_reduction <add>, %165, %cst_80 [2] : vector<2x8x8xf32> to vector<2x8xf32>
    %167 = vector.shape_cast %166 : vector<2x8xf32> to vector<2x8x1xf32>
    %168 = tpu.reciprocal %167 {approx = true} : vector<2x8x1xf32> -> vector<2x8x1xf32>
    %169 = vector.broadcast %168 : vector<2x8x1xf32> to vector<2x8x8xf32>
    %170 = arith.mulf %165, %169 : vector<2x8x8xf32>
    %171 = arith.truncf %170 : vector<2x8x8xf32> to vector<2x8x8xbf16>
    "tpu.trace_start"() <{level = 10 : i32, message = "bqk,bkd->bqd"}> : () -> ()
    %cst_81 = arith.constant dense<0.000000e+00> : vector<2x8x8xf32>
    %172 = tpu.matmul %171, %159, %cst_81 {dimension_numbers = #tpu.dot_dimension_numbers<[2], [1], [1], [2], [0, 0, 0, 1, 1, 2], [0], [0]>} : vector<2x8x8xbf16>, vector<2x8x8xbf16>, vector<2x8x8xf32> -> vector<2x8x8xf32>
    "tpu.trace_stop"() : () -> ()
    %c0_82 = arith.constant 0 : index
    %c0_83 = arith.constant 0 : index
    %c8_84 = arith.constant 8 : index
    %173 = vector.load %arg25[%c0_82, %c0_83, %c8_84] : memref<2x8x32xf32, #tpu.memory_space<vmem>>, vector<2x8x8xf32>
    tpu.vector_store %arg25[%c0_82, %c0_83, %c8_84], %172 {strides = array<i32>} : memref<2x8x32xf32, #tpu.memory_space<vmem>>, vector<2x8x8xf32>,
    %174 = vector.extract_strided_slice %137 {offsets = [0, 0, 16], sizes = [2, 8, 8], strides = [1, 1, 1]} : vector<2x8x32xbf16> to vector<2x8x8xbf16>
    %175 = vector.extract_strided_slice %139 {offsets = [0, 0, 16], sizes = [2, 8, 8], strides = [1, 1, 1]} : vector<2x8x64xbf16> to vector<2x8x8xbf16>
    %176 = vector.extract_strided_slice %139 {offsets = [0, 0, 48], sizes = [2, 8, 8], strides = [1, 1, 1]} : vector<2x8x64xbf16> to vector<2x8x8xbf16>
    "tpu.trace_start"() <{level = 10 : i32, message = "bqd,bkd->bqk"}> : () -> ()
    %cst_85 = arith.constant dense<0.000000e+00> : vector<2x8x8xf32>
    %177 = tpu.matmul %174, %175, %cst_85 {dimension_numbers = #tpu.dot_dimension_numbers<[2], [2], [1], [1], [0, 0, 0, 1, 1, 1], [0], [0]>} : vector<2x8x8xbf16>, vector<2x8x8xbf16>, vector<2x8x8xf32> -> vector<2x8x8xf32>
    "tpu.trace_stop"() : () -> ()
    %cst_86 = arith.constant dense<0xFF800000> : vector<2x8xf32>
    %178 = vector.multi_reduction <maximumf>, %177, %cst_86 [2] : vector<2x8x8xf32> to vector<2x8xf32>
    %179 = vector.shape_cast %178 : vector<2x8xf32> to vector<2x8x1xf32>
    %180 = vector.broadcast %179 : vector<2x8x1xf32> to vector<2x8x8xf32>
    %181 = arith.subf %177, %180 : vector<2x8x8xf32>
    %182 = math.exp %181 : vector<2x8x8xf32>
    %cst_87 = arith.constant dense<0.000000e+00> : vector<2x8xf32>
    %183 = vector.multi_reduction <add>, %182, %cst_87 [2] : vector<2x8x8xf32> to vector<2x8xf32>
    %184 = vector.shape_cast %183 : vector<2x8xf32> to vector<2x8x1xf32>
    %185 = tpu.reciprocal %184 {approx = true} : vector<2x8x1xf32> -> vector<2x8x1xf32>
    %186 = vector.broadcast %185 : vector<2x8x1xf32> to vector<2x8x8xf32>
    %187 = arith.mulf %182, %186 : vector<2x8x8xf32>
    %188 = arith.truncf %187 : vector<2x8x8xf32> to vector<2x8x8xbf16>
    "tpu.trace_start"() <{level = 10 : i32, message = "bqk,bkd->bqd"}> : () -> ()
    %cst_88 = arith.constant dense<0.000000e+00> : vector<2x8x8xf32>
    %189 = tpu.matmul %188, %176, %cst_88 {dimension_numbers = #tpu.dot_dimension_numbers<[2], [1], [1], [2], [0, 0, 0, 1, 1, 2], [0], [0]>} : vector<2x8x8xbf16>, vector<2x8x8xbf16>, vector<2x8x8xf32> -> vector<2x8x8xf32>
    "tpu.trace_stop"() : () -> ()
    %c0_89 = arith.constant 0 : index
    %c0_90 = arith.constant 0 : index
    %c16_91 = arith.constant 16 : index
    %190 = vector.load %arg25[%c0_89, %c0_90, %c16_91] : memref<2x8x32xf32, #tpu.memory_space<vmem>>, vector<2x8x8xf32>
    tpu.vector_store %arg25[%c0_89, %c0_90, %c16_91], %189 {strides = array<i32>} : memref<2x8x32xf32, #tpu.memory_space<vmem>>, vector<2x8x8xf32>,
    %191 = vector.extract_strided_slice %137 {offsets = [0, 0, 24], sizes = [2, 8, 8], strides = [1, 1, 1]} : vector<2x8x32xbf16> to vector<2x8x8xbf16>
    %192 = vector.extract_strided_slice %139 {offsets = [0, 0, 24], sizes = [2, 8, 8], strides = [1, 1, 1]} : vector<2x8x64xbf16> to vector<2x8x8xbf16>
    %193 = vector.extract_strided_slice %139 {offsets = [0, 0, 56], sizes = [2, 8, 8], strides = [1, 1, 1]} : vector<2x8x64xbf16> to vector<2x8x8xbf16>
    "tpu.trace_start"() <{level = 10 : i32, message = "bqd,bkd->bqk"}> : () -> ()
    %cst_92 = arith.constant dense<0.000000e+00> : vector<2x8x8xf32>
    %194 = tpu.matmul %191, %192, %cst_92 {dimension_numbers = #tpu.dot_dimension_numbers<[2], [2], [1], [1], [0, 0, 0, 1, 1, 1], [0], [0]>} : vector<2x8x8xbf16>, vector<2x8x8xbf16>, vector<2x8x8xf32> -> vector<2x8x8xf32>
    "tpu.trace_stop"() : () -> ()
    %cst_93 = arith.constant dense<0xFF800000> : vector<2x8xf32>
    %195 = vector.multi_reduction <maximumf>, %194, %cst_93 [2] : vector<2x8x8xf32> to vector<2x8xf32>
    %196 = vector.shape_cast %195 : vector<2x8xf32> to vector<2x8x1xf32>
    %197 = vector.broadcast %196 : vector<2x8x1xf32> to vector<2x8x8xf32>
    %198 = arith.subf %194, %197 : vector<2x8x8xf32>
    %199 = math.exp %198 : vector<2x8x8xf32>
    %cst_94 = arith.constant dense<0.000000e+00> : vector<2x8xf32>
    %200 = vector.multi_reduction <add>, %199, %cst_94 [2] : vector<2x8x8xf32> to vector<2x8xf32>
    %201 = vector.shape_cast %200 : vector<2x8xf32> to vector<2x8x1xf32>
    %202 = tpu.reciprocal %201 {approx = true} : vector<2x8x1xf32> -> vector<2x8x1xf32>
    %203 = vector.broadcast %202 : vector<2x8x1xf32> to vector<2x8x8xf32>
    %204 = arith.mulf %199, %203 : vector<2x8x8xf32>
    %205 = arith.truncf %204 : vector<2x8x8xf32> to vector<2x8x8xbf16>
    "tpu.trace_start"() <{level = 10 : i32, message = "bqk,bkd->bqd"}> : () -> ()
    %cst_95 = arith.constant dense<0.000000e+00> : vector<2x8x8xf32>
    %206 = tpu.matmul %205, %193, %cst_95 {dimension_numbers = #tpu.dot_dimension_numbers<[2], [1], [1], [2], [0, 0, 0, 1, 1, 2], [0], [0]>} : vector<2x8x8xbf16>, vector<2x8x8xbf16>, vector<2x8x8xf32> -> vector<2x8x8xf32>
    "tpu.trace_stop"() : () -> ()
    %c0_96 = arith.constant 0 : index
    %c0_97 = arith.constant 0 : index
    %c24_98 = arith.constant 24 : index
    %207 = vector.load %arg25[%c0_96, %c0_97, %c24_98] : memref<2x8x32xf32, #tpu.memory_space<vmem>>, vector<2x8x8xf32>
    tpu.vector_store %arg25[%c0_96, %c0_97, %c24_98], %206 {strides = array<i32>} : memref<2x8x32xf32, #tpu.memory_space<vmem>>, vector<2x8x8xf32>,
    %c0_99 = arith.constant 0 : index
    %c0_100 = arith.constant 0 : index
    %c0_101 = arith.constant 0 : index
    %208 = vector.load %arg25[%c0_99, %c0_100, %c0_101] : memref<2x8x32xf32, #tpu.memory_space<vmem>>, vector<2x8x32xf32>
    %209 = vector.shape_cast %208 : vector<2x8x32xf32> to vector<16x32xf32>
    %210 = arith.truncf %209 : vector<16x32xf32> to vector<16x32xbf16>
    %c0_102 = arith.constant 0 : index
    %c0_103 = arith.constant 0 : index
    %c0_104 = arith.constant 0 : index
    %211 = vector.load %arg11[%c0_102, %c0_103, %c0_104] : memref<1x32x32xbf16, #tpu.memory_space<vmem>>, vector<1x32x32xbf16>
    %212 = vector.shape_cast %211 : vector<1x32x32xbf16> to vector<32x32xbf16>
    %cst_105 = arith.constant dense<0.000000e+00> : vector<16x32xf32>
    %213 = tpu.matmul %210, %212, %cst_105 {dimension_numbers = #tpu.dot_dimension_numbers<[1], [0], [0], [1], [0, 0, 1, 1], [], []>} : vector<16x32xbf16>, vector<32x32xbf16>, vector<16x32xf32> -> vector<16x32xf32>
    %c0_106 = arith.constant 0 : index
    %c0_107 = arith.constant 0 : index
    %c0_108 = arith.constant 0 : index
    %214 = vector.load %arg12[%c0_106, %c0_107, %c0_108] : memref<1x1x32xf32, #tpu.memory_space<vmem>>, vector<1x1x32xf32>
    %215 = vector.shape_cast %214 : vector<1x1x32xf32> to vector<1x32xf32>
    %216 = vector.broadcast %215 : vector<1x32xf32> to vector<16x32xf32>
    %217 = arith.addf %213, %216 : vector<16x32xf32>
    %218 = arith.addf %118, %217 : vector<16x32xf32>
    %c0_109 = arith.constant 0 : index
    %c0_110 = arith.constant 0 : index
    %c0_111 = arith.constant 0 : index
    %219 = vector.load %arg19[%c0_109, %c0_110, %c0_111] : memref<1x1x32xf32, #tpu.memory_space<vmem>>, vector<1x1x32xf32>
    %220 = vector.shape_cast %219 : vector<1x1x32xf32> to vector<1x32xf32>
    %c0_112 = arith.constant 0 : index
    %c0_113 = arith.constant 0 : index
    %c0_114 = arith.constant 0 : index
    %221 = vector.load %arg20[%c0_112, %c0_113, %c0_114] : memref<1x1x32xf32, #tpu.memory_space<vmem>>, vector<1x1x32xf32>
    %222 = vector.shape_cast %221 : vector<1x1x32xf32> to vector<1x32xf32>
    %cst_115 = arith.constant dense<0.000000e+00> : vector<16xf32>
    %223 = vector.multi_reduction <add>, %218, %cst_115 [1] : vector<16x32xf32> to vector<16xf32>
    %224 = vector.shape_cast %223 : vector<16xf32> to vector<16x1xf32>
    %cst_116 = arith.constant 3.200000e+01 : f32
    %225 = vector.broadcast %cst_116 : f32 to vector<16x1xf32>
    %226 = arith.divf %224, %225 : vector<16x1xf32>
    %227 = vector.broadcast %226 : vector<16x1xf32> to vector<16x32xf32>
    %228 = arith.subf %218, %227 : vector<16x32xf32>
    %229 = arith.mulf %228, %228 : vector<16x32xf32>
    %cst_117 = arith.constant dense<0.000000e+00> : vector<16xf32>
    %230 = vector.multi_reduction <add>, %229, %cst_117 [1] : vector<16x32xf32> to vector<16xf32>
    %231 = vector.shape_cast %230 : vector<16xf32> to vector<16x1xf32>
    %cst_118 = arith.constant 3.200000e+01 : f32
    %232 = vector.broadcast %cst_118 : f32 to vector<16x1xf32>
    %233 = arith.divf %231, %232 : vector<16x1xf32>
    %234 = vector.broadcast %226 : vector<16x1xf32> to vector<16x32xf32>
    %235 = arith.subf %218, %234 : vector<16x32xf32>
    %cst_119 = arith.constant 9.99999974E-6 : f32
    %236 = vector.broadcast %cst_119 : f32 to vector<16x1xf32>
    %237 = arith.addf %233, %236 : vector<16x1xf32>
    %238 = math.rsqrt %237 : vector<16x1xf32>
    %239 = vector.broadcast %238 : vector<16x1xf32> to vector<16x32xf32>
    %240 = arith.mulf %235, %239 : vector<16x32xf32>
    %241 = vector.broadcast %220 : vector<1x32xf32> to vector<16x32xf32>
    %242 = arith.mulf %240, %241 : vector<16x32xf32>
    %243 = vector.broadcast %222 : vector<1x32xf32> to vector<16x32xf32>
    %244 = arith.addf %242, %243 : vector<16x32xf32>
    %245 = arith.truncf %244 : vector<16x32xf32> to vector<16x32xbf16>
    %cst_120 = arith.constant 0.000000e+00 : f32
    %246 = vector.broadcast %cst_120 : f32 to vector<16x32xf32>
    %c0_121 = arith.constant 0 : index
    %c0_122 = arith.constant 0 : index
    %c0_123 = arith.constant 0 : index
    %247 = vector.load %arg13[%c0_121, %c0_122, %c0_123] : memref<1x32x128xbf16, #tpu.memory_space<vmem>>, vector<1x32x128xbf16>
    %248 = vector.shape_cast %247 : vector<1x32x128xbf16> to vector<32x128xbf16>
    %cst_124 = arith.constant dense<0.000000e+00> : vector<16x128xf32>
    %249 = tpu.matmul %245, %248, %cst_124 {dimension_numbers = #tpu.dot_dimension_numbers<[1], [0], [0], [1], [0, 0, 1, 1], [], []>} : vector<16x32xbf16>, vector<32x128xbf16>, vector<16x128xf32> -> vector<16x128xf32>
    %c0_125 = arith.constant 0 : index
    %c0_126 = arith.constant 0 : index
    %c0_127 = arith.constant 0 : index
    %250 = vector.load %arg14[%c0_125, %c0_126, %c0_127] : memref<1x1x128xf32, #tpu.memory_space<vmem>>, vector<1x1x128xf32>
    %251 = vector.shape_cast %250 : vector<1x1x128xf32> to vector<1x128xf32>
    %252 = vector.broadcast %251 : vector<1x128xf32> to vector<16x128xf32>
    %253 = arith.addf %249, %252 : vector<16x128xf32>
    %cst_128 = arith.constant 0.000000e+00 : f32
    %254 = vector.broadcast %cst_128 : f32 to vector<16x128xf32>
    %255 = arith.maximumf %253, %254 : vector<16x128xf32>
    %256 = arith.truncf %255 : vector<16x128xf32> to vector<16x128xbf16>
    %c0_129 = arith.constant 0 : index
    %c0_130 = arith.constant 0 : index
    %c0_131 = arith.constant 0 : index
    %257 = vector.load %arg15[%c0_129, %c0_130, %c0_131] : memref<1x128x32xbf16, #tpu.memory_space<vmem>>, vector<1x128x32xbf16>
    %258 = vector.shape_cast %257 : vector<1x128x32xbf16> to vector<128x32xbf16>
    %cst_132 = arith.constant dense<0.000000e+00> : vector<16x32xf32>
    %259 = tpu.matmul %256, %258, %cst_132 {dimension_numbers = #tpu.dot_dimension_numbers<[1], [0], [0], [1], [0, 0, 1, 1], [], []>} : vector<16x128xbf16>, vector<128x32xbf16>, vector<16x32xf32> -> vector<16x32xf32>
    %260 = arith.addf %246, %259 : vector<16x32xf32>
    %261 = arith.addf %244, %260 : vector<16x32xf32>
    %c0_133 = arith.constant 0 : index
    %c0_134 = arith.constant 0 : index
    %c0_135 = arith.constant 0 : index
    %262 = vector.load %arg16[%c0_133, %c0_134, %c0_135] : memref<1x1x32xf32, #tpu.memory_space<vmem>>, vector<1x1x32xf32>
    %263 = vector.shape_cast %262 : vector<1x1x32xf32> to vector<1x32xf32>
    %264 = vector.broadcast %263 : vector<1x32xf32> to vector<16x32xf32>
    %265 = arith.addf %261, %264 : vector<16x32xf32>
    %c0_136 = arith.constant 0 : index
    %c0_137 = arith.constant 0 : index
    %c0_138 = arith.constant 0 : index
    %266 = vector.load %arg21[%c0_136, %c0_137, %c0_138] : memref<1x1x32xf32, #tpu.memory_space<vmem>>, vector<1x1x32xf32>
    %267 = vector.shape_cast %266 : vector<1x1x32xf32> to vector<1x32xf32>
    %c0_139 = arith.constant 0 : index
    %c0_140 = arith.constant 0 : index
    %c0_141 = arith.constant 0 : index
    %268 = vector.load %arg22[%c0_139, %c0_140, %c0_141] : memref<1x1x32xf32, #tpu.memory_space<vmem>>, vector<1x1x32xf32>
    %269 = vector.shape_cast %268 : vector<1x1x32xf32> to vector<1x32xf32>
    %cst_142 = arith.constant dense<0.000000e+00> : vector<16xf32>
    %270 = vector.multi_reduction <add>, %265, %cst_142 [1] : vector<16x32xf32> to vector<16xf32>
    %271 = vector.shape_cast %270 : vector<16xf32> to vector<16x1xf32>
    %cst_143 = arith.constant 3.200000e+01 : f32
    %272 = vector.broadcast %cst_143 : f32 to vector<16x1xf32>
    %273 = arith.divf %271, %272 : vector<16x1xf32>
    %274 = vector.broadcast %273 : vector<16x1xf32> to vector<16x32xf32>
    %275 = arith.subf %265, %274 : vector<16x32xf32>
    %276 = arith.mulf %275, %275 : vector<16x32xf32>
    %cst_144 = arith.constant dense<0.000000e+00> : vector<16xf32>
    %277 = vector.multi_reduction <add>, %276, %cst_144 [1] : vector<16x32xf32> to vector<16xf32>
    %278 = vector.shape_cast %277 : vector<16xf32> to vector<16x1xf32>
    %cst_145 = arith.constant 3.200000e+01 : f32
    %279 = vector.broadcast %cst_145 : f32 to vector<16x1xf32>
    %280 = arith.divf %278, %279 : vector<16x1xf32>
    %281 = vector.broadcast %273 : vector<16x1xf32> to vector<16x32xf32>
    %282 = arith.subf %265, %281 : vector<16x32xf32>
    %cst_146 = arith.constant 9.99999974E-6 : f32
    %283 = vector.broadcast %cst_146 : f32 to vector<16x1xf32>
    %284 = arith.addf %280, %283 : vector<16x1xf32>
    %285 = math.rsqrt %284 : vector<16x1xf32>
    %286 = vector.broadcast %285 : vector<16x1xf32> to vector<16x32xf32>
    %287 = arith.mulf %282, %286 : vector<16x32xf32>
    %288 = vector.broadcast %267 : vector<1x32xf32> to vector<16x32xf32>
    %289 = arith.mulf %287, %288 : vector<16x32xf32>
    %290 = vector.broadcast %269 : vector<1x32xf32> to vector<16x32xf32>
    %291 = arith.addf %289, %290 : vector<16x32xf32>
    %c0_147 = arith.constant 0 : index
    %c0_148 = arith.constant 0 : index
    %292 = vector.load %arg24[%c0_147, %c0_148] : memref<16x32xf32, #tpu.memory_space<vmem>>, vector<16x32xf32>
    tpu.vector_store %arg24[%c0_147, %c0_148], %291 {strides = array<i32>} : memref<16x32xf32, #tpu.memory_space<vmem>>, vector<16x32xf32>,
    %c1_i32 = arith.constant 1 : i32
    %293 = arith.cmpi eq, %arg0, %c1_i32 : i32
    %294 = arith.extui %293 : i1 to i32
    %c0_i32_149 = arith.constant 0 : i32
    %295 = arith.cmpi ne, %294, %c0_i32_149 : i32
    scf.if %295 {
      %296 = vector.shape_cast %291 : vector<16x32xf32> to vector<2x8x32xf32>
      %c0_150 = arith.constant 0 : index
      %c0_151 = arith.constant 0 : index
      %c0_152 = arith.constant 0 : index
      %297 = vector.load %arg23[%c0_150, %c0_151, %c0_152] : memref<2x8x32xf32, #tpu.memory_space<vmem>>, vector<2x8x32xf32>
      tpu.vector_store %arg23[%c0_150, %c0_151, %c0_152], %296 {strides = array<i32>} : memref<2x8x32xf32, #tpu.memory_space<vmem>>, vector<2x8x32xf32>,
    } else {
    }
    return
  }
  func.func @transform_0(%arg0: i32) -> (i32, i32, i32) {
    %c0_i32 = arith.constant 0 : i32
    %c0_i32_0 = arith.constant 0 : i32
    %c0_i32_1 = arith.constant 0 : i32
    %c0_i32_2 = arith.constant 0 : i32
    return %c0_i32, %c0_i32_0, %c0_i32_1 : i32, i32, i32
  }
  func.func @transform_1(%arg0: i32) -> (i32, i32, i32) {
    %c0_i32 = arith.constant 0 : i32
    %c0_i32_0 = arith.constant 0 : i32
    %c0_i32_1 = arith.constant 0 : i32
    %c0_i32_2 = arith.constant 0 : i32
    return %c0_i32, %c0_i32_0, %c0_i32_1 : i32, i32, i32
  }
  func.func @transform_2(%arg0: i32) -> (i32, i32, i32) {
    %c0_i32 = arith.constant 0 : i32
    %c0_i32_0 = arith.constant 0 : i32
    %c0_i32_1 = arith.constant 0 : i32
    return %arg0, %c0_i32, %c0_i32_0 : i32, i32, i32
  }
  func.func @transform_3(%arg0: i32) -> (i32, i32, i32) {
    %c0_i32 = arith.constant 0 : i32
    %c0_i32_0 = arith.constant 0 : i32
    %c0_i32_1 = arith.constant 0 : i32
    return %arg0, %c0_i32, %c0_i32_0 : i32, i32, i32
  }
  func.func @transform_4(%arg0: i32) -> (i32, i32, i32) {
    %c0_i32 = arith.constant 0 : i32
    %c0_i32_0 = arith.constant 0 : i32
    %c0_i32_1 = arith.constant 0 : i32
    return %arg0, %c0_i32, %c0_i32_0 : i32, i32, i32
  }
  func.func @transform_5(%arg0: i32) -> (i32, i32, i32) {
    %c0_i32 = arith.constant 0 : i32
    %c0_i32_0 = arith.constant 0 : i32
    %c0_i32_1 = arith.constant 0 : i32
    return %arg0, %c0_i32, %c0_i32_0 : i32, i32, i32
  }
  func.func @transform_6(%arg0: i32) -> (i32, i32, i32) {
    %c0_i32 = arith.constant 0 : i32
    %c0_i32_0 = arith.constant 0 : i32
    %c0_i32_1 = arith.constant 0 : i32
    return %arg0, %c0_i32, %c0_i32_0 : i32, i32, i32
  }
  func.func @transform_7(%arg0: i32) -> (i32, i32, i32) {
    %c0_i32 = arith.constant 0 : i32
    %c0_i32_0 = arith.constant 0 : i32
    %c0_i32_1 = arith.constant 0 : i32
    return %arg0, %c0_i32, %c0_i32_0 : i32, i32, i32
  }
  func.func @transform_8(%arg0: i32) -> (i32, i32, i32) {
    %c0_i32 = arith.constant 0 : i32
    %c0_i32_0 = arith.constant 0 : i32
    %c0_i32_1 = arith.constant 0 : i32
    return %arg0, %c0_i32, %c0_i32_0 : i32, i32, i32
  }
  func.func @transform_9(%arg0: i32) -> (i32, i32, i32) {
    %c0_i32 = arith.constant 0 : i32
    %c0_i32_0 = arith.constant 0 : i32
    %c0_i32_1 = arith.constant 0 : i32
    return %arg0, %c0_i32, %c0_i32_0 : i32, i32, i32
  }
  func.func @transform_10(%arg0: i32) -> (i32, i32, i32) {
    %c0_i32 = arith.constant 0 : i32
    %c0_i32_0 = arith.constant 0 : i32
    %c0_i32_1 = arith.constant 0 : i32
    return %arg0, %c0_i32, %c0_i32_0 : i32, i32, i32
  }
  func.func @transform_11(%arg0: i32) -> (i32, i32, i32) {
    %c0_i32 = arith.constant 0 : i32
    %c0_i32_0 = arith.constant 0 : i32
    %c0_i32_1 = arith.constant 0 : i32
    return %arg0, %c0_i32, %c0_i32_0 : i32, i32, i32
  }
  func.func @transform_12(%arg0: i32) -> (i32, i32, i32) {
    %c0_i32 = arith.constant 0 : i32
    %c0_i32_0 = arith.constant 0 : i32
    %c0_i32_1 = arith.constant 0 : i32
    return %arg0, %c0_i32, %c0_i32_0 : i32, i32, i32
  }
  func.func @transform_13(%arg0: i32) -> (i32, i32, i32) {
    %c0_i32 = arith.constant 0 : i32
    %c0_i32_0 = arith.constant 0 : i32
    %c0_i32_1 = arith.constant 0 : i32
    return %arg0, %c0_i32, %c0_i32_0 : i32, i32, i32
  }
  func.func @transform_14(%arg0: i32) -> (i32, i32, i32) {
    %c0_i32 = arith.constant 0 : i32
    %c0_i32_0 = arith.constant 0 : i32
    %c0_i32_1 = arith.constant 0 : i32
    return %arg0, %c0_i32, %c0_i32_0 : i32, i32, i32
  }
  func.func @transform_15(%arg0: i32) -> (i32, i32, i32) {
    %c0_i32 = arith.constant 0 : i32
    %c0_i32_0 = arith.constant 0 : i32
    %c0_i32_1 = arith.constant 0 : i32
    return %arg0, %c0_i32, %c0_i32_0 : i32, i32, i32
  }
  func.func @transform_16(%arg0: i32) -> (i32, i32, i32) {
    %c0_i32 = arith.constant 0 : i32
    %c0_i32_0 = arith.constant 0 : i32
    %c0_i32_1 = arith.constant 0 : i32
    return %arg0, %c0_i32, %c0_i32_0 : i32, i32, i32
  }
  func.func @transform_17(%arg0: i32) -> (i32, i32, i32) {
    %c0_i32 = arith.constant 0 : i32
    %c0_i32_0 = arith.constant 0 : i32
    %c0_i32_1 = arith.constant 0 : i32
    return %arg0, %c0_i32, %c0_i32_0 : i32, i32, i32
  }
  func.func @transform_18(%arg0: i32) -> (i32, i32, i32) {
    %c0_i32 = arith.constant 0 : i32
    %c0_i32_0 = arith.constant 0 : i32
    %c0_i32_1 = arith.constant 0 : i32
    return %arg0, %c0_i32, %c0_i32_0 : i32, i32, i32
  }
  func.func @transform_19(%arg0: i32) -> (i32, i32, i32) {
    %c0_i32 = arith.constant 0 : i32
    %c0_i32_0 = arith.constant 0 : i32
    %c0_i32_1 = arith.constant 0 : i32
    return %arg0, %c0_i32, %c0_i32_0 : i32, i32, i32
  }
  func.func @transform_20(%arg0: i32) -> (i32, i32, i32) {
    %c0_i32 = arith.constant 0 : i32
    %c0_i32_0 = arith.constant 0 : i32
    %c0_i32_1 = arith.constant 0 : i32
    return %arg0, %c0_i32, %c0_i32_0 : i32, i32, i32
  }
  func.func @transform_21(%arg0: i32) -> (i32, i32, i32) {
    %c0_i32 = arith.constant 0 : i32
    %c0_i32_0 = arith.constant 0 : i32
    %c0_i32_1 = arith.constant 0 : i32
    return %arg0, %c0_i32, %c0_i32_0 : i32, i32, i32
  }
  func.func @transform_22(%arg0: i32) -> (i32, i32, i32) {
    %c0_i32 = arith.constant 0 : i32
    %c0_i32_0 = arith.constant 0 : i32
    %c0_i32_1 = arith.constant 0 : i32
    %c0_i32_2 = arith.constant 0 : i32
    return %c0_i32, %c0_i32_0, %c0_i32_1 : i32, i32, i32
  }
}

</mosaic_0001>

<llo_original>
// kernel: tpu_custom_call.1
$region0: #{tpu_custom_call.1}
  #allocation0 [shape = 'u32[]', space=smem, size = 0x4, offset = 0x4, fixed_abs, tag = 'smem constant byte address 0x4 - core index']
  #allocation1 [shape = 'u32[144,128]{1,0:T(1,128)}', space=vmem, size = 0x12000, scoped, tag = 'internal scratch']
  #allocation2 [shape = 'f32[16,32]{1,0:T(8,128)}', space=vmem, size = 0x2000, scoped, tag = 'scratch operand']
  #allocation3 [shape = 'f32[2,8,32]{2,1,0:T(8,128)}', space=vmem, size = 0x2000, scoped, tag = 'scratch operand']
  #allocation4 [shape = 'f32[8,8]{1,0:T(8,128)}', space=vmem, size = 0x1000, scoped, tag = 'scratch operand']
  %s0 = inlined_call_operand.hbm [shape: f32[2,8,32], index: 0, kind: input, shape index: {}]
  %s1 = inlined_call_operand.hbm [shape: bf16[2,8,32], index: 1, kind: input, shape index: {}]
  %s2 = inlined_call_operand.vmem [shape: bf16[2,32,96], index: 2, kind: input, shape index: {}]
  %s3 = inlined_call_operand.vmem [shape: f32[2,1,96], index: 3, kind: input, shape index: {}]
  %s4 = inlined_call_operand.vmem [shape: bf16[2,32,32], index: 4, kind: input, shape index: {}]
  %s5 = inlined_call_operand.vmem [shape: f32[2,1,32], index: 5, kind: input, shape index: {}]
  %s6 = inlined_call_operand.vmem [shape: bf16[2,32,32], index: 6, kind: input, shape index: {}]
  %s7 = inlined_call_operand.vmem [shape: f32[2,1,32], index: 7, kind: input, shape index: {}]
  %s8 = inlined_call_operand.vmem [shape: bf16[2,32,64], index: 8, kind: input, shape index: {}]
  %s9 = inlined_call_operand.vmem [shape: f32[2,1,64], index: 9, kind: input, shape index: {}]
  %s10 = inlined_call_operand.vmem [shape: bf16[2,32,32], index: 10, kind: input, shape index: {}]
  %s11 = inlined_call_operand.vmem [shape: f32[2,1,32], index: 11, kind: input, shape index: {}]
  %s12 = inlined_call_operand.hbm [shape: bf16[2,32,128], index: 12, kind: input, shape index: {}]
  %s13 = inlined_call_operand.vmem [shape: f32[2,1,128], index: 13, kind: input, shape index: {}]
  %s14 = inlined_call_operand.vmem [shape: bf16[2,128,32], index: 14, kind: input, shape index: {}]
  %s15 = inlined_call_operand.vmem [shape: f32[2,1,32], index: 15, kind: input, shape index: {}]
  %s16 = inlined_call_operand.vmem [shape: f32[2,1,32], index: 16, kind: input, shape index: {}]
  %s17 = inlined_call_operand.vmem [shape: f32[2,1,32], index: 17, kind: input, shape index: {}]
  %s18 = inlined_call_operand.vmem [shape: f32[2,1,32], index: 18, kind: input, shape index: {}]
  %s19 = inlined_call_operand.vmem [shape: f32[2,1,32], index: 19, kind: input, shape index: {}]
  %s20 = inlined_call_operand.vmem [shape: f32[2,1,32], index: 20, kind: input, shape index: {}]
  %s21 = inlined_call_operand.vmem [shape: f32[2,1,32], index: 21, kind: input, shape index: {}]
  %s22 = inlined_call_operand.hbm [shape: f32[2,8,32], index: 22, kind: output, shape index: {}]
  %s23 = sld [smem:[#allocation0]]
  $region141: #{tpu_custom_call.1} parent=0
    _
  %s25 = ssub.s32 1, %s23
  %s26 = scalar_select 0, %s25, %s23
  $region1: #{tpu_custom_call.1} parent=0
    #allocation5 [shape = 'u8[8192]{0}', space=vmem, size = 0x2000, scoped, tag = 'input window, operand 0, single buffered']
    #allocation6 [shape = 's32[2]{0}', space=sflag, size = 0x8, scoped, tag = 'scoped memory for tpu_custom_call.1']
    #allocation7 [shape = 's32[2]{0}', space=sflag, size = 0x8, scoped, tag = 'scoped memory for tpu_custom_call.1']
    #allocation8 [shape = 'u8[4096]{0}', space=vmem, size = 0x1000, scoped, tag = 'input window, operand 1, single buffered']
    #allocation9 [shape = 's32[1]{0}', space=sflag, size = 0x4, scoped, tag = 'scoped memory for tpu_custom_call.1']
    #allocation10 [shape = 'u8[16384]{0}', space=vmem, size = 0x4000, scoped, tag = 'input window, operand 12']
    #allocation11 [shape = 'u8[8192]{0}', space=vmem, size = 0x2000, scoped, tag = 'output window, operand 0, single buffered']
    %27 = vsyncpa [#allocation6], 0
    %28 = vsyncpa [#allocation9], 0
    %29 = vsyncpa [#allocation7], 0
    loop: start=0, step=1, limit=4
    $region2: #{tpu_custom_call.1} parent=1 // loop_pre_header
      _
    $region3: #{tpu_custom_call.1} parent=1 // loop_header
      %s31 = sphi 0, %s35
      %p32 = scmp.ge.s32.totalorder %s31, 4
      %s39 = sphi 0, %s39
      %s41 = sphi 0, %s39
      %s42 = sphi 0, %s41
      %s56 = sphi 0, %s42
      %s60 = sphi 0, %s60
      %s62 = sphi 0, %s60
      %s63 = sphi 0, %s62
      %s77 = sphi 0, %s63
      %s83 = sphi 0, %s85
      %s86 = sphi 0, %s83
      %s87 = sphi 0, %s86
      %s103 = sphi 0, %s87
      %s109 = sphi 0, %s111
      %s112 = sphi 0, %s109
      %s113 = sphi 0, %s112
      %s129 = sphi 0, %s113
      %s135 = sphi 0, %s137
      %s138 = sphi 0, %s135
      %s139 = sphi 0, %s138
      %s155 = sphi 0, %s139
      %s161 = sphi 0, %s163
      %s164 = sphi 0, %s161
      %s165 = sphi 0, %s164
      %s181 = sphi 0, %s165
      %s187 = sphi 0, %s189
      %s190 = sphi 0, %s187
      %s191 = sphi 0, %s190
      %s207 = sphi 0, %s191
      %s213 = sphi 0, %s215
      %s216 = sphi 0, %s213
      %s217 = sphi 0, %s216
      %s233 = sphi 0, %s217
      %s239 = sphi 0, %s241
      %s242 = sphi 0, %s239
      %s243 = sphi 0, %s242
      %s259 = sphi 0, %s243
      %s265 = sphi 0, %s267
      %s268 = sphi 0, %s265
      %s269 = sphi 0, %s268
      %s285 = sphi 0, %s269
      %s291 = sphi 0, %s293
      %s294 = sphi 0, %s291
      %s295 = sphi 0, %s294
      %s311 = sphi 0, %s295
      %s317 = sphi 0, %s319
      %s320 = sphi 0, %s317
      %s321 = sphi 0, %s320
      %s337 = sphi 0, %s321
      %s343 = sphi 0, %s345
      %s346 = sphi 0, %s343
      %s347 = sphi 0, %s346
      %s363 = sphi 0, %s347
      %s369 = sphi 0, %s371
      %s372 = sphi 0, %s369
      %s373 = sphi 0, %s372
      %s389 = sphi 0, %s373
      %s395 = sphi 0, %s397
      %s398 = sphi 0, %s395
      %s399 = sphi 0, %s398
      %s415 = sphi 0, %s399
      %s421 = sphi 0, %s423
      %s424 = sphi 0, %s421
      %s425 = sphi 0, %s424
      %s441 = sphi 0, %s425
      %s447 = sphi 0, %s449
      %s450 = sphi 0, %s447
      %s451 = sphi 0, %s450
      %s467 = sphi 0, %s451
      %s473 = sphi 0, %s475
      %s476 = sphi 0, %s473
      %s477 = sphi 0, %s476
      %s493 = sphi 0, %s477
      %s499 = sphi 0, %s501
      %s502 = sphi 0, %s499
      %s503 = sphi 0, %s502
      %s519 = sphi 0, %s503
      %s525 = sphi 0, %s527
      %s528 = sphi 0, %s525
      %s529 = sphi 0, %s528
      %s545 = sphi 0, %s529
      %s551 = sphi 0, %s553
      %s554 = sphi 0, %s551
      %s555 = sphi 0, %s554
      %s571 = sphi 0, %s555
      %s577 = sphi 0, %s579
      %s580 = sphi 0, %s577
      %s581 = sphi 0, %s580
      %s597 = sphi 0, %s581
      %s601 = sphi 0, %s601
      %s603 = sphi 0, %s601
      %s604 = sphi 0, %s603
      %s618 = sphi 0, %s604
    $region4: #{tpu_custom_call.1} parent=1 // loop_header_branch
      %34 = sbr.rel (%p32) target = $region8
    $region5: #{tpu_custom_call.1} parent=1 // loop_body
      %s36 = ssub.s32 %s31, 1
      %s37 = ssub.s32 %s31, 2
      %s38 = sadd.s32 %s31, 1
      %s40 = sadd.s32 %s39, 1
      %p43 = scmp.eq.s32.totalorder %s31, 1
      %p44 = scmp.ne.s32.totalorder %s39, %s41
      %p45 = scmp.eq.s32.totalorder %s31, 0
      %p46 = por %p44, %p45
      %p47 = scmp.ne.s32.totalorder %s39, %s41
      %p48 = scmp.eq.s32.totalorder %s36, 1
      %p49 = por %p47, %p48
      %p50 = scmp.ne.s32.totalorder %s41, %s42
      %p51 = scmp.eq.s32.totalorder %s36, 0
      %p52 = por %p50, %p51
      %p53 = scmp.ne.s32.totalorder %s41, %s42
      %p54 = scmp.eq.s32.totalorder %s37, 1
      %p55 = por %p53, %p54
      %p57 = scmp.ne.s32.totalorder %s42, %s56
      %p58 = scmp.eq.s32.totalorder %s37, 0
      %p59 = por %p57, %p58
      %s61 = sadd.s32 %s60, 1
      %p64 = scmp.eq.s32.totalorder %s31, 1
      %p65 = scmp.ne.s32.totalorder %s60, %s62
      %p66 = scmp.eq.s32.totalorder %s31, 0
      %p67 = por %p65, %p66
      %p68 = scmp.ne.s32.totalorder %s60, %s62
      %p69 = scmp.eq.s32.totalorder %s36, 1
      %p70 = por %p68, %p69
      %p71 = scmp.ne.s32.totalorder %s62, %s63
      %p72 = scmp.eq.s32.totalorder %s36, 0
      %p73 = por %p71, %p72
      %p74 = scmp.ne.s32.totalorder %s62, %s63
      %p75 = scmp.eq.s32.totalorder %s37, 1
      %p76 = por %p74, %p75
      %p78 = scmp.ne.s32.totalorder %s63, %s77
      %p79 = scmp.eq.s32.totalorder %s37, 0
      %p80 = por %p78, %p79
      %s81 = ssub.s32 %s31, %s38
      %p82 = scmp.eq.s32.totalorder %s81, 0
      %s84 = sadd.s32 %s83, 1
      %s85 = scalar_select %p82, %s83, %s84
      %p88 = pneg %p82
      %p89 = scmp.eq.s32.totalorder %s31, 1
      %p90 = por %p88, %p89
      %p91 = scmp.ne.s32.totalorder %s83, %s86
      %p92 = scmp.eq.s32.totalorder %s31, 0
      %p93 = por %p91, %p92
      %p94 = scmp.ne.s32.totalorder %s83, %s86
      %p95 = scmp.eq.s32.totalorder %s36, 1
      %p96 = por %p94, %p95
      %p97 = scmp.ne.s32.totalorder %s86, %s87
      %p98 = scmp.eq.s32.totalorder %s36, 0
      %p99 = por %p97, %p98
      %p100 = scmp.ne.s32.totalorder %s86, %s87
      %p101 = scmp.eq.s32.totalorder %s37, 1
      %p102 = por %p100, %p101
      %p104 = scmp.ne.s32.totalorder %s87, %s103
      %p105 = scmp.eq.s32.totalorder %s37, 0
      %p106 = por %p104, %p105
      %s107 = ssub.s32 %s31, %s38
      %p108 = scmp.eq.s32.totalorder %s107, 0
      %s110 = sadd.s32 %s109, 1
      %s111 = scalar_select %p108, %s109, %s110
      %p114 = pneg %p108
      %p115 = scmp.eq.s32.totalorder %s31, 1
      %p116 = por %p114, %p115
      %p117 = scmp.ne.s32.totalorder %s109, %s112
      %p118 = scmp.eq.s32.totalorder %s31, 0
      %p119 = por %p117, %p118
      %p120 = scmp.ne.s32.totalorder %s109, %s112
      %p121 = scmp.eq.s32.totalorder %s36, 1
      %p122 = por %p120, %p121
      %p123 = scmp.ne.s32.totalorder %s112, %s113
      %p124 = scmp.eq.s32.totalorder %s36, 0
      %p125 = por %p123, %p124
      %p126 = scmp.ne.s32.totalorder %s112, %s113
      %p127 = scmp.eq.s32.totalorder %s37, 1
      %p128 = por %p126, %p127
      %p130 = scmp.ne.s32.totalorder %s113, %s129
      %p131 = scmp.eq.s32.totalorder %s37, 0
      %p132 = por %p130, %p131
      %s133 = ssub.s32 %s31, %s38
      %p134 = scmp.eq.s32.totalorder %s133, 0
      %s136 = sadd.s32 %s135, 1
      %s137 = scalar_select %p134, %s135, %s136
      %p140 = pneg %p134
      %p141 = scmp.eq.s32.totalorder %s31, 1
      %p142 = por %p140, %p141
      %p143 = scmp.ne.s32.totalorder %s135, %s138
      %p144 = scmp.eq.s32.totalorder %s31, 0
      %p145 = por %p143, %p144
      %p146 = scmp.ne.s32.totalorder %s135, %s138
      %p147 = scmp.eq.s32.totalorder %s36, 1
      %p148 = por %p146, %p147
      %p149 = scmp.ne.s32.totalorder %s138, %s139
      %p150 = scmp.eq.s32.totalorder %s36, 0
      %p151 = por %p149, %p150
      %p152 = scmp.ne.s32.totalorder %s138, %s139
      %p153 = scmp.eq.s32.totalorder %s37, 1
      %p154 = por %p152, %p153
      %p156 = scmp.ne.s32.totalorder %s139, %s155
      %p157 = scmp.eq.s32.totalorder %s37, 0
      %p158 = por %p156, %p157
      %s159 = ssub.s32 %s31, %s38
      %p160 = scmp.eq.s32.totalorder %s159, 0
      %s162 = sadd.s32 %s161, 1
      %s163 = scalar_select %p160, %s161, %s162
      %p166 = pneg %p160
      %p167 = scmp.eq.s32.totalorder %s31, 1
      %p168 = por %p166, %p167
      %p169 = scmp.ne.s32.totalorder %s161, %s164
      %p170 = scmp.eq.s32.totalorder %s31, 0
      %p171 = por %p169, %p170
      %p172 = scmp.ne.s32.totalorder %s161, %s164
      %p173 = scmp.eq.s32.totalorder %s36, 1
      %p174 = por %p172, %p173
      %p175 = scmp.ne.s32.totalorder %s164, %s165
      %p176 = scmp.eq.s32.totalorder %s36, 0
      %p177 = por %p175, %p176
      %p178 = scmp.ne.s32.totalorder %s164, %s165
      %p179 = scmp.eq.s32.totalorder %s37, 1
      %p180 = por %p178, %p179
      %p182 = scmp.ne.s32.totalorder %s165, %s181
      %p183 = scmp.eq.s32.totalorder %s37, 0
      %p184 = por %p182, %p183
      %s185 = ssub.s32 %s31, %s38
      %p186 = scmp.eq.s32.totalorder %s185, 0
      %s188 = sadd.s32 %s187, 1
      %s189 = scalar_select %p186, %s187, %s188
      %p192 = pneg %p186
      %p193 = scmp.eq.s32.totalorder %s31, 1
      %p194 = por %p192, %p193
      %p195 = scmp.ne.s32.totalorder %s187, %s190
      %p196 = scmp.eq.s32.totalorder %s31, 0
      %p197 = por %p195, %p196
      %p198 = scmp.ne.s32.totalorder %s187, %s190
      %p199 = scmp.eq.s32.totalorder %s36, 1
      %p200 = por %p198, %p199
      %p201 = scmp.ne.s32.totalorder %s190, %s191
      %p202 = scmp.eq.s32.totalorder %s36, 0
      %p203 = por %p201, %p202
      %p204 = scmp.ne.s32.totalorder %s190, %s191
      %p205 = scmp.eq.s32.totalorder %s37, 1
      %p206 = por %p204, %p205
      %p208 = scmp.ne.s32.totalorder %s191, %s207
      %p209 = scmp.eq.s32.totalorder %s37, 0
      %p210 = por %p208, %p209
      %s211 = ssub.s32 %s31, %s38
      %p212 = scmp.eq.s32.totalorder %s211, 0
      %s214 = sadd.s32 %s213, 1
      %s215 = scalar_select %p212, %s213, %s214
      %p218 = pneg %p212
      %p219 = scmp.eq.s32.totalorder %s31, 1
      %p220 = por %p218, %p219
      %p221 = scmp.ne.s32.totalorder %s213, %s216
      %p222 = scmp.eq.s32.totalorder %s31, 0
      %p223 = por %p221, %p222
      %p224 = scmp.ne.s32.totalorder %s213, %s216
      %p225 = scmp.eq.s32.totalorder %s36, 1
      %p226 = por %p224, %p225
      %p227 = scmp.ne.s32.totalorder %s216, %s217
      %p228 = scmp.eq.s32.totalorder %s36, 0
      %p229 = por %p227, %p228
      %p230 = scmp.ne.s32.totalorder %s216, %s217
      %p231 = scmp.eq.s32.totalorder %s37, 1
      %p232 = por %p230, %p231
      %p234 = scmp.ne.s32.totalorder %s217, %s233
      %p235 = scmp.eq.s32.totalorder %s37, 0
      %p236 = por %p234, %p235
      %s237 = ssub.s32 %s31, %s38
      %p238 = scmp.eq.s32.totalorder %s237, 0
      %s240 = sadd.s32 %s239, 1
      %s241 = scalar_select %p238, %s239, %s240
      %p244 = pneg %p238
      %p245 = scmp.eq.s32.totalorder %s31, 1
      %p246 = por %p244, %p245
      %p247 = scmp.ne.s32.totalorder %s239, %s242
      %p248 = scmp.eq.s32.totalorder %s31, 0
      %p249 = por %p247, %p248
      %p250 = scmp.ne.s32.totalorder %s239, %s242
      %p251 = scmp.eq.s32.totalorder %s36, 1
      %p252 = por %p250, %p251
      %p253 = scmp.ne.s32.totalorder %s242, %s243
      %p254 = scmp.eq.s32.totalorder %s36, 0
      %p255 = por %p253, %p254
      %p256 = scmp.ne.s32.totalorder %s242, %s243
      %p257 = scmp.eq.s32.totalorder %s37, 1
      %p258 = por %p256, %p257
      %p260 = scmp.ne.s32.totalorder %s243, %s259
      %p261 = scmp.eq.s32.totalorder %s37, 0
      %p262 = por %p260, %p261
      %s263 = ssub.s32 %s31, %s38
      %p264 = scmp.eq.s32.totalorder %s263, 0
      %s266 = sadd.s32 %s265, 1
      %s267 = scalar_select %p264, %s265, %s266
      %p270 = pneg %p264
      %p271 = scmp.eq.s32.totalorder %s31, 1
      %p272 = por %p270, %p271
      %p273 = scmp.ne.s32.totalorder %s265, %s268
      %p274 = scmp.eq.s32.totalorder %s31, 0
      %p275 = por %p273, %p274
      %p276 = scmp.ne.s32.totalorder %s265, %s268
      %p277 = scmp.eq.s32.totalorder %s36, 1
      %p278 = por %p276, %p277
      %p279 = scmp.ne.s32.totalorder %s268, %s269
      %p280 = scmp.eq.s32.totalorder %s36, 0
      %p281 = por %p279, %p280
      %p282 = scmp.ne.s32.totalorder %s268, %s269
      %p283 = scmp.eq.s32.totalorder %s37, 1
      %p284 = por %p282, %p283
      %p286 = scmp.ne.s32.totalorder %s269, %s285
      %p287 = scmp.eq.s32.totalorder %s37, 0
      %p288 = por %p286, %p287
      %s289 = ssub.s32 %s31, %s38
      %p290 = scmp.eq.s32.totalorder %s289, 0
      %s292 = sadd.s32 %s291, 1
      %s293 = scalar_select %p290, %s291, %s292
      %p296 = pneg %p290
      %p297 = scmp.eq.s32.totalorder %s31, 1
      %p298 = por %p296, %p297
      %p299 = scmp.ne.s32.totalorder %s291, %s294
      %p300 = scmp.eq.s32.totalorder %s31, 0
      %p301 = por %p299, %p300
      %p302 = scmp.ne.s32.totalorder %s291, %s294
      %p303 = scmp.eq.s32.totalorder %s36, 1
      %p304 = por %p302, %p303
      %p305 = scmp.ne.s32.totalorder %s294, %s295
      %p306 = scmp.eq.s32.totalorder %s36, 0
      %p307 = por %p305, %p306
      %p308 = scmp.ne.s32.totalorder %s294, %s295
      %p309 = scmp.eq.s32.totalorder %s37, 1
      %p310 = por %p308, %p309
      %p312 = scmp.ne.s32.totalorder %s295, %s311
      %p313 = scmp.eq.s32.totalorder %s37, 0
      %p314 = por %p312, %p313
      %s315 = ssub.s32 %s31, %s38
      %p316 = scmp.eq.s32.totalorder %s315, 0
      %s318 = sadd.s32 %s317, 1
      %s319 = scalar_select %p316, %s317, %s318
      %p322 = pneg %p316
      %p323 = scmp.eq.s32.totalorder %s31, 1
      %p324 = por %p322, %p323
      %p325 = scmp.ne.s32.totalorder %s317, %s320
      %p326 = scmp.eq.s32.totalorder %s31, 0
      %p327 = por %p325, %p326
      %p328 = scmp.ne.s32.totalorder %s317, %s320
      %p329 = scmp.eq.s32.totalorder %s36, 1
      %p330 = por %p328, %p329
      %p331 = scmp.ne.s32.totalorder %s320, %s321
      %p332 = scmp.eq.s32.totalorder %s36, 0
      %p333 = por %p331, %p332
      %p334 = scmp.ne.s32.totalorder %s320, %s321
      %p335 = scmp.eq.s32.totalorder %s37, 1
      %p336 = por %p334, %p335
      %p338 = scmp.ne.s32.totalorder %s321, %s337
      %p339 = scmp.eq.s32.totalorder %s37, 0
      %p340 = por %p338, %p339
      %s341 = ssub.s32 %s31, %s38
      %p342 = scmp.eq.s32.totalorder %s341, 0
      %s344 = sadd.s32 %s343, 1
      %s345 = scalar_select %p342, %s343, %s344
      %p348 = pneg %p342
      %p349 = scmp.eq.s32.totalorder %s31, 1
      %p350 = por %p348, %p349
      %p351 = scmp.ne.s32.totalorder %s343, %s346
      %p352 = scmp.eq.s32.totalorder %s31, 0
      %p353 = por %p351, %p352
      %p354 = scmp.ne.s32.totalorder %s343, %s346
      %p355 = scmp.eq.s32.totalorder %s36, 1
      %p356 = por %p354, %p355
      %p357 = scmp.ne.s32.totalorder %s346, %s347
      %p358 = scmp.eq.s32.totalorder %s36, 0
      %p359 = por %p357, %p358
      %p360 = scmp.ne.s32.totalorder %s346, %s347
      %p361 = scmp.eq.s32.totalorder %s37, 1
      %p362 = por %p360, %p361
      %p364 = scmp.ne.s32.totalorder %s347, %s363
      %p365 = scmp.eq.s32.totalorder %s37, 0
      %p366 = por %p364, %p365
      %s367 = ssub.s32 %s31, %s38
      %p368 = scmp.eq.s32.totalorder %s367, 0
      %s370 = sadd.s32 %s369, 1
      %s371 = scalar_select %p368, %s369, %s370
      %p374 = pneg %p368
      %p375 = scmp.eq.s32.totalorder %s31, 1
      %p376 = por %p374, %p375
      %p377 = scmp.ne.s32.totalorder %s369, %s372
      %p378 = scmp.eq.s32.totalorder %s31, 0
      %p379 = por %p377, %p378
      %p380 = scmp.ne.s32.totalorder %s369, %s372
      %p381 = scmp.eq.s32.totalorder %s36, 1
      %p382 = por %p380, %p381
      %p383 = scmp.ne.s32.totalorder %s372, %s373
      %p384 = scmp.eq.s32.totalorder %s36, 0
      %p385 = por %p383, %p384
      %p386 = scmp.ne.s32.totalorder %s372, %s373
      %p387 = scmp.eq.s32.totalorder %s37, 1
      %p388 = por %p386, %p387
      %p390 = scmp.ne.s32.totalorder %s373, %s389
      %p391 = scmp.eq.s32.totalorder %s37, 0
      %p392 = por %p390, %p391
      %s393 = ssub.s32 %s31, %s38
      %p394 = scmp.eq.s32.totalorder %s393, 0
      %s396 = sadd.s32 %s395, 1
      %s397 = scalar_select %p394, %s395, %s396
      %p400 = pneg %p394
      %p401 = scmp.eq.s32.totalorder %s31, 1
      %p402 = por %p400, %p401
      %p403 = scmp.ne.s32.totalorder %s395, %s398
      %p404 = scmp.eq.s32.totalorder %s31, 0
      %p405 = por %p403, %p404
      %p406 = scmp.ne.s32.totalorder %s395, %s398
      %p407 = scmp.eq.s32.totalorder %s36, 1
      %p408 = por %p406, %p407
      %p409 = scmp.ne.s32.totalorder %s398, %s399
      %p410 = scmp.eq.s32.totalorder %s36, 0
      %p411 = por %p409, %p410
      %p412 = scmp.ne.s32.totalorder %s398, %s399
      %p413 = scmp.eq.s32.totalorder %s37, 1
      %p414 = por %p412, %p413
      %p416 = scmp.ne.s32.totalorder %s399, %s415
      %p417 = scmp.eq.s32.totalorder %s37, 0
      %p418 = por %p416, %p417
      %s419 = ssub.s32 %s31, %s38
      %p420 = scmp.eq.s32.totalorder %s419, 0
      %s422 = sadd.s32 %s421, 1
      %s423 = scalar_select %p420, %s421, %s422
      %p426 = pneg %p420
      %p427 = scmp.eq.s32.totalorder %s31, 1
      %p428 = por %p426, %p427
      %p429 = scmp.ne.s32.totalorder %s421, %s424
      %p430 = scmp.eq.s32.totalorder %s31, 0
      %p431 = por %p429, %p430
      %p432 = scmp.ne.s32.totalorder %s421, %s424
      %p433 = scmp.eq.s32.totalorder %s36, 1
      %p434 = por %p432, %p433
      %p435 = scmp.ne.s32.totalorder %s424, %s425
      %p436 = scmp.eq.s32.totalorder %s36, 0
      %p437 = por %p435, %p436
      %p438 = scmp.ne.s32.totalorder %s424, %s425
      %p439 = scmp.eq.s32.totalorder %s37, 1
      %p440 = por %p438, %p439
      %p442 = scmp.ne.s32.totalorder %s425, %s441
      %p443 = scmp.eq.s32.totalorder %s37, 0
      %p444 = por %p442, %p443
      %s445 = ssub.s32 %s31, %s38
      %p446 = scmp.eq.s32.totalorder %s445, 0
      %s448 = sadd.s32 %s447, 1
      %s449 = scalar_select %p446, %s447, %s448
      %p452 = pneg %p446
      %p453 = scmp.eq.s32.totalorder %s31, 1
      %p454 = por %p452, %p453
      %p455 = scmp.ne.s32.totalorder %s447, %s450
      %p456 = scmp.eq.s32.totalorder %s31, 0
      %p457 = por %p455, %p456
      %p458 = scmp.ne.s32.totalorder %s447, %s450
      %p459 = scmp.eq.s32.totalorder %s36, 1
      %p460 = por %p458, %p459
      %p461 = scmp.ne.s32.totalorder %s450, %s451
      %p462 = scmp.eq.s32.totalorder %s36, 0
      %p463 = por %p461, %p462
      %p464 = scmp.ne.s32.totalorder %s450, %s451
      %p465 = scmp.eq.s32.totalorder %s37, 1
      %p466 = por %p464, %p465
      %p468 = scmp.ne.s32.totalorder %s451, %s467
      %p469 = scmp.eq.s32.totalorder %s37, 0
      %p470 = por %p468, %p469
      %s471 = ssub.s32 %s31, %s38
      %p472 = scmp.eq.s32.totalorder %s471, 0
      %s474 = sadd.s32 %s473, 1
      %s475 = scalar_select %p472, %s473, %s474
      %p478 = pneg %p472
      %p479 = scmp.eq.s32.totalorder %s31, 1
      %p480 = por %p478, %p479
      %p481 = scmp.ne.s32.totalorder %s473, %s476
      %p482 = scmp.eq.s32.totalorder %s31, 0
      %p483 = por %p481, %p482
      %p484 = scmp.ne.s32.totalorder %s473, %s476
      %p485 = scmp.eq.s32.totalorder %s36, 1
      %p486 = por %p484, %p485
      %p487 = scmp.ne.s32.totalorder %s476, %s477
      %p488 = scmp.eq.s32.totalorder %s36, 0
      %p489 = por %p487, %p488
      %p490 = scmp.ne.s32.totalorder %s476, %s477
      %p491 = scmp.eq.s32.totalorder %s37, 1
      %p492 = por %p490, %p491
      %p494 = scmp.ne.s32.totalorder %s477, %s493
      %p495 = scmp.eq.s32.totalorder %s37, 0
      %p496 = por %p494, %p495
      %s497 = ssub.s32 %s31, %s38
      %p498 = scmp.eq.s32.totalorder %s497, 0
      %s500 = sadd.s32 %s499, 1
      %s501 = scalar_select %p498, %s499, %s500
      %p504 = pneg %p498
      %p505 = scmp.eq.s32.totalorder %s31, 1
      %p506 = por %p504, %p505
      %p507 = scmp.ne.s32.totalorder %s499, %s502
      %p508 = scmp.eq.s32.totalorder %s31, 0
      %p509 = por %p507, %p508
      %p510 = scmp.ne.s32.totalorder %s499, %s502
      %p511 = scmp.eq.s32.totalorder %s36, 1
      %p512 = por %p510, %p511
      %p513 = scmp.ne.s32.totalorder %s502, %s503
      %p514 = scmp.eq.s32.totalorder %s36, 0
      %p515 = por %p513, %p514
      %p516 = scmp.ne.s32.totalorder %s502, %s503
      %p517 = scmp.eq.s32.totalorder %s37, 1
      %p518 = por %p516, %p517
      %p520 = scmp.ne.s32.totalorder %s503, %s519
      %p521 = scmp.eq.s32.totalorder %s37, 0
      %p522 = por %p520, %p521
      %s523 = ssub.s32 %s31, %s38
      %p524 = scmp.eq.s32.totalorder %s523, 0
      %s526 = sadd.s32 %s525, 1
      %s527 = scalar_select %p524, %s525, %s526
      %p530 = pneg %p524
      %p531 = scmp.eq.s32.totalorder %s31, 1
      %p532 = por %p530, %p531
      %p533 = scmp.ne.s32.totalorder %s525, %s528
      %p534 = scmp.eq.s32.totalorder %s31, 0
      %p535 = por %p533, %p534
      %p536 = scmp.ne.s32.totalorder %s525, %s528
      %p537 = scmp.eq.s32.totalorder %s36, 1
      %p538 = por %p536, %p537
      %p539 = scmp.ne.s32.totalorder %s528, %s529
      %p540 = scmp.eq.s32.totalorder %s36, 0
      %p541 = por %p539, %p540
      %p542 = scmp.ne.s32.totalorder %s528, %s529
      %p543 = scmp.eq.s32.totalorder %s37, 1
      %p544 = por %p542, %p543
      %p546 = scmp.ne.s32.totalorder %s529, %s545
      %p547 = scmp.eq.s32.totalorder %s37, 0
      %p548 = por %p546, %p547
      %s549 = ssub.s32 %s31, %s38
      %p550 = scmp.eq.s32.totalorder %s549, 0
      %s552 = sadd.s32 %s551, 1
      %s553 = scalar_select %p550, %s551, %s552
      %p556 = pneg %p550
      %p557 = scmp.eq.s32.totalorder %s31, 1
      %p558 = por %p556, %p557
      %p559 = scmp.ne.s32.totalorder %s551, %s554
      %p560 = scmp.eq.s32.totalorder %s31, 0
      %p561 = por %p559, %p560
      %p562 = scmp.ne.s32.totalorder %s551, %s554
      %p563 = scmp.eq.s32.totalorder %s36, 1
      %p564 = por %p562, %p563
      %p565 = scmp.ne.s32.totalorder %s554, %s555
      %p566 = scmp.eq.s32.totalorder %s36, 0
      %p567 = por %p565, %p566
      %p568 = scmp.ne.s32.totalorder %s554, %s555
      %p569 = scmp.eq.s32.totalorder %s37, 1
      %p570 = por %p568, %p569
      %p572 = scmp.ne.s32.totalorder %s555, %s571
      %p573 = scmp.eq.s32.totalorder %s37, 0
      %p574 = por %p572, %p573
      %s575 = ssub.s32 %s31, %s38
      %p576 = scmp.eq.s32.totalorder %s575, 0
      %s578 = sadd.s32 %s577, 1
      %s579 = scalar_select %p576, %s577, %s578
      %p582 = pneg %p576
      %p583 = scmp.eq.s32.totalorder %s31, 1
      %p584 = por %p582, %p583
      %p585 = scmp.ne.s32.totalorder %s577, %s580
      %p586 = scmp.eq.s32.totalorder %s31, 0
      %p587 = por %p585, %p586
      %p588 = scmp.ne.s32.totalorder %s577, %s580
      %p589 = scmp.eq.s32.totalorder %s36, 1
      %p590 = por %p588, %p589
      %p591 = scmp.ne.s32.totalorder %s580, %s581
      %p592 = scmp.eq.s32.totalorder %s36, 0
      %p593 = por %p591, %p592
      %p594 = scmp.ne.s32.totalorder %s580, %s581
      %p595 = scmp.eq.s32.totalorder %s37, 1
      %p596 = por %p594, %p595
      %p598 = scmp.ne.s32.totalorder %s581, %s597
      %p599 = scmp.eq.s32.totalorder %s37, 0
      %p600 = por %p598, %p599
      %s602 = sadd.s32 %s601, 1
      %p605 = scmp.eq.s32.totalorder %s31, 1
      %p606 = scmp.ne.s32.totalorder %s601, %s603
      %p607 = scmp.eq.s32.totalorder %s31, 0
      %p608 = por %p606, %p607
      %p609 = scmp.ne.s32.totalorder %s601, %s603
      %p610 = scmp.eq.s32.totalorder %s36, 1
      %p611 = por %p609, %p610
      %p612 = scmp.ne.s32.totalorder %s603, %s604
      %p613 = scmp.eq.s32.totalorder %s36, 0
      %p614 = por %p612, %p613
      %p615 = scmp.ne.s32.totalorder %s603, %s604
      %p616 = scmp.eq.s32.totalorder %s37, 1
      %p617 = por %p615, %p616
      %p619 = scmp.ne.s32.totalorder %s604, %s618
      %p620 = scmp.eq.s32.totalorder %s37, 0
      %p621 = por %p619, %p620
      %p622 = scmp.le.s32.totalorder 1, %s31
      %p623 = scmp.lt.s32.totalorder %s31, 3
      %p624 = pnand %p622, %p623
      %p625 = pneg %p624
      // Predicated region
      $region9: #{tpu_custom_call.1} parent=5 // pred_check
        _
      $region10: #{tpu_custom_call.1} parent=5 // pred_check_branch
        %627 = sbr.rel (%p624) target = $region12
      $region11: #{tpu_custom_call.1} parent=5 // pred_region
        %s628 = ssub.s32 %s31, 1
        // Predicated region
        $region13: #{tpu_custom_call.1} parent=11 // pred_check
          %p629 = pneg %p52
        $region14: #{tpu_custom_call.1} parent=11 // pred_check_branch
          %631 = sbr.rel (%p629) target = $region16
        $region15: #{tpu_custom_call.1} parent=11 // pred_region
          %s633 = ssub.s32 256, 256
          %634 = vsyncadd [#allocation6], %s633
          %s635 = sshll.u32 [#allocation5], 4
          %s636 = int_to_ptr.vmem [resolvable:$true] %s635
          %641 = dma.hbm_to_vmem [thread:$0]  %s0, 256, %s636, [#allocation6], 128, 128, 8
        $region16: #{tpu_custom_call.1} parent=11 // pred_fallthru
          _
        // Predicated region
        $region17: #{tpu_custom_call.1} parent=11 // pred_check
          %p642 = pneg %p73
        $region18: #{tpu_custom_call.1} parent=11 // pred_check_branch
          %644 = sbr.rel (%p642) target = $region20
        $region19: #{tpu_custom_call.1} parent=11 // pred_region
          %s646 = ssub.s32 128, 128
          %647 = vsyncadd [#allocation9], %s646
          %s648 = sshll.u32 [#allocation8], 4
          %s649 = int_to_ptr.vmem [resolvable:$true] %s648
          %654 = dma.hbm_to_vmem [thread:$0]  %s1, 128, %s649, [#allocation9], 64, 64, 4
        $region20: #{tpu_custom_call.1} parent=11 // pred_fallthru
          _
      $region12: #{tpu_custom_call.1} parent=5 // pred_fallthru
        _
      %p655 = scmp.lt.s32.totalorder %s31, 2
      // Predicated region
      $region21: #{tpu_custom_call.1} parent=5 // pred_check
        %p656 = pneg %p655
      $region22: #{tpu_custom_call.1} parent=5 // pred_check_branch
        %658 = sbr.rel (%p656) target = $region24
      $region23: #{tpu_custom_call.1} parent=5 // pred_region
        // Predicated region
        $region25: #{tpu_custom_call.1} parent=23 // pred_check
          %p659 = pneg %p93
        $region26: #{tpu_custom_call.1} parent=23 // pred_check_branch
          %661 = sbr.rel (%p659) target = $region28
        $region27: #{tpu_custom_call.1} parent=23 // pred_region
          %p662 = scmp.lt.s32.totalorder %s31, 1
          %s663 = scalar_select %p662, %s31, 1
          %s664 = smul.addr %s663, 4
          %s665 = smul.addr %s664, 4
          %s666 = scalar_lea.vmem %s2, %s665
        $region28: #{tpu_custom_call.1} parent=23 // pred_fallthru
          _
        // Predicated region
        $region29: #{tpu_custom_call.1} parent=23 // pred_check
          %p667 = pneg %p119
        $region30: #{tpu_custom_call.1} parent=23 // pred_check_branch
          %669 = sbr.rel (%p667) target = $region32
        $region31: #{tpu_custom_call.1} parent=23 // pred_region
          %p670 = scmp.lt.s32.totalorder %s31, 1
          %s671 = scalar_select %p670, %s31, 1
          %s672 = scalar_lea.vmem %s3, %s671
        $region32: #{tpu_custom_call.1} parent=23 // pred_fallthru
          _
        // Predicated region
        $region33: #{tpu_custom_call.1} parent=23 // pred_check
          %p673 = pneg %p145
        $region34: #{tpu_custom_call.1} parent=23 // pred_check_branch
          %675 = sbr.rel (%p673) target = $region36
        $region35: #{tpu_custom_call.1} parent=23 // pred_region
          %p676 = scmp.lt.s32.totalorder %s31, 1
          %s677 = scalar_select %p676, %s31, 1
          %s678 = smul.addr %s677, 4
          %s679 = smul.addr %s678, 4
          %s680 = scalar_lea.vmem %s4, %s679
        $region36: #{tpu_custom_call.1} parent=23 // pred_fallthru
          _
        // Predicated region
        $region37: #{tpu_custom_call.1} parent=23 // pred_check
          %p681 = pneg %p171
        $region38: #{tpu_custom_call.1} parent=23 // pred_check_branch
          %683 = sbr.rel (%p681) target = $region40
        $region39: #{tpu_custom_call.1} parent=23 // pred_region
          %p684 = scmp.lt.s32.totalorder %s31, 1
          %s685 = scalar_select %p684, %s31, 1
          %s686 = scalar_lea.vmem %s5, %s685
        $region40: #{tpu_custom_call.1} parent=23 // pred_fallthru
          _
        // Predicated region
        $region41: #{tpu_custom_call.1} parent=23 // pred_check
          %p687 = pneg %p197
        $region42: #{tpu_custom_call.1} parent=23 // pred_check_branch
          %689 = sbr.rel (%p687) target = $region44
        $region43: #{tpu_custom_call.1} parent=23 // pred_region
          %p690 = scmp.lt.s32.totalorder %s31, 1
          %s691 = scalar_select %p690, %s31, 1
          %s692 = smul.addr %s691, 4
          %s693 = smul.addr %s692, 4
          %s694 = scalar_lea.vmem %s6, %s693
        $region44: #{tpu_custom_call.1} parent=23 // pred_fallthru
          _
        // Predicated region
        $region45: #{tpu_custom_call.1} parent=23 // pred_check
          %p695 = pneg %p223
        $region46: #{tpu_custom_call.1} parent=23 // pred_check_branch
          %697 = sbr.rel (%p695) target = $region48
        $region47: #{tpu_custom_call.1} parent=23 // pred_region
          %p698 = scmp.lt.s32.totalorder %s31, 1
          %s699 = scalar_select %p698, %s31, 1
          %s700 = scalar_lea.vmem %s7, %s699
        $region48: #{tpu_custom_call.1} parent=23 // pred_fallthru
          _
        // Predicated region
        $region49: #{tpu_custom_call.1} parent=23 // pred_check
          %p701 = pneg %p249
        $region50: #{tpu_custom_call.1} parent=23 // pred_check_branch
          %703 = sbr.rel (%p701) target = $region52
        $region51: #{tpu_custom_call.1} parent=23 // pred_region
          %p704 = scmp.lt.s32.totalorder %s31, 1
          %s705 = scalar_select %p704, %s31, 1
          %s706 = smul.addr %s705, 4
          %s707 = smul.addr %s706, 4
          %s708 = scalar_lea.vmem %s8, %s707
        $region52: #{tpu_custom_call.1} parent=23 // pred_fallthru
          _
        // Predicated region
        $region53: #{tpu_custom_call.1} parent=23 // pred_check
          %p709 = pneg %p275
        $region54: #{tpu_custom_call.1} parent=23 // pred_check_branch
          %711 = sbr.rel (%p709) target = $region56
        $region55: #{tpu_custom_call.1} parent=23 // pred_region
          %p712 = scmp.lt.s32.totalorder %s31, 1
          %s713 = scalar_select %p712, %s31, 1
          %s714 = scalar_lea.vmem %s9, %s713
        $region56: #{tpu_custom_call.1} parent=23 // pred_fallthru
          _
        // Predicated region
        $region57: #{tpu_custom_call.1} parent=23 // pred_check
          %p715 = pneg %p301
        $region58: #{tpu_custom_call.1} parent=23 // pred_check_branch
          %717 = sbr.rel (%p715) target = $region60
        $region59: #{tpu_custom_call.1} parent=23 // pred_region
          %p718 = scmp.lt.s32.totalorder %s31, 1
          %s719 = scalar_select %p718, %s31, 1
          %s720 = smul.addr %s719, 4
          %s721 = smul.addr %s720, 4
          %s722 = scalar_lea.vmem %s10, %s721
        $region60: #{tpu_custom_call.1} parent=23 // pred_fallthru
          _
        // Predicated region
        $region61: #{tpu_custom_call.1} parent=23 // pred_check
          %p723 = pneg %p327
        $region62: #{tpu_custom_call.1} parent=23 // pred_check_branch
          %725 = sbr.rel (%p723) target = $region64
        $region63: #{tpu_custom_call.1} parent=23 // pred_region
          %p726 = scmp.lt.s32.totalorder %s31, 1
          %s727 = scalar_select %p726, %s31, 1
          %s728 = scalar_lea.vmem %s11, %s727
        $region64: #{tpu_custom_call.1} parent=23 // pred_fallthru
          _
        // Predicated region
        $region65: #{tpu_custom_call.1} parent=23 // pred_check
          %p729 = pneg %p353
        $region66: #{tpu_custom_call.1} parent=23 // pred_check_branch
          %731 = sbr.rel (%p729) target = $region68
        $region67: #{tpu_custom_call.1} parent=23 // pred_region
          %s732 = sand.u32 %s31, 1
          %s733 = scalar_lea.sflag [#allocation6], %s732
          %s734 = sand.u32 %s343, 1
          %s735 = smul.addr %s734, 16
          %s736 = scalar_lea.vmem [#allocation10], %s735
          %s738 = ssub.s32 256, 256
          %739 = vsyncadd %s733, %s738
          %s740 = smul.addr %s31, 4
          %s741 = smul.addr %s740, 64
          %s742 = scalar_lea.hbm %s12, %s741
          %s743 = sshll.u32 %s736, 4
          %s744 = int_to_ptr.vmem [resolvable:$true] %s743
          %749 = dma.hbm_to_vmem [thread:$0]  %s742, 256, %s744, %s733, 64, 64, 4
        $region68: #{tpu_custom_call.1} parent=23 // pred_fallthru
          _
        // Predicated region
        $region69: #{tpu_custom_call.1} parent=23 // pred_check
          %p750 = pneg %p379
        $region70: #{tpu_custom_call.1} parent=23 // pred_check_branch
          %752 = sbr.rel (%p750) target = $region72
        $region71: #{tpu_custom_call.1} parent=23 // pred_region
          %p753 = scmp.lt.s32.totalorder %s31, 1
          %s754 = scalar_select %p753, %s31, 1
          %s755 = scalar_lea.vmem %s13, %s754
        $region72: #{tpu_custom_call.1} parent=23 // pred_fallthru
          _
        // Predicated region
        $region73: #{tpu_custom_call.1} parent=23 // pred_check
          %p756 = pneg %p405
        $region74: #{tpu_custom_call.1} parent=23 // pred_check_branch
          %758 = sbr.rel (%p756) target = $region76
        $region75: #{tpu_custom_call.1} parent=23 // pred_region
          %p759 = scmp.lt.s32.totalorder %s31, 1
          %s760 = scalar_select %p759, %s31, 1
          %s761 = smul.addr %s760, 16
          %s762 = smul.addr %s761, 4
          %s763 = scalar_lea.vmem %s14, %s762
        $region76: #{tpu_custom_call.1} parent=23 // pred_fallthru
          _
        // Predicated region
        $region77: #{tpu_custom_call.1} parent=23 // pred_check
          %p764 = pneg %p431
        $region78: #{tpu_custom_call.1} parent=23 // pred_check_branch
          %766 = sbr.rel (%p764) target = $region80
        $region79: #{tpu_custom_call.1} parent=23 // pred_region
          %p767 = scmp.lt.s32.totalorder %s31, 1
          %s768 = scalar_select %p767, %s31, 1
          %s769 = scalar_lea.vmem %s15, %s768
        $region80: #{tpu_custom_call.1} parent=23 // pred_fallthru
          _
        // Predicated region
        $region81: #{tpu_custom_call.1} parent=23 // pred_check
          %p770 = pneg %p457
        $region82: #{tpu_custom_call.1} parent=23 // pred_check_branch
          %772 = sbr.rel (%p770) target = $region84
        $region83: #{tpu_custom_call.1} parent=23 // pred_region
          %p773 = scmp.lt.s32.totalorder %s31, 1
          %s774 = scalar_select %p773, %s31, 1
          %s775 = scalar_lea.vmem %s16, %s774
        $region84: #{tpu_custom_call.1} parent=23 // pred_fallthru
          _
        // Predicated region
        $region85: #{tpu_custom_call.1} parent=23 // pred_check
          %p776 = pneg %p483
        $region86: #{tpu_custom_call.1} parent=23 // pred_check_branch
          %778 = sbr.rel (%p776) target = $region88
        $region87: #{tpu_custom_call.1} parent=23 // pred_region
          %p779 = scmp.lt.s32.totalorder %s31, 1
          %s780 = scalar_select %p779, %s31, 1
          %s781 = scalar_lea.vmem %s17, %s780
        $region88: #{tpu_custom_call.1} parent=23 // pred_fallthru
          _
        // Predicated region
        $region89: #{tpu_custom_call.1} parent=23 // pred_check
          %p782 = pneg %p509
        $region90: #{tpu_custom_call.1} parent=23 // pred_check_branch
          %784 = sbr.rel (%p782) target = $region92
        $region91: #{tpu_custom_call.1} parent=23 // pred_region
          %p785 = scmp.lt.s32.totalorder %s31, 1
          %s786 = scalar_select %p785, %s31, 1
          %s787 = scalar_lea.vmem %s18, %s786
        $region92: #{tpu_custom_call.1} parent=23 // pred_fallthru
          _
        // Predicated region
        $region93: #{tpu_custom_call.1} parent=23 // pred_check
          %p788 = pneg %p535
        $region94: #{tpu_custom_call.1} parent=23 // pred_check_branch
          %790 = sbr.rel (%p788) target = $region96
        $region95: #{tpu_custom_call.1} parent=23 // pred_region
          %p791 = scmp.lt.s32.totalorder %s31, 1
          %s792 = scalar_select %p791, %s31, 1
          %s793 = scalar_lea.vmem %s19, %s792
        $region96: #{tpu_custom_call.1} parent=23 // pred_fallthru
          _
        // Predicated region
        $region97: #{tpu_custom_call.1} parent=23 // pred_check
          %p794 = pneg %p561
        $region98: #{tpu_custom_call.1} parent=23 // pred_check_branch
          %796 = sbr.rel (%p794) target = $region100
        $region99: #{tpu_custom_call.1} parent=23 // pred_region
          %p797 = scmp.lt.s32.totalorder %s31, 1
          %s798 = scalar_select %p797, %s31, 1
          %s799 = scalar_lea.vmem %s20, %s798
        $region100: #{tpu_custom_call.1} parent=23 // pred_fallthru
          _
        // Predicated region
        $region101: #{tpu_custom_call.1} parent=23 // pred_check
          %p800 = pneg %p587
        $region102: #{tpu_custom_call.1} parent=23 // pred_check_branch
          %802 = sbr.rel (%p800) target = $region104
        $region103: #{tpu_custom_call.1} parent=23 // pred_region
          %p803 = scmp.lt.s32.totalorder %s31, 1
          %s804 = scalar_select %p803, %s31, 1
          %s805 = scalar_lea.vmem %s21, %s804
        $region104: #{tpu_custom_call.1} parent=23 // pred_fallthru
          _
      $region24: #{tpu_custom_call.1} parent=5 // pred_fallthru
        _
      %p806 = scmp.le.s32.totalorder 1, %s31
      %p807 = scmp.lt.s32.totalorder %s31, 3
      %p808 = pnand %p806, %p807
      %p809 = pneg %p808
      // Predicated region
      $region105: #{tpu_custom_call.1} parent=5 // pred_check
        _
      $region106: #{tpu_custom_call.1} parent=5 // pred_check_branch
        %811 = sbr.rel (%p808) target = $region108
      $region107: #{tpu_custom_call.1} parent=5 // pred_region
        %s812 = ssub.s32 %s31, 1
        // Predicated region
        $region109: #{tpu_custom_call.1} parent=107 // pred_check
          %p813 = pneg %p52
        $region110: #{tpu_custom_call.1} parent=107 // pred_check_branch
          %815 = sbr.rel (%p813) target = $region112
        $region111: #{tpu_custom_call.1} parent=107 // pred_region
          %816 = dma.done [#allocation6], 256
        $region112: #{tpu_custom_call.1} parent=107 // pred_fallthru
          _
        // Predicated region
        $region113: #{tpu_custom_call.1} parent=107 // pred_check
          %p817 = pneg %p73
        $region114: #{tpu_custom_call.1} parent=107 // pred_check_branch
          %819 = sbr.rel (%p817) target = $region116
        $region115: #{tpu_custom_call.1} parent=107 // pred_region
          %820 = dma.done [#allocation9], 128
        $region116: #{tpu_custom_call.1} parent=107 // pred_fallthru
          _
        %s821 = sand.u32 %s36, 1
        %s822 = scalar_lea.sflag [#allocation6], %s821
        %s823 = sand.u32 %s346, 1
        %s824 = smul.addr %s823, 16
        %s825 = scalar_lea.vmem [#allocation10], %s824
        // Predicated region
        $region117: #{tpu_custom_call.1} parent=107 // pred_check
          %p826 = pneg %p359
        $region118: #{tpu_custom_call.1} parent=107 // pred_check_branch
          %828 = sbr.rel (%p826) target = $region120
        $region119: #{tpu_custom_call.1} parent=107 // pred_region
          %829 = dma.done %s822, 256
        $region120: #{tpu_custom_call.1} parent=107 // pred_fallthru
          _
        %p830 = pneg %p52
        %p831 = pneg %p49
        %p832 = pneg %p73
        %p833 = pneg %p70
        %p834 = scmp.lt.s32.totalorder %s36, 1
        %s835 = scalar_select %p834, %s36, 1
        %s836 = smul.addr %s835, 4
        %s837 = smul.addr %s836, 4
        %s838 = scalar_lea.vmem %s2, %s837
        %p839 = pneg %p99
        %p840 = pneg %p96
        %p841 = scmp.lt.s32.totalorder %s36, 1
        %s842 = scalar_select %p841, %s36, 1
        %s843 = scalar_lea.vmem %s3, %s842
        %p844 = pneg %p125
        %p845 = pneg %p122
        %p846 = scmp.lt.s32.totalorder %s36, 1
        %s847 = scalar_select %p846, %s36, 1
        %s848 = smul.addr %s847, 4
        %s849 = smul.addr %s848, 4
        %s850 = scalar_lea.vmem %s4, %s849
        %p851 = pneg %p151
        %p852 = pneg %p148
        %p853 = scmp.lt.s32.totalorder %s36, 1
        %s854 = scalar_select %p853, %s36, 1
        %s855 = scalar_lea.vmem %s5, %s854
        %p856 = pneg %p177
        %p857 = pneg %p174
        %p858 = scmp.lt.s32.totalorder %s36, 1
        %s859 = scalar_select %p858, %s36, 1
        %s860 = smul.addr %s859, 4
        %s861 = smul.addr %s860, 4
        %s862 = scalar_lea.vmem %s6, %s861
        %p863 = pneg %p203
        %p864 = pneg %p200
        %p865 = scmp.lt.s32.totalorder %s36, 1
        %s866 = scalar_select %p865, %s36, 1
        %s867 = scalar_lea.vmem %s7, %s866
        %p868 = pneg %p229
        %p869 = pneg %p226
        %p870 = scmp.lt.s32.totalorder %s36, 1
        %s871 = scalar_select %p870, %s36, 1
        %s872 = smul.addr %s871, 4
        %s873 = smul.addr %s872, 4
        %s874 = scalar_lea.vmem %s8, %s873
        %p875 = pneg %p255
        %p876 = pneg %p252
        %p877 = scmp.lt.s32.totalorder %s36, 1
        %s878 = scalar_select %p877, %s36, 1
        %s879 = scalar_lea.vmem %s9, %s878
        %p880 = pneg %p281
        %p881 = pneg %p278
        %p882 = scmp.lt.s32.totalorder %s36, 1
        %s883 = scalar_select %p882, %s36, 1
        %s884 = smul.addr %s883, 4
        %s885 = smul.addr %s884, 4
        %s886 = scalar_lea.vmem %s10, %s885
        %p887 = pneg %p307
        %p888 = pneg %p304
        %p889 = scmp.lt.s32.totalorder %s36, 1
        %s890 = scalar_select %p889, %s36, 1
        %s891 = scalar_lea.vmem %s11, %s890
        %p892 = pneg %p333
        %p893 = pneg %p330
        %s894 = sand.u32 %s36, 1
        %s895 = scalar_lea.sflag [#allocation6], %s894
        %s896 = sand.u32 %s346, 1
        %s897 = smul.addr %s896, 16
        %s898 = scalar_lea.vmem [#allocation10], %s897
        %p899 = pneg %p359
        %p900 = pneg %p356
        %p901 = scmp.lt.s32.totalorder %s36, 1
        %s902 = scalar_select %p901, %s36, 1
        %s903 = scalar_lea.vmem %s13, %s902
        %p904 = pneg %p385
        %p905 = pneg %p382
        %p906 = scmp.lt.s32.totalorder %s36, 1
        %s907 = scalar_select %p906, %s36, 1
        %s908 = smul.addr %s907, 16
        %s909 = smul.addr %s908, 4
        %s910 = scalar_lea.vmem %s14, %s909
        %p911 = pneg %p411
        %p912 = pneg %p408
        %p913 = scmp.lt.s32.totalorder %s36, 1
        %s914 = scalar_select %p913, %s36, 1
        %s915 = scalar_lea.vmem %s15, %s914
        %p916 = pneg %p437
        %p917 = pneg %p434
        %p918 = scmp.lt.s32.totalorder %s36, 1
        %s919 = scalar_select %p918, %s36, 1
        %s920 = scalar_lea.vmem %s16, %s919
        %p921 = pneg %p463
        %p922 = pneg %p460
        %p923 = scmp.lt.s32.totalorder %s36, 1
        %s924 = scalar_select %p923, %s36, 1
        %s925 = scalar_lea.vmem %s17, %s924
        %p926 = pneg %p489
        %p927 = pneg %p486
        %p928 = scmp.lt.s32.totalorder %s36, 1
        %s929 = scalar_select %p928, %s36, 1
        %s930 = scalar_lea.vmem %s18, %s929
        %p931 = pneg %p515
        %p932 = pneg %p512
        %p933 = scmp.lt.s32.totalorder %s36, 1
        %s934 = scalar_select %p933, %s36, 1
        %s935 = scalar_lea.vmem %s19, %s934
        %p936 = pneg %p541
        %p937 = pneg %p538
        %p938 = scmp.lt.s32.totalorder %s36, 1
        %s939 = scalar_select %p938, %s36, 1
        %s940 = scalar_lea.vmem %s20, %s939
        %p941 = pneg %p567
        %p942 = pneg %p564
        %p943 = scmp.lt.s32.totalorder %s36, 1
        %s944 = scalar_select %p943, %s36, 1
        %s945 = scalar_lea.vmem %s21, %s944
        %p946 = pneg %p593
        %p947 = pneg %p590
        %p948 = pneg %p614
        %p949 = pneg %p611
        %p950 = scmp.lt.s32.totalorder %s36, 1
        %s951 = scalar_select %p950, %s36, 1
        %s952 = smul.addr %s951, 4
        %s953 = smul.addr %s952, 4
        %s954 = scalar_lea.vmem %s2, %s953
        %p955 = scmp.lt.s32.totalorder %s36, 1
        %s956 = scalar_select %p955, %s36, 1
        %s957 = scalar_lea.vmem %s3, %s956
        %p958 = scmp.lt.s32.totalorder %s36, 1
        %s959 = scalar_select %p958, %s36, 1
        %s960 = smul.addr %s959, 4
        %s961 = smul.addr %s960, 4
        %s962 = scalar_lea.vmem %s4, %s961
        %p963 = scmp.lt.s32.totalorder %s36, 1
        %s964 = scalar_select %p963, %s36, 1
        %s965 = scalar_lea.vmem %s5, %s964
        %p966 = scmp.lt.s32.totalorder %s36, 1
        %s967 = scalar_select %p966, %s36, 1
        %s968 = smul.addr %s967, 4
        %s969 = smul.addr %s968, 4
        %s970 = scalar_lea.vmem %s6, %s969
        %p971 = scmp.lt.s32.totalorder %s36, 1
        %s972 = scalar_select %p971, %s36, 1
        %s973 = scalar_lea.vmem %s7, %s972
        %p974 = scmp.lt.s32.totalorder %s36, 1
        %s975 = scalar_select %p974, %s36, 1
        %s976 = smul.addr %s975, 4
        %s977 = smul.addr %s976, 4
        %s978 = scalar_lea.vmem %s8, %s977
        %p979 = scmp.lt.s32.totalorder %s36, 1
        %s980 = scalar_select %p979, %s36, 1
        %s981 = scalar_lea.vmem %s9, %s980
        %p982 = scmp.lt.s32.totalorder %s36, 1
        %s983 = scalar_select %p982, %s36, 1
        %s984 = smul.addr %s983, 4
        %s985 = smul.addr %s984, 4
        %s986 = scalar_lea.vmem %s10, %s985
        %p987 = scmp.lt.s32.totalorder %s36, 1
        %s988 = scalar_select %p987, %s36, 1
        %s989 = scalar_lea.vmem %s11, %s988
        %p990 = scmp.lt.s32.totalorder %s36, 1
        %s991 = scalar_select %p990, %s36, 1
        %s992 = scalar_lea.vmem %s13, %s991
        %p993 = scmp.lt.s32.totalorder %s36, 1
        %s994 = scalar_select %p993, %s36, 1
        %s995 = smul.addr %s994, 16
        %s996 = smul.addr %s995, 4
        %s997 = scalar_lea.vmem %s14, %s996
        %p998 = scmp.lt.s32.totalorder %s36, 1
        %s999 = scalar_select %p998, %s36, 1
        %s1000 = scalar_lea.vmem %s15, %s999
        %p1001 = scmp.lt.s32.totalorder %s36, 1
        %s1002 = scalar_select %p1001, %s36, 1
        %s1003 = scalar_lea.vmem %s16, %s1002
        %p1004 = scmp.lt.s32.totalorder %s36, 1
        %s1005 = scalar_select %p1004, %s36, 1
        %s1006 = scalar_lea.vmem %s17, %s1005
        %p1007 = scmp.lt.s32.totalorder %s36, 1
        %s1008 = scalar_select %p1007, %s36, 1
        %s1009 = scalar_lea.vmem %s18, %s1008
        %p1010 = scmp.lt.s32.totalorder %s36, 1
        %s1011 = scalar_select %p1010, %s36, 1
        %s1012 = scalar_lea.vmem %s19, %s1011
        %p1013 = scmp.lt.s32.totalorder %s36, 1
        %s1014 = scalar_select %p1013, %s36, 1
        %s1015 = scalar_lea.vmem %s20, %s1014
        %p1016 = scmp.lt.s32.totalorder %s36, 1
        %s1017 = scalar_select %p1016, %s36, 1
        %s1018 = scalar_lea.vmem %s21, %s1017
        %p1020 = scmp.eq.s32.totalorder %s36, 0
        // Predicated region
        $region121: #{tpu_custom_call.1} parent=107 // pred_check
          %p1021 = pneg %p1020
        $region122: #{tpu_custom_call.1} parent=107 // pred_check_branch
          %1023 = sbr.rel (%p1021) target = $region124
        $region123: #{tpu_custom_call.1} parent=107 // pred_region
          %v1024 = vld [vmem:[#allocation5] sm:$0xff]
          %v1025 = vld [vmem:[#allocation5 + $0x8] sm:$0xff]
          %vm1026 = vcmask 261120
          %1027 = vst.msk [vmem:[#allocation2] sm:$0xff] %vm1026, %v1024
          %1028 = vst.msk [vmem:[#allocation2 + $0x8] sm:$0xff] %vm1026, %v1025
        $region124: #{tpu_custom_call.1} parent=107 // pred_fallthru
          _
        %v1029 = vld [vmem:[#allocation2] sm:$0xff]
        %v1030 = vld [vmem:[#allocation2 + $0x8] sm:$0xff]
        %v1031 = vpack.c.bf16 %v1030, %v1029
        %v1032 = vld [vmem:[%s954] sm:$0xf]
        %v1033 = vld [vmem:[%s954 + $0x4] sm:$0xf]
        %v1034 = vld [vmem:[%s954 + $0x8] sm:$0xf]
        %v1035 = vld [vmem:[%s954 + $0xc] sm:$0xf]
        %v1036 = vld [vmem:[%s957] sm:$0x1]
        %v1038 = vlaneseq
        %v1039 = vshrl.u32 %v1038, 7
        %v1040 = vsub.s32 0, %v1039
        %v1041 = vrot.slane %v1036, %v1040
        %v1047 = vunpack.c.l.b16 %v1032
        %v1048 = vunpack.c.l.b16 %v1033
        %v1049 = vunpack.c.l.b16 %v1034
        %v1050 = vunpack.c.l.b16 %v1035
        %v1051 = vpack.c.b16 %v1048, %v1047
        %v1052 = vpack.c.b16 %v1050, %v1049
        %vm1055 = vcmask 261120
        %v1057 = vsel %vm1055, %v1031, 0
        %1059 = vmatprep.subr.bf16.mxu0 0
        %1060 = vmatpush1.bf16.msra.mxu0 %v1051
        %1061 = vmatprep.subr.bf16.mxu0 0
        %1062 = vmatpush1.bf16.msra.mxu0 %v1052
        %1063 = vmatprep.subr.bf16.mxu0 0
        %1064 = vmatpush1.bf16.msra.mxu0 0
        %1065 = vmatprep.subr.bf16.mxu0 0
        %1066 = vmatpush1.bf16.msra.mxu0 0
        %1067 = vmatprep.subr.bf16.mxu0 0
        %1068 = vmatpush1.bf16.msra.mxu0 0
        %1069 = vmatprep.subr.bf16.mxu0 0
        %1070 = vmatpush1.bf16.msra.mxu0 0
        %1071 = vmatprep.subr.bf16.mxu0 0
        %1072 = vmatpush1.bf16.msra.mxu0 0
        %1073 = vmatprep.subr.bf16.mxu0 0
        %1074 = vmatpush1.bf16.msra.mxu0 0
        %1075 = vmatprep.subr.bf16.mxu0 0
        %1076 = vmatpush1.bf16.msra.mxu0 0
        %1077 = vmatprep.subr.bf16.mxu0 0
        %1078 = vmatpush1.bf16.msra.mxu0 0
        %1079 = vmatprep.subr.bf16.mxu0 0
        %1080 = vmatpush1.bf16.msra.mxu0 0
        %1081 = vmatprep.subr.bf16.mxu0 0
        %1082 = vmatpush1.bf16.msra.mxu0 0
        %1083 = vmatprep.subr.bf16.mxu0 0
        %1084 = vmatpush1.bf16.msra.mxu0 0
        %1085 = vmatprep.subr.bf16.mxu0 0
        %1086 = vmatpush1.bf16.msra.mxu0 0
        %1087 = vmatprep.subr.bf16.mxu0 0
        %1088 = vmatpush1.bf16.msra.mxu0 0
        %1089 = vmatprep.subr.bf16.mxu0 0
        %1090 = vmatpush1.bf16.msra.mxu0 0
        %1091 = vmatprep.mubr.bf16.mxu0 0
        %1092 = vmatmul.mubr.bf16.gmra.mrb[0].mxu0 %v1057
        %v1093 = vpop.f32.mrb[0].mxu0
        %v1094 = vadd.f32 %v1041, %v1093
        %v1095 = vpop.f32.mrb[0].mxu0
        %v1096 = vpop.f32.mrb[0].mxu0
        %v1097 = vadd.f32 %v1041, %v1096
        %v1098 = vpop.f32.mrb[0].mxu0
        %1099 = vdwg.mxu0
        %v1100 = vpack.c.bf16 %v1097, %v1094
        %v1102 = vunpack.c.l.b16 %v1100
        %v1103 = vunpack.c.h.b16 %v1100
        %v1104 = vpack.c.b16 %v1102, %v1102
        %v1105 = vpack.c.b16 %v1103, %v1103
        %1106 = vrot.lane.b32.xlu0 %v1104, 96
        %v1107 = vpop.permute.xlu0 %1106
        %vm1108 = vcmask 64512
        %v1110 = vsel %vm1108, %v1104, 0
        %v1113 = vsel %vm1108, %v1107, 0
        %1115 = vmatprep.subr.bf16.mxu0 0
        %1116 = vmatpush1.bf16.xpose.msra.mxu0 %v1113
        %1117 = vmatprep.subr.bf16.mxu0 0
        %1118 = vmatpush1.bf16.xpose.msra.mxu0 0
        %1119 = vmatprep.subr.bf16.mxu0 0
        %1120 = vmatpush1.bf16.xpose.msra.mxu0 0
        %1121 = vmatprep.subr.bf16.mxu0 0
        %1122 = vmatpush1.bf16.xpose.msra.mxu0 0
        %1123 = vmatprep.subr.bf16.mxu0 0
        %1124 = vmatpush1.bf16.xpose.msra.mxu0 0
        %1125 = vmatprep.subr.bf16.mxu0 0
        %1126 = vmatpush1.bf16.xpose.msra.mxu0 0
        %1127 = vmatprep.subr.bf16.mxu0 0
        %1128 = vmatpush1.bf16.xpose.msra.mxu0 0
        %1129 = vmatprep.subr.bf16.mxu0 0
        %1130 = vmatpush1.bf16.xpose.msra.mxu0 0
        %1131 = vmatprep.subr.bf16.mxu0 0
        %1132 = vmatpush1.bf16.xpose.msra.mxu0 0
        %1133 = vmatprep.subr.bf16.mxu0 0
        %1134 = vmatpush1.bf16.xpose.msra.mxu0 0
        %1135 = vmatprep.subr.bf16.mxu0 0
        %1136 = vmatpush1.bf16.xpose.msra.mxu0 0
        %1137 = vmatprep.subr.bf16.mxu0 0
        %1138 = vmatpush1.bf16.xpose.msra.mxu0 0
        %1139 = vmatprep.subr.bf16.mxu0 0
        %1140 = vmatpush1.bf16.xpose.msra.mxu0 0
        %1141 = vmatprep.subr.bf16.mxu0 0
        %1142 = vmatpush1.bf16.xpose.msra.mxu0 0
        %1143 = vmatprep.subr.bf16.mxu0 0
        %1144 = vmatpush1.bf16.xpose.msra.mxu0 0
        %1145 = vmatprep.subr.bf16.mxu0 0
        %1146 = vmatpush1.bf16.xpose.msra.mxu0 0
        %1147 = vmatprep.mubr.bf16.mxu0 0
        %1148 = vmatmul.mubr.bf16.gmra.mrb[0].mxu0 %v1110
        %v1149 = vpop.f32.mrb[0].mxu0
        %v1150 = vadd.f32 0.0, %v1149
        %v1151 = vpop.f32.mrb[0].mxu0
        %v1152 = vpop.f32.mrb[0].mxu0
        %v1153 = vpop.f32.mrb[0].mxu0
        %1154 = vdwg.mxu0
        %1155 = vrot.lane.b32.xlu0 %v1105, 96
        %v1156 = vpop.permute.xlu0 %1155
        %v1158 = vsel %vm1108, %v1105, 0
        %v1161 = vsel %vm1108, %v1156, 0
        %1163 = vmatprep.subr.bf16.mxu0 0
        %1164 = vmatpush1.bf16.xpose.msra.mxu0 %v1161
        %1165 = vmatprep.subr.bf16.mxu0 0
        %1166 = vmatpush1.bf16.xpose.msra.mxu0 0
        %1167 = vmatprep.subr.bf16.mxu0 0
        %1168 = vmatpush1.bf16.xpose.msra.mxu0 0
        %1169 = vmatprep.subr.bf16.mxu0 0
        %1170 = vmatpush1.bf16.xpose.msra.mxu0 0
        %1171 = vmatprep.subr.bf16.mxu0 0
        %1172 = vmatpush1.bf16.xpose.msra.mxu0 0
        %1173 = vmatprep.subr.bf16.mxu0 0
        %1174 = vmatpush1.bf16.xpose.msra.mxu0 0
        %1175 = vmatprep.subr.bf16.mxu0 0
        %1176 = vmatpush1.bf16.xpose.msra.mxu0 0
        %1177 = vmatprep.subr.bf16.mxu0 0
        %1178 = vmatpush1.bf16.xpose.msra.mxu0 0
        %1179 = vmatprep.subr.bf16.mxu0 0
        %1180 = vmatpush1.bf16.xpose.msra.mxu0 0
        %1181 = vmatprep.subr.bf16.mxu0 0
        %1182 = vmatpush1.bf16.xpose.msra.mxu0 0
        %1183 = vmatprep.subr.bf16.mxu0 0
        %1184 = vmatpush1.bf16.xpose.msra.mxu0 0
        %1185 = vmatprep.subr.bf16.mxu0 0
        %1186 = vmatpush1.bf16.xpose.msra.mxu0 0
        %1187 = vmatprep.subr.bf16.mxu0 0
        %1188 = vmatpush1.bf16.xpose.msra.mxu0 0
        %1189 = vmatprep.subr.bf16.mxu0 0
        %1190 = vmatpush1.bf16.xpose.msra.mxu0 0
        %1191 = vmatprep.subr.bf16.mxu0 0
        %1192 = vmatpush1.bf16.xpose.msra.mxu0 0
        %1193 = vmatprep.subr.bf16.mxu0 0
        %1194 = vmatpush1.bf16.xpose.msra.mxu0 0
        %1195 = vmatprep.mubr.bf16.mxu0 0
        %1196 = vmatmul.mubr.bf16.gmra.mrb[0].mxu0 %v1158
        %v1197 = vpop.f32.mrb[0].mxu0
        %v1198 = vadd.f32 0.0, %v1197
        %v1199 = vpop.f32.mrb[0].mxu0
        %v1200 = vpop.f32.mrb[0].mxu0
        %v1201 = vpop.f32.mrb[0].mxu0
        %1202 = vdwg.mxu0
        %v1203 = vsel %vm1108, %v1150, -inf
        %1204 = vmax.xlane.f32.xlu0 %v1203
        %v1205 = vpop.xlane.xlu0 %1204
        %v1206 = vsel %vm1108, %v1198, -inf
        %1207 = vmax.xlane.f32.xlu0 %v1206
        %v1208 = vpop.xlane.xlu0 %1207
        %v1209 = vsub.f32 %v1150, %v1205
        %v1210 = vsub.f32 %v1198, %v1208
        %v1211 = vmul.f32 %v1209, 1.442695
        %v1212 = vpow.pop %v1211
        %v1213 = vmul.f32 %v1210, 1.442695
        %v1214 = vpow.pop %v1213
        %v1215 = vsel %vm1108, %v1212, 0.0
        %1216 = vadd.xlane.f32.xlu0 %v1215
        %v1217 = vpop.xlane.xlu0 %1216
        %v1218 = vsel %vm1108, %v1214, 0.0
        %1219 = vadd.xlane.f32.xlu0 %v1218
        %v1220 = vpop.xlane.xlu0 %1219
        %v1221 = vrcp.pop %v1217
        %v1222 = vrcp.pop %v1220
        %v1223 = vmul.f32 %v1212, %v1221
        %v1224 = vmul.f32 %v1214, %v1222
        %v1225 = vpack.c.bf16 %v1223, %v1223
        %v1226 = vpack.c.bf16 %v1224, %v1224
        %1227 = vrot.lane.b32.xlu0 %v1104, 64
        %v1228 = vpop.permute.xlu0 %1227
        %v1230 = vsel %vm1108, %v1225, 0
        %vm1232 = vcmask 1043456
        %v1234 = vsel %vm1232, %v1228, 0
        %1236 = vmatprep.subr.bf16.mxu0 0
        %1237 = vmatpush1.bf16.msra.mxu0 %v1234
        %1238 = vmatprep.subr.bf16.mxu0 0
        %1239 = vmatpush1.bf16.msra.mxu0 0
        %1240 = vmatprep.subr.bf16.mxu0 0
        %1241 = vmatpush1.bf16.msra.mxu0 0
        %1242 = vmatprep.subr.bf16.mxu0 0
        %1243 = vmatpush1.bf16.msra.mxu0 0
        %1244 = vmatprep.subr.bf16.mxu0 0
        %1245 = vmatpush1.bf16.msra.mxu0 0
        %1246 = vmatprep.subr.bf16.mxu0 0
        %1247 = vmatpush1.bf16.msra.mxu0 0
        %1248 = vmatprep.subr.bf16.mxu0 0
        %1249 = vmatpush1.bf16.msra.mxu0 0
        %1250 = vmatprep.subr.bf16.mxu0 0
        %1251 = vmatpush1.bf16.msra.mxu0 0
        %1252 = vmatprep.subr.bf16.mxu0 0
        %1253 = vmatpush1.bf16.msra.mxu0 0
        %1254 = vmatprep.subr.bf16.mxu0 0
        %1255 = vmatpush1.bf16.msra.mxu0 0
        %1256 = vmatprep.subr.bf16.mxu0 0
        %1257 = vmatpush1.bf16.msra.mxu0 0
        %1258 = vmatprep.subr.bf16.mxu0 0
        %1259 = vmatpush1.bf16.msra.mxu0 0
        %1260 = vmatprep.subr.bf16.mxu0 0
        %1261 = vmatpush1.bf16.msra.mxu0 0
        %1262 = vmatprep.subr.bf16.mxu0 0
        %1263 = vmatpush1.bf16.msra.mxu0 0
        %1264 = vmatprep.subr.bf16.mxu0 0
        %1265 = vmatpush1.bf16.msra.mxu0 0
        %1266 = vmatprep.subr.bf16.mxu0 0
        %1267 = vmatpush1.bf16.msra.mxu0 0
        %1268 = vmatprep.mubr.bf16.mxu0 0
        %1269 = vmatmul.mubr.bf16.gmra.mrb[0].mxu0 %v1230
        %v1270 = vpop.f32.mrb[0].mxu0
        %v1271 = vadd.f32 0.0, %v1270
        %v1272 = vpop.f32.mrb[0].mxu0
        %v1273 = vpop.f32.mrb[0].mxu0
        %v1274 = vpop.f32.mrb[0].mxu0
        %1275 = vdwg.mxu0
        %1276 = vrot.lane.b32.xlu0 %v1105, 64
        %v1277 = vpop.permute.xlu0 %1276
        %v1279 = vsel %vm1108, %v1226, 0
        %v1282 = vsel %vm1232, %v1277, 0
        %1284 = vmatprep.subr.bf16.mxu0 0
        %1285 = vmatpush1.bf16.msra.mxu0 %v1282
        %1286 = vmatprep.subr.bf16.mxu0 0
        %1287 = vmatpush1.bf16.msra.mxu0 0
        %1288 = vmatprep.subr.bf16.mxu0 0
        %1289 = vmatpush1.bf16.msra.mxu0 0
        %1290 = vmatprep.subr.bf16.mxu0 0
        %1291 = vmatpush1.bf16.msra.mxu0 0
        %1292 = vmatprep.subr.bf16.mxu0 0
        %1293 = vmatpush1.bf16.msra.mxu0 0
        %1294 = vmatprep.subr.bf16.mxu0 0
        %1295 = vmatpush1.bf16.msra.mxu0 0
        %1296 = vmatprep.subr.bf16.mxu0 0
        %1297 = vmatpush1.bf16.msra.mxu0 0
        %1298 = vmatprep.subr.bf16.mxu0 0
        %1299 = vmatpush1.bf16.msra.mxu0 0
        %1300 = vmatprep.subr.bf16.mxu0 0
        %1301 = vmatpush1.bf16.msra.mxu0 0
        %1302 = vmatprep.subr.bf16.mxu0 0
        %1303 = vmatpush1.bf16.msra.mxu0 0
        %1304 = vmatprep.subr.bf16.mxu0 0
        %1305 = vmatpush1.bf16.msra.mxu0 0
        %1306 = vmatprep.subr.bf16.mxu0 0
        %1307 = vmatpush1.bf16.msra.mxu0 0
        %1308 = vmatprep.subr.bf16.mxu0 0
        %1309 = vmatpush1.bf16.msra.mxu0 0
        %1310 = vmatprep.subr.bf16.mxu0 0
        %1311 = vmatpush1.bf16.msra.mxu0 0
        %1312 = vmatprep.subr.bf16.mxu0 0
        %1313 = vmatpush1.bf16.msra.mxu0 0
        %1314 = vmatprep.subr.bf16.mxu0 0
        %1315 = vmatpush1.bf16.msra.mxu0 0
        %1316 = vmatprep.mubr.bf16.mxu0 0
        %1317 = vmatmul.mubr.bf16.gmra.mrb[0].mxu0 %v1279
        %v1318 = vpop.f32.mrb[0].mxu0
        %v1319 = vadd.f32 0.0, %v1318
        %v1320 = vpop.f32.mrb[0].mxu0
        %v1321 = vpop.f32.mrb[0].mxu0
        %v1322 = vpop.f32.mrb[0].mxu0
        %1323 = vdwg.mxu0
        %1324 = vst.msk [vmem:[#allocation3] sm:$0xff] %vm1108, %v1271
        %1325 = vst.msk [vmem:[#allocation3 + $0x8] sm:$0xff] %vm1108, %v1319
        %1326 = vrot.lane.b32.xlu0 %v1104, 120
        %v1327 = vpop.permute.xlu0 %1326
        %1328 = vrot.lane.b32.xlu0 %v1104, 88
        %v1329 = vpop.permute.xlu0 %1328
        %v1331 = vsel %vm1108, %v1327, 0
        %v1334 = vsel %vm1108, %v1329, 0
        %1336 = vmatprep.subr.bf16.mxu0 0
        %1337 = vmatpush1.bf16.xpose.msra.mxu0 %v1334
        %1338 = vmatprep.subr.bf16.mxu0 0
        %1339 = vmatpush1.bf16.xpose.msra.mxu0 0
        %1340 = vmatprep.subr.bf16.mxu0 0
        %1341 = vmatpush1.bf16.xpose.msra.mxu0 0
        %1342 = vmatprep.subr.bf16.mxu0 0
        %1343 = vmatpush1.bf16.xpose.msra.mxu0 0
        %1344 = vmatprep.subr.bf16.mxu0 0
        %1345 = vmatpush1.bf16.xpose.msra.mxu0 0
        %1346 = vmatprep.subr.bf16.mxu0 0
        %1347 = vmatpush1.bf16.xpose.msra.mxu0 0
        %1348 = vmatprep.subr.bf16.mxu0 0
        %1349 = vmatpush1.bf16.xpose.msra.mxu0 0
        %1350 = vmatprep.subr.bf16.mxu0 0
        %1351 = vmatpush1.bf16.xpose.msra.mxu0 0
        %1352 = vmatprep.subr.bf16.mxu0 0
        %1353 = vmatpush1.bf16.xpose.msra.mxu0 0
        %1354 = vmatprep.subr.bf16.mxu0 0
        %1355 = vmatpush1.bf16.xpose.msra.mxu0 0
        %1356 = vmatprep.subr.bf16.mxu0 0
        %1357 = vmatpush1.bf16.xpose.msra.mxu0 0
        %1358 = vmatprep.subr.bf16.mxu0 0
        %1359 = vmatpush1.bf16.xpose.msra.mxu0 0
        %1360 = vmatprep.subr.bf16.mxu0 0
        %1361 = vmatpush1.bf16.xpose.msra.mxu0 0
        %1362 = vmatprep.subr.bf16.mxu0 0
        %1363 = vmatpush1.bf16.xpose.msra.mxu0 0
        %1364 = vmatprep.subr.bf16.mxu0 0
        %1365 = vmatpush1.bf16.xpose.msra.mxu0 0
        %1366 = vmatprep.subr.bf16.mxu0 0
        %1367 = vmatpush1.bf16.xpose.msra.mxu0 0
        %1368 = vmatprep.mubr.bf16.mxu0 0
        %1369 = vmatmul.mubr.bf16.gmra.mrb[0].mxu0 %v1331
        %v1370 = vpop.f32.mrb[0].mxu0
        %v1371 = vadd.f32 0.0, %v1370
        %v1372 = vpop.f32.mrb[0].mxu0
        %v1373 = vpop.f32.mrb[0].mxu0
        %v1374 = vpop.f32.mrb[0].mxu0
        %1375 = vdwg.mxu0
        %1376 = vrot.lane.b32.xlu0 %v1105, 120
        %v1377 = vpop.permute.xlu0 %1376
        %1378 = vrot.lane.b32.xlu0 %v1105, 88
        %v1379 = vpop.permute.xlu0 %1378
        %v1381 = vsel %vm1108, %v1377, 0
        %v1384 = vsel %vm1108, %v1379, 0
        %1386 = vmatprep.subr.bf16.mxu0 0
        %1387 = vmatpush1.bf16.xpose.msra.mxu0 %v1384
        %1388 = vmatprep.subr.bf16.mxu0 0
        %1389 = vmatpush1.bf16.xpose.msra.mxu0 0
        %1390 = vmatprep.subr.bf16.mxu0 0
        %1391 = vmatpush1.bf16.xpose.msra.mxu0 0
        %1392 = vmatprep.subr.bf16.mxu0 0
        %1393 = vmatpush1.bf16.xpose.msra.mxu0 0
        %1394 = vmatprep.subr.bf16.mxu0 0
        %1395 = vmatpush1.bf16.xpose.msra.mxu0 0
        %1396 = vmatprep.subr.bf16.mxu0 0
        %1397 = vmatpush1.bf16.xpose.msra.mxu0 0
        %1398 = vmatprep.subr.bf16.mxu0 0
        %1399 = vmatpush1.bf16.xpose.msra.mxu0 0
        %1400 = vmatprep.subr.bf16.mxu0 0
        %1401 = vmatpush1.bf16.xpose.msra.mxu0 0
        %1402 = vmatprep.subr.bf16.mxu0 0
        %1403 = vmatpush1.bf16.xpose.msra.mxu0 0
        %1404 = vmatprep.subr.bf16.mxu0 0
        %1405 = vmatpush1.bf16.xpose.msra.mxu0 0
        %1406 = vmatprep.subr.bf16.mxu0 0
        %1407 = vmatpush1.bf16.xpose.msra.mxu0 0
        %1408 = vmatprep.subr.bf16.mxu0 0
        %1409 = vmatpush1.bf16.xpose.msra.mxu0 0
        %1410 = vmatprep.subr.bf16.mxu0 0
        %1411 = vmatpush1.bf16.xpose.msra.mxu0 0
        %1412 = vmatprep.subr.bf16.mxu0 0
        %1413 = vmatpush1.bf16.xpose.msra.mxu0 0
        %1414 = vmatprep.subr.bf16.mxu0 0
        %1415 = vmatpush1.bf16.xpose.msra.mxu0 0
        %1416 = vmatprep.subr.bf16.mxu0 0
        %1417 = vmatpush1.bf16.xpose.msra.mxu0 0
        %1418 = vmatprep.mubr.bf16.mxu0 0
        %1419 = vmatmul.mubr.bf16.gmra.mrb[0].mxu0 %v1381
        %v1420 = vpop.f32.mrb[0].mxu0
        %v1421 = vadd.f32 0.0, %v1420
        %v1422 = vpop.f32.mrb[0].mxu0
        %v1423 = vpop.f32.mrb[0].mxu0
        %v1424 = vpop.f32.mrb[0].mxu0
        %1425 = vdwg.mxu0
        %v1426 = vsel %vm1108, %v1371, -inf
        %1427 = vmax.xlane.f32.xlu0 %v1426
        %v1428 = vpop.xlane.xlu0 %1427
        %v1429 = vsel %vm1108, %v1421, -inf
        %1430 = vmax.xlane.f32.xlu0 %v1429
        %v1431 = vpop.xlane.xlu0 %1430
        %v1432 = vsub.f32 %v1371, %v1428
        %v1433 = vsub.f32 %v1421, %v1431
        %v1434 = vmul.f32 %v1432, 1.442695
        %v1435 = vpow.pop %v1434
        %v1436 = vmul.f32 %v1433, 1.442695
        %v1437 = vpow.pop %v1436
        %v1438 = vsel %vm1108, %v1435, 0.0
        %1439 = vadd.xlane.f32.xlu0 %v1438
        %v1440 = vpop.xlane.xlu0 %1439
        %v1441 = vsel %vm1108, %v1437, 0.0
        %1442 = vadd.xlane.f32.xlu0 %v1441
        %v1443 = vpop.xlane.xlu0 %1442
        %v1444 = vrcp.pop %v1440
        %v1445 = vrcp.pop %v1443
        %v1446 = vmul.f32 %v1435, %v1444
        %v1447 = vmul.f32 %v1437, %v1445
        %v1448 = vpack.c.bf16 %v1446, %v1446
        %v1449 = vpack.c.bf16 %v1447, %v1447
        %1450 = vrot.lane.b32.xlu0 %v1104, 56
        %v1451 = vpop.permute.xlu0 %1450
        %v1453 = vsel %vm1108, %v1448, 0
        %v1456 = vsel %vm1232, %v1451, 0
        %1458 = vmatprep.subr.bf16.mxu0 0
        %1459 = vmatpush1.bf16.msra.mxu0 %v1456
        %1460 = vmatprep.subr.bf16.mxu0 0
        %1461 = vmatpush1.bf16.msra.mxu0 0
        %1462 = vmatprep.subr.bf16.mxu0 0
        %1463 = vmatpush1.bf16.msra.mxu0 0
        %1464 = vmatprep.subr.bf16.mxu0 0
        %1465 = vmatpush1.bf16.msra.mxu0 0
        %1466 = vmatprep.subr.bf16.mxu0 0
        %1467 = vmatpush1.bf16.msra.mxu0 0
        %1468 = vmatprep.subr.bf16.mxu0 0
        %1469 = vmatpush1.bf16.msra.mxu0 0
        %1470 = vmatprep.subr.bf16.mxu0 0
        %1471 = vmatpush1.bf16.msra.mxu0 0
        %1472 = vmatprep.subr.bf16.mxu0 0
        %1473 = vmatpush1.bf16.msra.mxu0 0
        %1474 = vmatprep.subr.bf16.mxu0 0
        %1475 = vmatpush1.bf16.msra.mxu0 0
        %1476 = vmatprep.subr.bf16.mxu0 0
        %1477 = vmatpush1.bf16.msra.mxu0 0
        %1478 = vmatprep.subr.bf16.mxu0 0
        %1479 = vmatpush1.bf16.msra.mxu0 0
        %1480 = vmatprep.subr.bf16.mxu0 0
        %1481 = vmatpush1.bf16.msra.mxu0 0
        %1482 = vmatprep.subr.bf16.mxu0 0
        %1483 = vmatpush1.bf16.msra.mxu0 0
        %1484 = vmatprep.subr.bf16.mxu0 0
        %1485 = vmatpush1.bf16.msra.mxu0 0
        %1486 = vmatprep.subr.bf16.mxu0 0
        %1487 = vmatpush1.bf16.msra.mxu0 0
        %1488 = vmatprep.subr.bf16.mxu0 0
        %1489 = vmatpush1.bf16.msra.mxu0 0
        %1490 = vmatprep.mubr.bf16.mxu0 0
        %1491 = vmatmul.mubr.bf16.gmra.mrb[0].mxu0 %v1453
        %v1492 = vpop.f32.mrb[0].mxu0
        %v1493 = vadd.f32 0.0, %v1492
        %v1494 = vpop.f32.mrb[0].mxu0
        %v1495 = vpop.f32.mrb[0].mxu0
        %v1496 = vpop.f32.mrb[0].mxu0
        %1497 = vdwg.mxu0
        %1498 = vrot.lane.b32.xlu0 %v1105, 56
        %v1499 = vpop.permute.xlu0 %1498
        %v1501 = vsel %vm1108, %v1449, 0
        %v1504 = vsel %vm1232, %v1499, 0
        %1506 = vmatprep.subr.bf16.mxu0 0
        %1507 = vmatpush1.bf16.msra.mxu0 %v1504
        %1508 = vmatprep.subr.bf16.mxu0 0
        %1509 = vmatpush1.bf16.msra.mxu0 0
        %1510 = vmatprep.subr.bf16.mxu0 0
        %1511 = vmatpush1.bf16.msra.mxu0 0
        %1512 = vmatprep.subr.bf16.mxu0 0
        %1513 = vmatpush1.bf16.msra.mxu0 0
        %1514 = vmatprep.subr.bf16.mxu0 0
        %1515 = vmatpush1.bf16.msra.mxu0 0
        %1516 = vmatprep.subr.bf16.mxu0 0
        %1517 = vmatpush1.bf16.msra.mxu0 0
        %1518 = vmatprep.subr.bf16.mxu0 0
        %1519 = vmatpush1.bf16.msra.mxu0 0
        %1520 = vmatprep.subr.bf16.mxu0 0
        %1521 = vmatpush1.bf16.msra.mxu0 0
        %1522 = vmatprep.subr.bf16.mxu0 0
        %1523 = vmatpush1.bf16.msra.mxu0 0
        %1524 = vmatprep.subr.bf16.mxu0 0
        %1525 = vmatpush1.bf16.msra.mxu0 0
        %1526 = vmatprep.subr.bf16.mxu0 0
        %1527 = vmatpush1.bf16.msra.mxu0 0
        %1528 = vmatprep.subr.bf16.mxu0 0
        %1529 = vmatpush1.bf16.msra.mxu0 0
        %1530 = vmatprep.subr.bf16.mxu0 0
        %1531 = vmatpush1.bf16.msra.mxu0 0
        %1532 = vmatprep.subr.bf16.mxu0 0
        %1533 = vmatpush1.bf16.msra.mxu0 0
        %1534 = vmatprep.subr.bf16.mxu0 0
        %1535 = vmatpush1.bf16.msra.mxu0 0
        %1536 = vmatprep.subr.bf16.mxu0 0
        %1537 = vmatpush1.bf16.msra.mxu0 0
        %1538 = vmatprep.mubr.bf16.mxu0 0
        %1539 = vmatmul.mubr.bf16.gmra.mrb[0].mxu0 %v1501
        %v1540 = vpop.f32.mrb[0].mxu0
        %v1541 = vadd.f32 0.0, %v1540
        %v1542 = vpop.f32.mrb[0].mxu0
        %v1543 = vpop.f32.mrb[0].mxu0
        %v1544 = vpop.f32.mrb[0].mxu0
        %1545 = vdwg.mxu0
        %1548 = vrot.lane.b32.xlu0 %v1493, 8
        %v1549 = vpop.permute.xlu0 %1548
        %1550 = vrot.lane.b32.xlu0 %v1541, 8
        %v1551 = vpop.permute.xlu0 %1550
        %vm1554 = vcmask 130112
        %1555 = vst.msk [vmem:[#allocation3] sm:$0xff] %vm1554, %v1549
        %1556 = vst.msk [vmem:[#allocation3 + $0x8] sm:$0xff] %vm1554, %v1551
        %1557 = vrot.lane.b32.xlu0 %v1104, 112
        %v1558 = vpop.permute.xlu0 %1557
        %1559 = vrot.lane.b32.xlu0 %v1104, 80
        %v1560 = vpop.permute.xlu0 %1559
        %v1562 = vsel %vm1108, %v1558, 0
        %v1565 = vsel %vm1108, %v1560, 0
        %1567 = vmatprep.subr.bf16.mxu0 0
        %1568 = vmatpush1.bf16.xpose.msra.mxu0 %v1565
        %1569 = vmatprep.subr.bf16.mxu0 0
        %1570 = vmatpush1.bf16.xpose.msra.mxu0 0
        %1571 = vmatprep.subr.bf16.mxu0 0
        %1572 = vmatpush1.bf16.xpose.msra.mxu0 0
        %1573 = vmatprep.subr.bf16.mxu0 0
        %1574 = vmatpush1.bf16.xpose.msra.mxu0 0
        %1575 = vmatprep.subr.bf16.mxu0 0
        %1576 = vmatpush1.bf16.xpose.msra.mxu0 0
        %1577 = vmatprep.subr.bf16.mxu0 0
        %1578 = vmatpush1.bf16.xpose.msra.mxu0 0
        %1579 = vmatprep.subr.bf16.mxu0 0
        %1580 = vmatpush1.bf16.xpose.msra.mxu0 0
        %1581 = vmatprep.subr.bf16.mxu0 0
        %1582 = vmatpush1.bf16.xpose.msra.mxu0 0
        %1583 = vmatprep.subr.bf16.mxu0 0
        %1584 = vmatpush1.bf16.xpose.msra.mxu0 0
        %1585 = vmatprep.subr.bf16.mxu0 0
        %1586 = vmatpush1.bf16.xpose.msra.mxu0 0
        %1587 = vmatprep.subr.bf16.mxu0 0
        %1588 = vmatpush1.bf16.xpose.msra.mxu0 0
        %1589 = vmatprep.subr.bf16.mxu0 0
        %1590 = vmatpush1.bf16.xpose.msra.mxu0 0
        %1591 = vmatprep.subr.bf16.mxu0 0
        %1592 = vmatpush1.bf16.xpose.msra.mxu0 0
        %1593 = vmatprep.subr.bf16.mxu0 0
        %1594 = vmatpush1.bf16.xpose.msra.mxu0 0
        %1595 = vmatprep.subr.bf16.mxu0 0
        %1596 = vmatpush1.bf16.xpose.msra.mxu0 0
        %1597 = vmatprep.subr.bf16.mxu0 0
        %1598 = vmatpush1.bf16.xpose.msra.mxu0 0
        %1599 = vmatprep.mubr.bf16.mxu0 0
        %1600 = vmatmul.mubr.bf16.gmra.mrb[0].mxu0 %v1562
        %v1601 = vpop.f32.mrb[0].mxu0
        %v1602 = vadd.f32 0.0, %v1601
        %v1603 = vpop.f32.mrb[0].mxu0
        %v1604 = vpop.f32.mrb[0].mxu0
        %v1605 = vpop.f32.mrb[0].mxu0
        %1606 = vdwg.mxu0
        %1607 = vrot.lane.b32.xlu0 %v1105, 112
        %v1608 = vpop.permute.xlu0 %1607
        %1609 = vrot.lane.b32.xlu0 %v1105, 80
        %v1610 = vpop.permute.xlu0 %1609
        %v1612 = vsel %vm1108, %v1608, 0
        %v1615 = vsel %vm1108, %v1610, 0
        %1617 = vmatprep.subr.bf16.mxu0 0
        %1618 = vmatpush1.bf16.xpose.msra.mxu0 %v1615
        %1619 = vmatprep.subr.bf16.mxu0 0
        %1620 = vmatpush1.bf16.xpose.msra.mxu0 0
        %1621 = vmatprep.subr.bf16.mxu0 0
        %1622 = vmatpush1.bf16.xpose.msra.mxu0 0
        %1623 = vmatprep.subr.bf16.mxu0 0
        %1624 = vmatpush1.bf16.xpose.msra.mxu0 0
        %1625 = vmatprep.subr.bf16.mxu0 0
        %1626 = vmatpush1.bf16.xpose.msra.mxu0 0
        %1627 = vmatprep.subr.bf16.mxu0 0
        %1628 = vmatpush1.bf16.xpose.msra.mxu0 0
        %1629 = vmatprep.subr.bf16.mxu0 0
        %1630 = vmatpush1.bf16.xpose.msra.mxu0 0
        %1631 = vmatprep.subr.bf16.mxu0 0
        %1632 = vmatpush1.bf16.xpose.msra.mxu0 0
        %1633 = vmatprep.subr.bf16.mxu0 0
        %1634 = vmatpush1.bf16.xpose.msra.mxu0 0
        %1635 = vmatprep.subr.bf16.mxu0 0
        %1636 = vmatpush1.bf16.xpose.msra.mxu0 0
        %1637 = vmatprep.subr.bf16.mxu0 0
        %1638 = vmatpush1.bf16.xpose.msra.mxu0 0
        %1639 = vmatprep.subr.bf16.mxu0 0
        %1640 = vmatpush1.bf16.xpose.msra.mxu0 0
        %1641 = vmatprep.subr.bf16.mxu0 0
        %1642 = vmatpush1.bf16.xpose.msra.mxu0 0
        %1643 = vmatprep.subr.bf16.mxu0 0
        %1644 = vmatpush1.bf16.xpose.msra.mxu0 0
        %1645 = vmatprep.subr.bf16.mxu0 0
        %1646 = vmatpush1.bf16.xpose.msra.mxu0 0
        %1647 = vmatprep.subr.bf16.mxu0 0
        %1648 = vmatpush1.bf16.xpose.msra.mxu0 0
        %1649 = vmatprep.mubr.bf16.mxu0 0
        %1650 = vmatmul.mubr.bf16.gmra.mrb[0].mxu0 %v1612
        %v1651 = vpop.f32.mrb[0].mxu0
        %v1652 = vadd.f32 0.0, %v1651
        %v1653 = vpop.f32.mrb[0].mxu0
        %v1654 = vpop.f32.mrb[0].mxu0
        %v1655 = vpop.f32.mrb[0].mxu0
        %1656 = vdwg.mxu0
        %v1657 = vsel %vm1108, %v1602, -inf
        %1658 = vmax.xlane.f32.xlu0 %v1657
        %v1659 = vpop.xlane.xlu0 %1658
        %v1660 = vsel %vm1108, %v1652, -inf
        %1661 = vmax.xlane.f32.xlu0 %v1660
        %v1662 = vpop.xlane.xlu0 %1661
        %v1663 = vsub.f32 %v1602, %v1659
        %v1664 = vsub.f32 %v1652, %v1662
        %v1665 = vmul.f32 %v1663, 1.442695
        %v1666 = vpow.pop %v1665
        %v1667 = vmul.f32 %v1664, 1.442695
        %v1668 = vpow.pop %v1667
        %v1669 = vsel %vm1108, %v1666, 0.0
        %1670 = vadd.xlane.f32.xlu0 %v1669
        %v1671 = vpop.xlane.xlu0 %1670
        %v1672 = vsel %vm1108, %v1668, 0.0
        %1673 = vadd.xlane.f32.xlu0 %v1672
        %v1674 = vpop.xlane.xlu0 %1673
        %v1675 = vrcp.pop %v1671
        %v1676 = vrcp.pop %v1674
        %v1677 = vmul.f32 %v1666, %v1675
        %v1678 = vmul.f32 %v1668, %v1676
        %v1679 = vpack.c.bf16 %v1677, %v1677
        %v1680 = vpack.c.bf16 %v1678, %v1678
        %1681 = vrot.lane.b32.xlu0 %v1104, 48
        %v1682 = vpop.permute.xlu0 %1681
        %v1684 = vsel %vm1108, %v1679, 0
        %v1687 = vsel %vm1232, %v1682, 0
        %1689 = vmatprep.subr.bf16.mxu0 0
        %1690 = vmatpush1.bf16.msra.mxu0 %v1687
        %1691 = vmatprep.subr.bf16.mxu0 0
        %1692 = vmatpush1.bf16.msra.mxu0 0
        %1693 = vmatprep.subr.bf16.mxu0 0
        %1694 = vmatpush1.bf16.msra.mxu0 0
        %1695 = vmatprep.subr.bf16.mxu0 0
        %1696 = vmatpush1.bf16.msra.mxu0 0
        %1697 = vmatprep.subr.bf16.mxu0 0
        %1698 = vmatpush1.bf16.msra.mxu0 0
        %1699 = vmatprep.subr.bf16.mxu0 0
        %1700 = vmatpush1.bf16.msra.mxu0 0
        %1701 = vmatprep.subr.bf16.mxu0 0
        %1702 = vmatpush1.bf16.msra.mxu0 0
        %1703 = vmatprep.subr.bf16.mxu0 0
        %1704 = vmatpush1.bf16.msra.mxu0 0
        %1705 = vmatprep.subr.bf16.mxu0 0
        %1706 = vmatpush1.bf16.msra.mxu0 0
        %1707 = vmatprep.subr.bf16.mxu0 0
        %1708 = vmatpush1.bf16.msra.mxu0 0
        %1709 = vmatprep.subr.bf16.mxu0 0
        %1710 = vmatpush1.bf16.msra.mxu0 0
        %1711 = vmatprep.subr.bf16.mxu0 0
        %1712 = vmatpush1.bf16.msra.mxu0 0
        %1713 = vmatprep.subr.bf16.mxu0 0
        %1714 = vmatpush1.bf16.msra.mxu0 0
        %1715 = vmatprep.subr.bf16.mxu0 0
        %1716 = vmatpush1.bf16.msra.mxu0 0
        %1717 = vmatprep.subr.bf16.mxu0 0
        %1718 = vmatpush1.bf16.msra.mxu0 0
        %1719 = vmatprep.subr.bf16.mxu0 0
        %1720 = vmatpush1.bf16.msra.mxu0 0
        %1721 = vmatprep.mubr.bf16.mxu0 0
        %1722 = vmatmul.mubr.bf16.gmra.mrb[0].mxu0 %v1684
        %v1723 = vpop.f32.mrb[0].mxu0
        %v1724 = vadd.f32 0.0, %v1723
        %v1725 = vpop.f32.mrb[0].mxu0
        %v1726 = vpop.f32.mrb[0].mxu0
        %v1727 = vpop.f32.mrb[0].mxu0
        %1728 = vdwg.mxu0
        %1729 = vrot.lane.b32.xlu0 %v1105, 48
        %v1730 = vpop.permute.xlu0 %1729
        %v1732 = vsel %vm1108, %v1680, 0
        %v1735 = vsel %vm1232, %v1730, 0
        %1737 = vmatprep.subr.bf16.mxu0 0
        %1738 = vmatpush1.bf16.msra.mxu0 %v1735
        %1739 = vmatprep.subr.bf16.mxu0 0
        %1740 = vmatpush1.bf16.msra.mxu0 0
        %1741 = vmatprep.subr.bf16.mxu0 0
        %1742 = vmatpush1.bf16.msra.mxu0 0
        %1743 = vmatprep.subr.bf16.mxu0 0
        %1744 = vmatpush1.bf16.msra.mxu0 0
        %1745 = vmatprep.subr.bf16.mxu0 0
        %1746 = vmatpush1.bf16.msra.mxu0 0
        %1747 = vmatprep.subr.bf16.mxu0 0
        %1748 = vmatpush1.bf16.msra.mxu0 0
        %1749 = vmatprep.subr.bf16.mxu0 0
        %1750 = vmatpush1.bf16.msra.mxu0 0
        %1751 = vmatprep.subr.bf16.mxu0 0
        %1752 = vmatpush1.bf16.msra.mxu0 0
        %1753 = vmatprep.subr.bf16.mxu0 0
        %1754 = vmatpush1.bf16.msra.mxu0 0
        %1755 = vmatprep.subr.bf16.mxu0 0
        %1756 = vmatpush1.bf16.msra.mxu0 0
        %1757 = vmatprep.subr.bf16.mxu0 0
        %1758 = vmatpush1.bf16.msra.mxu0 0
        %1759 = vmatprep.subr.bf16.mxu0 0
        %1760 = vmatpush1.bf16.msra.mxu0 0
        %1761 = vmatprep.subr.bf16.mxu0 0
        %1762 = vmatpush1.bf16.msra.mxu0 0
        %1763 = vmatprep.subr.bf16.mxu0 0
        %1764 = vmatpush1.bf16.msra.mxu0 0
        %1765 = vmatprep.subr.bf16.mxu0 0
        %1766 = vmatpush1.bf16.msra.mxu0 0
        %1767 = vmatprep.subr.bf16.mxu0 0
        %1768 = vmatpush1.bf16.msra.mxu0 0
        %1769 = vmatprep.mubr.bf16.mxu0 0
        %1770 = vmatmul.mubr.bf16.gmra.mrb[0].mxu0 %v1732
        %v1771 = vpop.f32.mrb[0].mxu0
        %v1772 = vadd.f32 0.0, %v1771
        %v1773 = vpop.f32.mrb[0].mxu0
        %v1774 = vpop.f32.mrb[0].mxu0
        %v1775 = vpop.f32.mrb[0].mxu0
        %1776 = vdwg.mxu0
        %1779 = vrot.lane.b32.xlu0 %v1724, 16
        %v1780 = vpop.permute.xlu0 %1779
        %1781 = vrot.lane.b32.xlu0 %v1772, 16
        %v1782 = vpop.permute.xlu0 %1781
        %vm1785 = vcmask 195712
        %1786 = vst.msk [vmem:[#allocation3] sm:$0xff] %vm1785, %v1780
        %1787 = vst.msk [vmem:[#allocation3 + $0x8] sm:$0xff] %vm1785, %v1782
        %1788 = vrot.lane.b32.xlu0 %v1104, 104
        %v1789 = vpop.permute.xlu0 %1788
        %1790 = vrot.lane.b32.xlu0 %v1104, 72
        %v1791 = vpop.permute.xlu0 %1790
        %v1793 = vsel %vm1108, %v1789, 0
        %v1796 = vsel %vm1108, %v1791, 0
        %1798 = vmatprep.subr.bf16.mxu0 0
        %1799 = vmatpush1.bf16.xpose.msra.mxu0 %v1796
        %1800 = vmatprep.subr.bf16.mxu0 0
        %1801 = vmatpush1.bf16.xpose.msra.mxu0 0
        %1802 = vmatprep.subr.bf16.mxu0 0
        %1803 = vmatpush1.bf16.xpose.msra.mxu0 0
        %1804 = vmatprep.subr.bf16.mxu0 0
        %1805 = vmatpush1.bf16.xpose.msra.mxu0 0
        %1806 = vmatprep.subr.bf16.mxu0 0
        %1807 = vmatpush1.bf16.xpose.msra.mxu0 0
        %1808 = vmatprep.subr.bf16.mxu0 0
        %1809 = vmatpush1.bf16.xpose.msra.mxu0 0
        %1810 = vmatprep.subr.bf16.mxu0 0
        %1811 = vmatpush1.bf16.xpose.msra.mxu0 0
        %1812 = vmatprep.subr.bf16.mxu0 0
        %1813 = vmatpush1.bf16.xpose.msra.mxu0 0
        %1814 = vmatprep.subr.bf16.mxu0 0
        %1815 = vmatpush1.bf16.xpose.msra.mxu0 0
        %1816 = vmatprep.subr.bf16.mxu0 0
        %1817 = vmatpush1.bf16.xpose.msra.mxu0 0
        %1818 = vmatprep.subr.bf16.mxu0 0
        %1819 = vmatpush1.bf16.xpose.msra.mxu0 0
        %1820 = vmatprep.subr.bf16.mxu0 0
        %1821 = vmatpush1.bf16.xpose.msra.mxu0 0
        %1822 = vmatprep.subr.bf16.mxu0 0
        %1823 = vmatpush1.bf16.xpose.msra.mxu0 0
        %1824 = vmatprep.subr.bf16.mxu0 0
        %1825 = vmatpush1.bf16.xpose.msra.mxu0 0
        %1826 = vmatprep.subr.bf16.mxu0 0
        %1827 = vmatpush1.bf16.xpose.msra.mxu0 0
        %1828 = vmatprep.subr.bf16.mxu0 0
        %1829 = vmatpush1.bf16.xpose.msra.mxu0 0
        %1830 = vmatprep.mubr.bf16.mxu0 0
        %1831 = vmatmul.mubr.bf16.gmra.mrb[0].mxu0 %v1793
        %v1832 = vpop.f32.mrb[0].mxu0
        %v1833 = vadd.f32 0.0, %v1832
        %v1834 = vpop.f32.mrb[0].mxu0
        %v1835 = vpop.f32.mrb[0].mxu0
        %v1836 = vpop.f32.mrb[0].mxu0
        %1837 = vdwg.mxu0
        %1838 = vrot.lane.b32.xlu0 %v1105, 104
        %v1839 = vpop.permute.xlu0 %1838
        %1840 = vrot.lane.b32.xlu0 %v1105, 72
        %v1841 = vpop.permute.xlu0 %1840
        %v1843 = vsel %vm1108, %v1839, 0
        %v1846 = vsel %vm1108, %v1841, 0
        %1848 = vmatprep.subr.bf16.mxu0 0
        %1849 = vmatpush1.bf16.xpose.msra.mxu0 %v1846
        %1850 = vmatprep.subr.bf16.mxu0 0
        %1851 = vmatpush1.bf16.xpose.msra.mxu0 0
        %1852 = vmatprep.subr.bf16.mxu0 0
        %1853 = vmatpush1.bf16.xpose.msra.mxu0 0
        %1854 = vmatprep.subr.bf16.mxu0 0
        %1855 = vmatpush1.bf16.xpose.msra.mxu0 0
        %1856 = vmatprep.subr.bf16.mxu0 0
        %1857 = vmatpush1.bf16.xpose.msra.mxu0 0
        %1858 = vmatprep.subr.bf16.mxu0 0
        %1859 = vmatpush1.bf16.xpose.msra.mxu0 0
        %1860 = vmatprep.subr.bf16.mxu0 0
        %1861 = vmatpush1.bf16.xpose.msra.mxu0 0
        %1862 = vmatprep.subr.bf16.mxu0 0
        %1863 = vmatpush1.bf16.xpose.msra.mxu0 0
        %1864 = vmatprep.subr.bf16.mxu0 0
        %1865 = vmatpush1.bf16.xpose.msra.mxu0 0
        %1866 = vmatprep.subr.bf16.mxu0 0
        %1867 = vmatpush1.bf16.xpose.msra.mxu0 0
        %1868 = vmatprep.subr.bf16.mxu0 0
        %1869 = vmatpush1.bf16.xpose.msra.mxu0 0
        %1870 = vmatprep.subr.bf16.mxu0 0
        %1871 = vmatpush1.bf16.xpose.msra.mxu0 0
        %1872 = vmatprep.subr.bf16.mxu0 0
        %1873 = vmatpush1.bf16.xpose.msra.mxu0 0
        %1874 = vmatprep.subr.bf16.mxu0 0
        %1875 = vmatpush1.bf16.xpose.msra.mxu0 0
        %1876 = vmatprep.subr.bf16.mxu0 0
        %1877 = vmatpush1.bf16.xpose.msra.mxu0 0
        %1878 = vmatprep.subr.bf16.mxu0 0
        %1879 = vmatpush1.bf16.xpose.msra.mxu0 0
        %1880 = vmatprep.mubr.bf16.mxu0 0
        %1881 = vmatmul.mubr.bf16.gmra.mrb[0].mxu0 %v1843
        %v1882 = vpop.f32.mrb[0].mxu0
        %v1883 = vadd.f32 0.0, %v1882
        %v1884 = vpop.f32.mrb[0].mxu0
        %v1885 = vpop.f32.mrb[0].mxu0
        %v1886 = vpop.f32.mrb[0].mxu0
        %1887 = vdwg.mxu0
        %v1888 = vsel %vm1108, %v1833, -inf
        %1889 = vmax.xlane.f32.xlu0 %v1888
        %v1890 = vpop.xlane.xlu0 %1889
        %v1891 = vsel %vm1108, %v1883, -inf
        %1892 = vmax.xlane.f32.xlu0 %v1891
        %v1893 = vpop.xlane.xlu0 %1892
        %v1894 = vsub.f32 %v1833, %v1890
        %v1895 = vsub.f32 %v1883, %v1893
        %v1896 = vmul.f32 %v1894, 1.442695
        %v1897 = vpow.pop %v1896
        %v1898 = vmul.f32 %v1895, 1.442695
        %v1899 = vpow.pop %v1898
        %v1900 = vsel %vm1108, %v1897, 0.0
        %1901 = vadd.xlane.f32.xlu0 %v1900
        %v1902 = vpop.xlane.xlu0 %1901
        %v1903 = vsel %vm1108, %v1899, 0.0
        %1904 = vadd.xlane.f32.xlu0 %v1903
        %v1905 = vpop.xlane.xlu0 %1904
        %v1906 = vrcp.pop %v1902
        %v1907 = vrcp.pop %v1905
        %v1908 = vmul.f32 %v1897, %v1906
        %v1909 = vmul.f32 %v1899, %v1907
        %v1910 = vpack.c.bf16 %v1908, %v1908
        %v1911 = vpack.c.bf16 %v1909, %v1909
        %1912 = vrot.lane.b32.xlu0 %v1104, 40
        %v1913 = vpop.permute.xlu0 %1912
        %v1915 = vsel %vm1108, %v1910, 0
        %v1918 = vsel %vm1232, %v1913, 0
        %1920 = vmatprep.subr.bf16.mxu0 0
        %1921 = vmatpush1.bf16.msra.mxu0 %v1918
        %1922 = vmatprep.subr.bf16.mxu0 0
        %1923 = vmatpush1.bf16.msra.mxu0 0
        %1924 = vmatprep.subr.bf16.mxu0 0
        %1925 = vmatpush1.bf16.msra.mxu0 0
        %1926 = vmatprep.subr.bf16.mxu0 0
        %1927 = vmatpush1.bf16.msra.mxu0 0
        %1928 = vmatprep.subr.bf16.mxu0 0
        %1929 = vmatpush1.bf16.msra.mxu0 0
        %1930 = vmatprep.subr.bf16.mxu0 0
        %1931 = vmatpush1.bf16.msra.mxu0 0
        %1932 = vmatprep.subr.bf16.mxu0 0
        %1933 = vmatpush1.bf16.msra.mxu0 0
        %1934 = vmatprep.subr.bf16.mxu0 0
        %1935 = vmatpush1.bf16.msra.mxu0 0
        %1936 = vmatprep.subr.bf16.mxu0 0
        %1937 = vmatpush1.bf16.msra.mxu0 0
        %1938 = vmatprep.subr.bf16.mxu0 0
        %1939 = vmatpush1.bf16.msra.mxu0 0
        %1940 = vmatprep.subr.bf16.mxu0 0
        %1941 = vmatpush1.bf16.msra.mxu0 0
        %1942 = vmatprep.subr.bf16.mxu0 0
        %1943 = vmatpush1.bf16.msra.mxu0 0
        %1944 = vmatprep.subr.bf16.mxu0 0
        %1945 = vmatpush1.bf16.msra.mxu0 0
        %1946 = vmatprep.subr.bf16.mxu0 0
        %1947 = vmatpush1.bf16.msra.mxu0 0
        %1948 = vmatprep.subr.bf16.mxu0 0
        %1949 = vmatpush1.bf16.msra.mxu0 0
        %1950 = vmatprep.subr.bf16.mxu0 0
        %1951 = vmatpush1.bf16.msra.mxu0 0
        %1952 = vmatprep.mubr.bf16.mxu0 0
        %1953 = vmatmul.mubr.bf16.gmra.mrb[0].mxu0 %v1915
        %v1954 = vpop.f32.mrb[0].mxu0
        %v1955 = vadd.f32 0.0, %v1954
        %v1956 = vpop.f32.mrb[0].mxu0
        %v1957 = vpop.f32.mrb[0].mxu0
        %v1958 = vpop.f32.mrb[0].mxu0
        %1959 = vdwg.mxu0
        %1960 = vrot.lane.b32.xlu0 %v1105, 40
        %v1961 = vpop.permute.xlu0 %1960
        %v1963 = vsel %vm1108, %v1911, 0
        %v1966 = vsel %vm1232, %v1961, 0
        %1968 = vmatprep.subr.bf16.mxu0 0
        %1969 = vmatpush1.bf16.msra.mxu0 %v1966
        %1970 = vmatprep.subr.bf16.mxu0 0
        %1971 = vmatpush1.bf16.msra.mxu0 0
        %1972 = vmatprep.subr.bf16.mxu0 0
        %1973 = vmatpush1.bf16.msra.mxu0 0
        %1974 = vmatprep.subr.bf16.mxu0 0
        %1975 = vmatpush1.bf16.msra.mxu0 0
        %1976 = vmatprep.subr.bf16.mxu0 0
        %1977 = vmatpush1.bf16.msra.mxu0 0
        %1978 = vmatprep.subr.bf16.mxu0 0
        %1979 = vmatpush1.bf16.msra.mxu0 0
        %1980 = vmatprep.subr.bf16.mxu0 0
        %1981 = vmatpush1.bf16.msra.mxu0 0
        %1982 = vmatprep.subr.bf16.mxu0 0
        %1983 = vmatpush1.bf16.msra.mxu0 0
        %1984 = vmatprep.subr.bf16.mxu0 0
        %1985 = vmatpush1.bf16.msra.mxu0 0
        %1986 = vmatprep.subr.bf16.mxu0 0
        %1987 = vmatpush1.bf16.msra.mxu0 0
        %1988 = vmatprep.subr.bf16.mxu0 0
        %1989 = vmatpush1.bf16.msra.mxu0 0
        %1990 = vmatprep.subr.bf16.mxu0 0
        %1991 = vmatpush1.bf16.msra.mxu0 0
        %1992 = vmatprep.subr.bf16.mxu0 0
        %1993 = vmatpush1.bf16.msra.mxu0 0
        %1994 = vmatprep.subr.bf16.mxu0 0
        %1995 = vmatpush1.bf16.msra.mxu0 0
        %1996 = vmatprep.subr.bf16.mxu0 0
        %1997 = vmatpush1.bf16.msra.mxu0 0
        %1998 = vmatprep.subr.bf16.mxu0 0
        %1999 = vmatpush1.bf16.msra.mxu0 0
        %2000 = vmatprep.mubr.bf16.mxu0 0
        %2001 = vmatmul.mubr.bf16.gmra.mrb[0].mxu0 %v1963
        %v2002 = vpop.f32.mrb[0].mxu0
        %v2003 = vadd.f32 0.0, %v2002
        %v2004 = vpop.f32.mrb[0].mxu0
        %v2005 = vpop.f32.mrb[0].mxu0
        %v2006 = vpop.f32.mrb[0].mxu0
        %2007 = vdwg.mxu0
        %2010 = vrot.lane.b32.xlu0 %v1955, 24
        %v2011 = vpop.permute.xlu0 %2010
        %2012 = vrot.lane.b32.xlu0 %v2003, 24
        %v2013 = vpop.permute.xlu0 %2012
        %vm2016 = vcmask 261312
        %2017 = vst.msk [vmem:[#allocation3] sm:$0xff] %vm2016, %v2011
        %2018 = vst.msk [vmem:[#allocation3 + $0x8] sm:$0xff] %vm2016, %v2013
        %v2019 = vld [vmem:[#allocation3] sm:$0xff]
        %v2020 = vld [vmem:[#allocation3 + $0x8] sm:$0xff]
        %v2021 = vpack.c.bf16 %v2020, %v2019
        %v2022 = vld [vmem:[%s962] sm:$0xf]
        %v2023 = vld [vmem:[%s962 + $0x4] sm:$0xf]
        %v2024 = vld [vmem:[%s962 + $0x8] sm:$0xf]
        %v2025 = vld [vmem:[%s962 + $0xc] sm:$0xf]
        %v2026 = vld [vmem:[%s965] sm:$0x1]
        %v2028 = vlaneseq
        %v2029 = vshrl.u32 %v2028, 7
        %v2030 = vsub.s32 0, %v2029
        %v2031 = vrot.slane %v2026, %v2030
        %v2037 = vunpack.c.l.b16 %v2022
        %v2038 = vunpack.c.l.b16 %v2023
        %v2039 = vunpack.c.l.b16 %v2024
        %v2040 = vunpack.c.l.b16 %v2025
        %v2041 = vpack.c.b16 %v2038, %v2037
        %v2042 = vpack.c.b16 %v2040, %v2039
        %v2046 = vsel %vm1055, %v2021, 0
        %2048 = vmatprep.subr.bf16.mxu0 0
        %2049 = vmatpush1.bf16.msra.mxu0 %v2041
        %2050 = vmatprep.subr.bf16.mxu0 0
        %2051 = vmatpush1.bf16.msra.mxu0 %v2042
        %2052 = vmatprep.subr.bf16.mxu0 0
        %2053 = vmatpush1.bf16.msra.mxu0 0
        %2054 = vmatprep.subr.bf16.mxu0 0
        %2055 = vmatpush1.bf16.msra.mxu0 0
        %2056 = vmatprep.subr.bf16.mxu0 0
        %2057 = vmatpush1.bf16.msra.mxu0 0
        %2058 = vmatprep.subr.bf16.mxu0 0
        %2059 = vmatpush1.bf16.msra.mxu0 0
        %2060 = vmatprep.subr.bf16.mxu0 0
        %2061 = vmatpush1.bf16.msra.mxu0 0
        %2062 = vmatprep.subr.bf16.mxu0 0
        %2063 = vmatpush1.bf16.msra.mxu0 0
        %2064 = vmatprep.subr.bf16.mxu0 0
        %2065 = vmatpush1.bf16.msra.mxu0 0
        %2066 = vmatprep.subr.bf16.mxu0 0
        %2067 = vmatpush1.bf16.msra.mxu0 0
        %2068 = vmatprep.subr.bf16.mxu0 0
        %2069 = vmatpush1.bf16.msra.mxu0 0
        %2070 = vmatprep.subr.bf16.mxu0 0
        %2071 = vmatpush1.bf16.msra.mxu0 0
        %2072 = vmatprep.subr.bf16.mxu0 0
        %2073 = vmatpush1.bf16.msra.mxu0 0
        %2074 = vmatprep.subr.bf16.mxu0 0
        %2075 = vmatpush1.bf16.msra.mxu0 0
        %2076 = vmatprep.subr.bf16.mxu0 0
        %2077 = vmatpush1.bf16.msra.mxu0 0
        %2078 = vmatprep.subr.bf16.mxu0 0
        %2079 = vmatpush1.bf16.msra.mxu0 0
        %2080 = vmatprep.mubr.bf16.mxu0 0
        %2081 = vmatmul.mubr.bf16.gmra.mrb[0].mxu0 %v2046
        %v2082 = vpop.f32.mrb[0].mxu0
        %v2083 = vadd.f32 %v2031, %v2082
        %v2084 = vpop.f32.mrb[0].mxu0
        %v2085 = vpop.f32.mrb[0].mxu0
        %v2086 = vadd.f32 %v2031, %v2085
        %v2087 = vpop.f32.mrb[0].mxu0
        %2088 = vdwg.mxu0
        %v2089 = vadd.f32 %v1029, %v2083
        %v2090 = vadd.f32 %v1030, %v2086
        %v2091 = vld [vmem:[%s1003] sm:$0x1]
        %v2092 = vld [vmem:[%s1006] sm:$0x1]
        %v2093 = vsel %vm1055, %v2089, 0.0
        %2094 = vadd.xlane.f32.xlu0 %v2093
        %v2095 = vpop.xlane.xlu0 %2094
        %v2096 = vsel %vm1055, %v2090, 0.0
        %2097 = vadd.xlane.f32.xlu0 %v2096
        %v2098 = vpop.xlane.xlu0 %2097
        %v2099 = vrcp.pop 32.0
        %v2100 = vmul.f32 %v2095, %v2099
        %v2101 = vmul.f32 %v2098, %v2099
        %v2102 = vsub.f32 %v2089, %v2100
        %v2103 = vsub.f32 %v2090, %v2101
        %v2104 = vmul.f32 %v2102, %v2102
        %v2105 = vmul.f32 %v2103, %v2103
        %v2106 = vsel %vm1055, %v2104, 0.0
        %2107 = vadd.xlane.f32.xlu0 %v2106
        %v2108 = vpop.xlane.xlu0 %2107
        %v2109 = vsel %vm1055, %v2105, 0.0
        %2110 = vadd.xlane.f32.xlu0 %v2109
        %v2111 = vpop.xlane.xlu0 %2110
        %v2112 = vmul.f32 %v2108, %v2099
        %v2113 = vmul.f32 %v2111, %v2099
        %v2114 = vadd.f32 %v2112, 1e-05
        %v2115 = vadd.f32 %v2113, 1e-05
        %v2116 = vrsqrt.pop %v2114
        %v2117 = vrsqrt.pop %v2115
        %v2118 = vmul.f32 %v2102, %v2116
        %v2119 = vmul.f32 %v2103, %v2117
        %v2121 = vlaneseq
        %v2122 = vshrl.u32 %v2121, 7
        %v2123 = vsub.s32 0, %v2122
        %v2124 = vrot.slane %v2091, %v2123
        %v2126 = vmul.f32 %v2118, %v2124
        %v2127 = vmul.f32 %v2119, %v2124
        %v2129 = vlaneseq
        %v2130 = vshrl.u32 %v2129, 7
        %v2131 = vsub.s32 0, %v2130
        %v2132 = vrot.slane %v2092, %v2131
        %v2134 = vadd.f32 %v2126, %v2132
        %v2135 = vadd.f32 %v2127, %v2132
        %v2136 = vpack.c.bf16 %v2135, %v2134
        %v2137 = vld [vmem:[%s970] sm:$0xf]
        %v2138 = vld [vmem:[%s970 + $0x4] sm:$0xf]
        %v2139 = vld [vmem:[%s970 + $0x8] sm:$0xf]
        %v2140 = vld [vmem:[%s970 + $0xc] sm:$0xf]
        %v2141 = vld [vmem:[%s973] sm:$0x1]
        %v2143 = vlaneseq
        %v2144 = vshrl.u32 %v2143, 7
        %v2145 = vsub.s32 0, %v2144
        %v2146 = vrot.slane %v2141, %v2145
        %v2152 = vunpack.c.l.b16 %v2137
        %v2153 = vunpack.c.l.b16 %v2138
        %v2154 = vunpack.c.l.b16 %v2139
        %v2155 = vunpack.c.l.b16 %v2140
        %v2156 = vpack.c.b16 %v2153, %v2152
        %v2157 = vpack.c.b16 %v2155, %v2154
        %v2161 = vsel %vm1055, %v2136, 0
        %2163 = vmatprep.subr.bf16.mxu0 0
        %2164 = vmatpush1.bf16.msra.mxu0 %v2156
        %2165 = vmatprep.subr.bf16.mxu0 0
        %2166 = vmatpush1.bf16.msra.mxu0 %v2157
        %2167 = vmatprep.subr.bf16.mxu0 0
        %2168 = vmatpush1.bf16.msra.mxu0 0
        %2169 = vmatprep.subr.bf16.mxu0 0
        %2170 = vmatpush1.bf16.msra.mxu0 0
        %2171 = vmatprep.subr.bf16.mxu0 0
        %2172 = vmatpush1.bf16.msra.mxu0 0
        %2173 = vmatprep.subr.bf16.mxu0 0
        %2174 = vmatpush1.bf16.msra.mxu0 0
        %2175 = vmatprep.subr.bf16.mxu0 0
        %2176 = vmatpush1.bf16.msra.mxu0 0
        %2177 = vmatprep.subr.bf16.mxu0 0
        %2178 = vmatpush1.bf16.msra.mxu0 0
        %2179 = vmatprep.subr.bf16.mxu0 0
        %2180 = vmatpush1.bf16.msra.mxu0 0
        %2181 = vmatprep.subr.bf16.mxu0 0
        %2182 = vmatpush1.bf16.msra.mxu0 0
        %2183 = vmatprep.subr.bf16.mxu0 0
        %2184 = vmatpush1.bf16.msra.mxu0 0
        %2185 = vmatprep.subr.bf16.mxu0 0
        %2186 = vmatpush1.bf16.msra.mxu0 0
        %2187 = vmatprep.subr.bf16.mxu0 0
        %2188 = vmatpush1.bf16.msra.mxu0 0
        %2189 = vmatprep.subr.bf16.mxu0 0
        %2190 = vmatpush1.bf16.msra.mxu0 0
        %2191 = vmatprep.subr.bf16.mxu0 0
        %2192 = vmatpush1.bf16.msra.mxu0 0
        %2193 = vmatprep.subr.bf16.mxu0 0
        %2194 = vmatpush1.bf16.msra.mxu0 0
        %2195 = vmatprep.mubr.bf16.mxu0 0
        %2196 = vmatmul.mubr.bf16.gmra.mrb[0].mxu0 %v2161
        %v2197 = vpop.f32.mrb[0].mxu0
        %v2198 = vadd.f32 %v2146, %v2197
        %v2199 = vpop.f32.mrb[0].mxu0
        %v2200 = vpop.f32.mrb[0].mxu0
        %v2201 = vadd.f32 %v2146, %v2200
        %v2202 = vpop.f32.mrb[0].mxu0
        %2203 = vdwg.mxu0
        %v2204 = vld [vmem:[#allocation8] sm:$0xf]
        %v2205 = vld [vmem:[#allocation8 + $0x4] sm:$0xf]
        %v2206 = vld [vmem:[%s978] sm:$0xf]
        %v2207 = vld [vmem:[%s978 + $0x4] sm:$0xf]
        %v2208 = vld [vmem:[%s978 + $0x8] sm:$0xf]
        %v2209 = vld [vmem:[%s978 + $0xc] sm:$0xf]
        %v2210 = vld [vmem:[%s981] sm:$0x1]
        %v2212 = vlaneseq
        %v2213 = vshrl.u32 %v2212, 7
        %v2214 = vsub.s32 0, %v2213
        %v2215 = vrot.slane %v2210, %v2214
        %v2219 = vunpack.c.l.b16 %v2204
        %v2220 = vunpack.c.l.b16 %v2205
        %v2221 = vpack.c.b16 %v2220, %v2219
        %v2226 = vunpack.c.l.b16 %v2206
        %v2227 = vunpack.c.l.b16 %v2207
        %v2228 = vunpack.c.l.b16 %v2208
        %v2229 = vunpack.c.l.b16 %v2209
        %v2230 = vpack.c.b16 %v2227, %v2226
        %v2231 = vpack.c.b16 %v2229, %v2228
        %v2235 = vsel %vm1055, %v2221, 0
        %2237 = vmatprep.subr.bf16.mxu0 0
        %2238 = vmatpush1.bf16.msra.mxu0 %v2230
        %2239 = vmatprep.subr.bf16.mxu0 0
        %2240 = vmatpush1.bf16.msra.mxu0 %v2231
        %2241 = vmatprep.subr.bf16.mxu0 0
        %2242 = vmatpush1.bf16.msra.mxu0 0
        %2243 = vmatprep.subr.bf16.mxu0 0
        %2244 = vmatpush1.bf16.msra.mxu0 0
        %2245 = vmatprep.subr.bf16.mxu0 0
        %2246 = vmatpush1.bf16.msra.mxu0 0
        %2247 = vmatprep.subr.bf16.mxu0 0
        %2248 = vmatpush1.bf16.msra.mxu0 0
        %2249 = vmatprep.subr.bf16.mxu0 0
        %2250 = vmatpush1.bf16.msra.mxu0 0
        %2251 = vmatprep.subr.bf16.mxu0 0
        %2252 = vmatpush1.bf16.msra.mxu0 0
        %2253 = vmatprep.subr.bf16.mxu0 0
        %2254 = vmatpush1.bf16.msra.mxu0 0
        %2255 = vmatprep.subr.bf16.mxu0 0
        %2256 = vmatpush1.bf16.msra.mxu0 0
        %2257 = vmatprep.subr.bf16.mxu0 0
        %2258 = vmatpush1.bf16.msra.mxu0 0
        %2259 = vmatprep.subr.bf16.mxu0 0
        %2260 = vmatpush1.bf16.msra.mxu0 0
        %2261 = vmatprep.subr.bf16.mxu0 0
        %2262 = vmatpush1.bf16.msra.mxu0 0
        %2263 = vmatprep.subr.bf16.mxu0 0
        %2264 = vmatpush1.bf16.msra.mxu0 0
        %2265 = vmatprep.subr.bf16.mxu0 0
        %2266 = vmatpush1.bf16.msra.mxu0 0
        %2267 = vmatprep.subr.bf16.mxu0 0
        %2268 = vmatpush1.bf16.msra.mxu0 0
        %2269 = vmatprep.mubr.bf16.mxu0 0
        %2270 = vmatmul.mubr.bf16.gmra.mrb[0].mxu0 %v2235
        %v2271 = vpop.f32.mrb[0].mxu0
        %v2272 = vadd.f32 %v2215, %v2271
        %v2273 = vpop.f32.mrb[0].mxu0
        %v2274 = vpop.f32.mrb[0].mxu0
        %v2275 = vadd.f32 %v2215, %v2274
        %v2276 = vpop.f32.mrb[0].mxu0
        %2277 = vdwg.mxu0
        %v2278 = vpack.c.bf16 %v2201, %v2198
        %v2280 = vunpack.c.l.b16 %v2278
        %v2281 = vunpack.c.h.b16 %v2278
        %v2282 = vpack.c.b16 %v2280, %v2280
        %v2283 = vpack.c.b16 %v2281, %v2281
        %v2284 = vpack.c.bf16 %v2275, %v2272
        %v2286 = vunpack.c.l.b16 %v2284
        %v2287 = vunpack.c.h.b16 %v2284
        %v2288 = vpack.c.b16 %v2286, %v2286
        %v2289 = vpack.c.b16 %v2287, %v2287
        %v2291 = vsel %vm1108, %v2282, 0
        %v2294 = vsel %vm1108, %v2288, 0
        %2296 = vmatprep.subr.bf16.mxu0 0
        %2297 = vmatpush1.bf16.xpose.msra.mxu0 %v2294
        %2298 = vmatprep.subr.bf16.mxu0 0
        %2299 = vmatpush1.bf16.xpose.msra.mxu0 0
        %2300 = vmatprep.subr.bf16.mxu0 0
        %2301 = vmatpush1.bf16.xpose.msra.mxu0 0
        %2302 = vmatprep.subr.bf16.mxu0 0
        %2303 = vmatpush1.bf16.xpose.msra.mxu0 0
        %2304 = vmatprep.subr.bf16.mxu0 0
        %2305 = vmatpush1.bf16.xpose.msra.mxu0 0
        %2306 = vmatprep.subr.bf16.mxu0 0
        %2307 = vmatpush1.bf16.xpose.msra.mxu0 0
        %2308 = vmatprep.subr.bf16.mxu0 0
        %2309 = vmatpush1.bf16.xpose.msra.mxu0 0
        %2310 = vmatprep.subr.bf16.mxu0 0
        %2311 = vmatpush1.bf16.xpose.msra.mxu0 0
        %2312 = vmatprep.subr.bf16.mxu0 0
        %2313 = vmatpush1.bf16.xpose.msra.mxu0 0
        %2314 = vmatprep.subr.bf16.mxu0 0
        %2315 = vmatpush1.bf16.xpose.msra.mxu0 0
        %2316 = vmatprep.subr.bf16.mxu0 0
        %2317 = vmatpush1.bf16.xpose.msra.mxu0 0
        %2318 = vmatprep.subr.bf16.mxu0 0
        %2319 = vmatpush1.bf16.xpose.msra.mxu0 0
        %2320 = vmatprep.subr.bf16.mxu0 0
        %2321 = vmatpush1.bf16.xpose.msra.mxu0 0
        %2322 = vmatprep.subr.bf16.mxu0 0
        %2323 = vmatpush1.bf16.xpose.msra.mxu0 0
        %2324 = vmatprep.subr.bf16.mxu0 0
        %2325 = vmatpush1.bf16.xpose.msra.mxu0 0
        %2326 = vmatprep.subr.bf16.mxu0 0
        %2327 = vmatpush1.bf16.xpose.msra.mxu0 0
        %2328 = vmatprep.mubr.bf16.mxu0 0
        %2329 = vmatmul.mubr.bf16.gmra.mrb[0].mxu0 %v2291
        %v2330 = vpop.f32.mrb[0].mxu0
        %v2331 = vadd.f32 0.0, %v2330
        %v2332 = vpop.f32.mrb[0].mxu0
        %v2333 = vpop.f32.mrb[0].mxu0
        %v2334 = vpop.f32.mrb[0].mxu0
        %2335 = vdwg.mxu0
        %v2337 = vsel %vm1108, %v2283, 0
        %v2340 = vsel %vm1108, %v2289, 0
        %2342 = vmatprep.subr.bf16.mxu0 0
        %2343 = vmatpush1.bf16.xpose.msra.mxu0 %v2340
        %2344 = vmatprep.subr.bf16.mxu0 0
        %2345 = vmatpush1.bf16.xpose.msra.mxu0 0
        %2346 = vmatprep.subr.bf16.mxu0 0
        %2347 = vmatpush1.bf16.xpose.msra.mxu0 0
        %2348 = vmatprep.subr.bf16.mxu0 0
        %2349 = vmatpush1.bf16.xpose.msra.mxu0 0
        %2350 = vmatprep.subr.bf16.mxu0 0
        %2351 = vmatpush1.bf16.xpose.msra.mxu0 0
        %2352 = vmatprep.subr.bf16.mxu0 0
        %2353 = vmatpush1.bf16.xpose.msra.mxu0 0
        %2354 = vmatprep.subr.bf16.mxu0 0
        %2355 = vmatpush1.bf16.xpose.msra.mxu0 0
        %2356 = vmatprep.subr.bf16.mxu0 0
        %2357 = vmatpush1.bf16.xpose.msra.mxu0 0
        %2358 = vmatprep.subr.bf16.mxu0 0
        %2359 = vmatpush1.bf16.xpose.msra.mxu0 0
        %2360 = vmatprep.subr.bf16.mxu0 0
        %2361 = vmatpush1.bf16.xpose.msra.mxu0 0
        %2362 = vmatprep.subr.bf16.mxu0 0
        %2363 = vmatpush1.bf16.xpose.msra.mxu0 0
        %2364 = vmatprep.subr.bf16.mxu0 0
        %2365 = vmatpush1.bf16.xpose.msra.mxu0 0
        %2366 = vmatprep.subr.bf16.mxu0 0
        %2367 = vmatpush1.bf16.xpose.msra.mxu0 0
        %2368 = vmatprep.subr.bf16.mxu0 0
        %2369 = vmatpush1.bf16.xpose.msra.mxu0 0
        %2370 = vmatprep.subr.bf16.mxu0 0
        %2371 = vmatpush1.bf16.xpose.msra.mxu0 0
        %2372 = vmatprep.subr.bf16.mxu0 0
        %2373 = vmatpush1.bf16.xpose.msra.mxu0 0
        %2374 = vmatprep.mubr.bf16.mxu0 0
        %2375 = vmatmul.mubr.bf16.gmra.mrb[0].mxu0 %v2337
        %v2376 = vpop.f32.mrb[0].mxu0
        %v2377 = vadd.f32 0.0, %v2376
        %v2378 = vpop.f32.mrb[0].mxu0
        %v2379 = vpop.f32.mrb[0].mxu0
        %v2380 = vpop.f32.mrb[0].mxu0
        %2381 = vdwg.mxu0
        %v2382 = vsel %vm1108, %v2331, -inf
        %2383 = vmax.xlane.f32.xlu0 %v2382
        %v2384 = vpop.xlane.xlu0 %2383
        %v2385 = vsel %vm1108, %v2377, -inf
        %2386 = vmax.xlane.f32.xlu0 %v2385
        %v2387 = vpop.xlane.xlu0 %2386
        %v2388 = vsub.f32 %v2331, %v2384
        %v2389 = vsub.f32 %v2377, %v2387
        %v2390 = vmul.f32 %v2388, 1.442695
        %v2391 = vpow.pop %v2390
        %v2392 = vmul.f32 %v2389, 1.442695
        %v2393 = vpow.pop %v2392
        %v2394 = vsel %vm1108, %v2391, 0.0
        %2395 = vadd.xlane.f32.xlu0 %v2394
        %v2396 = vpop.xlane.xlu0 %2395
        %v2397 = vsel %vm1108, %v2393, 0.0
        %2398 = vadd.xlane.f32.xlu0 %v2397
        %v2399 = vpop.xlane.xlu0 %2398
        %v2400 = vrcp.pop %v2396
        %v2401 = vrcp.pop %v2399
        %v2402 = vmul.f32 %v2391, %v2400
        %v2403 = vmul.f32 %v2393, %v2401
        %v2404 = vpack.c.bf16 %v2402, %v2402
        %v2405 = vpack.c.bf16 %v2403, %v2403
        %2406 = vrot.lane.b32.xlu0 %v2288, 96
        %v2407 = vpop.permute.xlu0 %2406
        %v2409 = vsel %vm1108, %v2404, 0
        %v2412 = vsel %vm1232, %v2407, 0
        %2414 = vmatprep.subr.bf16.mxu0 0
        %2415 = vmatpush1.bf16.msra.mxu0 %v2412
        %2416 = vmatprep.subr.bf16.mxu0 0
        %2417 = vmatpush1.bf16.msra.mxu0 0
        %2418 = vmatprep.subr.bf16.mxu0 0
        %2419 = vmatpush1.bf16.msra.mxu0 0
        %2420 = vmatprep.subr.bf16.mxu0 0
        %2421 = vmatpush1.bf16.msra.mxu0 0
        %2422 = vmatprep.subr.bf16.mxu0 0
        %2423 = vmatpush1.bf16.msra.mxu0 0
        %2424 = vmatprep.subr.bf16.mxu0 0
        %2425 = vmatpush1.bf16.msra.mxu0 0
        %2426 = vmatprep.subr.bf16.mxu0 0
        %2427 = vmatpush1.bf16.msra.mxu0 0
        %2428 = vmatprep.subr.bf16.mxu0 0
        %2429 = vmatpush1.bf16.msra.mxu0 0
        %2430 = vmatprep.subr.bf16.mxu0 0
        %2431 = vmatpush1.bf16.msra.mxu0 0
        %2432 = vmatprep.subr.bf16.mxu0 0
        %2433 = vmatpush1.bf16.msra.mxu0 0
        %2434 = vmatprep.subr.bf16.mxu0 0
        %2435 = vmatpush1.bf16.msra.mxu0 0
        %2436 = vmatprep.subr.bf16.mxu0 0
        %2437 = vmatpush1.bf16.msra.mxu0 0
        %2438 = vmatprep.subr.bf16.mxu0 0
        %2439 = vmatpush1.bf16.msra.mxu0 0
        %2440 = vmatprep.subr.bf16.mxu0 0
        %2441 = vmatpush1.bf16.msra.mxu0 0
        %2442 = vmatprep.subr.bf16.mxu0 0
        %2443 = vmatpush1.bf16.msra.mxu0 0
        %2444 = vmatprep.subr.bf16.mxu0 0
        %2445 = vmatpush1.bf16.msra.mxu0 0
        %2446 = vmatprep.mubr.bf16.mxu0 0
        %2447 = vmatmul.mubr.bf16.gmra.mrb[0].mxu0 %v2409
        %v2448 = vpop.f32.mrb[0].mxu0
        %v2449 = vadd.f32 0.0, %v2448
        %v2450 = vpop.f32.mrb[0].mxu0
        %v2451 = vpop.f32.mrb[0].mxu0
        %v2452 = vpop.f32.mrb[0].mxu0
        %2453 = vdwg.mxu0
        %2454 = vrot.lane.b32.xlu0 %v2289, 96
        %v2455 = vpop.permute.xlu0 %2454
        %v2457 = vsel %vm1108, %v2405, 0
        %v2460 = vsel %vm1232, %v2455, 0
        %2462 = vmatprep.subr.bf16.mxu0 0
        %2463 = vmatpush1.bf16.msra.mxu0 %v2460
        %2464 = vmatprep.subr.bf16.mxu0 0
        %2465 = vmatpush1.bf16.msra.mxu0 0
        %2466 = vmatprep.subr.bf16.mxu0 0
        %2467 = vmatpush1.bf16.msra.mxu0 0
        %2468 = vmatprep.subr.bf16.mxu0 0
        %2469 = vmatpush1.bf16.msra.mxu0 0
        %2470 = vmatprep.subr.bf16.mxu0 0
        %2471 = vmatpush1.bf16.msra.mxu0 0
        %2472 = vmatprep.subr.bf16.mxu0 0
        %2473 = vmatpush1.bf16.msra.mxu0 0
        %2474 = vmatprep.subr.bf16.mxu0 0
        %2475 = vmatpush1.bf16.msra.mxu0 0
        %2476 = vmatprep.subr.bf16.mxu0 0
        %2477 = vmatpush1.bf16.msra.mxu0 0
        %2478 = vmatprep.subr.bf16.mxu0 0
        %2479 = vmatpush1.bf16.msra.mxu0 0
        %2480 = vmatprep.subr.bf16.mxu0 0
        %2481 = vmatpush1.bf16.msra.mxu0 0
        %2482 = vmatprep.subr.bf16.mxu0 0
        %2483 = vmatpush1.bf16.msra.mxu0 0
        %2484 = vmatprep.subr.bf16.mxu0 0
        %2485 = vmatpush1.bf16.msra.mxu0 0
        %2486 = vmatprep.subr.bf16.mxu0 0
        %2487 = vmatpush1.bf16.msra.mxu0 0
        %2488 = vmatprep.subr.bf16.mxu0 0
        %2489 = vmatpush1.bf16.msra.mxu0 0
        %2490 = vmatprep.subr.bf16.mxu0 0
        %2491 = vmatpush1.bf16.msra.mxu0 0
        %2492 = vmatprep.subr.bf16.mxu0 0
        %2493 = vmatpush1.bf16.msra.mxu0 0
        %2494 = vmatprep.mubr.bf16.mxu0 0
        %2495 = vmatmul.mubr.bf16.gmra.mrb[0].mxu0 %v2457
        %v2496 = vpop.f32.mrb[0].mxu0
        %v2497 = vadd.f32 0.0, %v2496
        %v2498 = vpop.f32.mrb[0].mxu0
        %v2499 = vpop.f32.mrb[0].mxu0
        %v2500 = vpop.f32.mrb[0].mxu0
        %2501 = vdwg.mxu0
        %2502 = vst.msk [vmem:[#allocation3] sm:$0xff] %vm1108, %v2449
        %2503 = vst.msk [vmem:[#allocation3 + $0x8] sm:$0xff] %vm1108, %v2497
        %2504 = vrot.lane.b32.xlu0 %v2282, 120
        %v2505 = vpop.permute.xlu0 %2504
        %2506 = vrot.lane.b32.xlu0 %v2288, 120
        %v2507 = vpop.permute.xlu0 %2506
        %v2509 = vsel %vm1108, %v2505, 0
        %v2512 = vsel %vm1108, %v2507, 0
        %2514 = vmatprep.subr.bf16.mxu0 0
        %2515 = vmatpush1.bf16.xpose.msra.mxu0 %v2512
        %2516 = vmatprep.subr.bf16.mxu0 0
        %2517 = vmatpush1.bf16.xpose.msra.mxu0 0
        %2518 = vmatprep.subr.bf16.mxu0 0
        %2519 = vmatpush1.bf16.xpose.msra.mxu0 0
        %2520 = vmatprep.subr.bf16.mxu0 0
        %2521 = vmatpush1.bf16.xpose.msra.mxu0 0
        %2522 = vmatprep.subr.bf16.mxu0 0
        %2523 = vmatpush1.bf16.xpose.msra.mxu0 0
        %2524 = vmatprep.subr.bf16.mxu0 0
        %2525 = vmatpush1.bf16.xpose.msra.mxu0 0
        %2526 = vmatprep.subr.bf16.mxu0 0
        %2527 = vmatpush1.bf16.xpose.msra.mxu0 0
        %2528 = vmatprep.subr.bf16.mxu0 0
        %2529 = vmatpush1.bf16.xpose.msra.mxu0 0
        %2530 = vmatprep.subr.bf16.mxu0 0
        %2531 = vmatpush1.bf16.xpose.msra.mxu0 0
        %2532 = vmatprep.subr.bf16.mxu0 0
        %2533 = vmatpush1.bf16.xpose.msra.mxu0 0
        %2534 = vmatprep.subr.bf16.mxu0 0
        %2535 = vmatpush1.bf16.xpose.msra.mxu0 0
        %2536 = vmatprep.subr.bf16.mxu0 0
        %2537 = vmatpush1.bf16.xpose.msra.mxu0 0
        %2538 = vmatprep.subr.bf16.mxu0 0
        %2539 = vmatpush1.bf16.xpose.msra.mxu0 0
        %2540 = vmatprep.subr.bf16.mxu0 0
        %2541 = vmatpush1.bf16.xpose.msra.mxu0 0
        %2542 = vmatprep.subr.bf16.mxu0 0
        %2543 = vmatpush1.bf16.xpose.msra.mxu0 0
        %2544 = vmatprep.subr.bf16.mxu0 0
        %2545 = vmatpush1.bf16.xpose.msra.mxu0 0
        %2546 = vmatprep.mubr.bf16.mxu0 0
        %2547 = vmatmul.mubr.bf16.gmra.mrb[0].mxu0 %v2509
        %v2548 = vpop.f32.mrb[0].mxu0
        %v2549 = vadd.f32 0.0, %v2548
        %v2550 = vpop.f32.mrb[0].mxu0
        %v2551 = vpop.f32.mrb[0].mxu0
        %v2552 = vpop.f32.mrb[0].mxu0
        %2553 = vdwg.mxu0
        %2554 = vrot.lane.b32.xlu0 %v2283, 120
        %v2555 = vpop.permute.xlu0 %2554
        %2556 = vrot.lane.b32.xlu0 %v2289, 120
        %v2557 = vpop.permute.xlu0 %2556
        %v2559 = vsel %vm1108, %v2555, 0
        %v2562 = vsel %vm1108, %v2557, 0
        %2564 = vmatprep.subr.bf16.mxu0 0
        %2565 = vmatpush1.bf16.xpose.msra.mxu0 %v2562
        %2566 = vmatprep.subr.bf16.mxu0 0
        %2567 = vmatpush1.bf16.xpose.msra.mxu0 0
        %2568 = vmatprep.subr.bf16.mxu0 0
        %2569 = vmatpush1.bf16.xpose.msra.mxu0 0
        %2570 = vmatprep.subr.bf16.mxu0 0
        %2571 = vmatpush1.bf16.xpose.msra.mxu0 0
        %2572 = vmatprep.subr.bf16.mxu0 0
        %2573 = vmatpush1.bf16.xpose.msra.mxu0 0
        %2574 = vmatprep.subr.bf16.mxu0 0
        %2575 = vmatpush1.bf16.xpose.msra.mxu0 0
        %2576 = vmatprep.subr.bf16.mxu0 0
        %2577 = vmatpush1.bf16.xpose.msra.mxu0 0
        %2578 = vmatprep.subr.bf16.mxu0 0
        %2579 = vmatpush1.bf16.xpose.msra.mxu0 0
        %2580 = vmatprep.subr.bf16.mxu0 0
        %2581 = vmatpush1.bf16.xpose.msra.mxu0 0
        %2582 = vmatprep.subr.bf16.mxu0 0
        %2583 = vmatpush1.bf16.xpose.msra.mxu0 0
        %2584 = vmatprep.subr.bf16.mxu0 0
        %2585 = vmatpush1.bf16.xpose.msra.mxu0 0
        %2586 = vmatprep.subr.bf16.mxu0 0
        %2587 = vmatpush1.bf16.xpose.msra.mxu0 0
        %2588 = vmatprep.subr.bf16.mxu0 0
        %2589 = vmatpush1.bf16.xpose.msra.mxu0 0
        %2590 = vmatprep.subr.bf16.mxu0 0
        %2591 = vmatpush1.bf16.xpose.msra.mxu0 0
        %2592 = vmatprep.subr.bf16.mxu0 0
        %2593 = vmatpush1.bf16.xpose.msra.mxu0 0
        %2594 = vmatprep.subr.bf16.mxu0 0
        %2595 = vmatpush1.bf16.xpose.msra.mxu0 0
        %2596 = vmatprep.mubr.bf16.mxu0 0
        %2597 = vmatmul.mubr.bf16.gmra.mrb[0].mxu0 %v2559
        %v2598 = vpop.f32.mrb[0].mxu0
        %v2599 = vadd.f32 0.0, %v2598
        %v2600 = vpop.f32.mrb[0].mxu0
        %v2601 = vpop.f32.mrb[0].mxu0
        %v2602 = vpop.f32.mrb[0].mxu0
        %2603 = vdwg.mxu0
        %v2604 = vsel %vm1108, %v2549, -inf
        %2605 = vmax.xlane.f32.xlu0 %v2604
        %v2606 = vpop.xlane.xlu0 %2605
        %v2607 = vsel %vm1108, %v2599, -inf
        %2608 = vmax.xlane.f32.xlu0 %v2607
        %v2609 = vpop.xlane.xlu0 %2608
        %v2610 = vsub.f32 %v2549, %v2606
        %v2611 = vsub.f32 %v2599, %v2609
        %v2612 = vmul.f32 %v2610, 1.442695
        %v2613 = vpow.pop %v2612
        %v2614 = vmul.f32 %v2611, 1.442695
        %v2615 = vpow.pop %v2614
        %v2616 = vsel %vm1108, %v2613, 0.0
        %2617 = vadd.xlane.f32.xlu0 %v2616
        %v2618 = vpop.xlane.xlu0 %2617
        %v2619 = vsel %vm1108, %v2615, 0.0
        %2620 = vadd.xlane.f32.xlu0 %v2619
        %v2621 = vpop.xlane.xlu0 %2620
        %v2622 = vrcp.pop %v2618
        %v2623 = vrcp.pop %v2621
        %v2624 = vmul.f32 %v2613, %v2622
        %v2625 = vmul.f32 %v2615, %v2623
        %v2626 = vpack.c.bf16 %v2624, %v2624
        %v2627 = vpack.c.bf16 %v2625, %v2625
        %2628 = vrot.lane.b32.xlu0 %v2288, 88
        %v2629 = vpop.permute.xlu0 %2628
        %v2631 = vsel %vm1108, %v2626, 0
        %v2634 = vsel %vm1232, %v2629, 0
        %2636 = vmatprep.subr.bf16.mxu0 0
        %2637 = vmatpush1.bf16.msra.mxu0 %v2634
        %2638 = vmatprep.subr.bf16.mxu0 0
        %2639 = vmatpush1.bf16.msra.mxu0 0
        %2640 = vmatprep.subr.bf16.mxu0 0
        %2641 = vmatpush1.bf16.msra.mxu0 0
        %2642 = vmatprep.subr.bf16.mxu0 0
        %2643 = vmatpush1.bf16.msra.mxu0 0
        %2644 = vmatprep.subr.bf16.mxu0 0
        %2645 = vmatpush1.bf16.msra.mxu0 0
        %2646 = vmatprep.subr.bf16.mxu0 0
        %2647 = vmatpush1.bf16.msra.mxu0 0
        %2648 = vmatprep.subr.bf16.mxu0 0
        %2649 = vmatpush1.bf16.msra.mxu0 0
        %2650 = vmatprep.subr.bf16.mxu0 0
        %2651 = vmatpush1.bf16.msra.mxu0 0
        %2652 = vmatprep.subr.bf16.mxu0 0
        %2653 = vmatpush1.bf16.msra.mxu0 0
        %2654 = vmatprep.subr.bf16.mxu0 0
        %2655 = vmatpush1.bf16.msra.mxu0 0
        %2656 = vmatprep.subr.bf16.mxu0 0
        %2657 = vmatpush1.bf16.msra.mxu0 0
        %2658 = vmatprep.subr.bf16.mxu0 0
        %2659 = vmatpush1.bf16.msra.mxu0 0
        %2660 = vmatprep.subr.bf16.mxu0 0
        %2661 = vmatpush1.bf16.msra.mxu0 0
        %2662 = vmatprep.subr.bf16.mxu0 0
        %2663 = vmatpush1.bf16.msra.mxu0 0
        %2664 = vmatprep.subr.bf16.mxu0 0
        %2665 = vmatpush1.bf16.msra.mxu0 0
        %2666 = vmatprep.subr.bf16.mxu0 0
        %2667 = vmatpush1.bf16.msra.mxu0 0
        %2668 = vmatprep.mubr.bf16.mxu0 0
        %2669 = vmatmul.mubr.bf16.gmra.mrb[0].mxu0 %v2631
        %v2670 = vpop.f32.mrb[0].mxu0
        %v2671 = vadd.f32 0.0, %v2670
        %v2672 = vpop.f32.mrb[0].mxu0
        %v2673 = vpop.f32.mrb[0].mxu0
        %v2674 = vpop.f32.mrb[0].mxu0
        %2675 = vdwg.mxu0
        %2676 = vrot.lane.b32.xlu0 %v2289, 88
        %v2677 = vpop.permute.xlu0 %2676
        %v2679 = vsel %vm1108, %v2627, 0
        %v2682 = vsel %vm1232, %v2677, 0
        %2684 = vmatprep.subr.bf16.mxu0 0
        %2685 = vmatpush1.bf16.msra.mxu0 %v2682
        %2686 = vmatprep.subr.bf16.mxu0 0
        %2687 = vmatpush1.bf16.msra.mxu0 0
        %2688 = vmatprep.subr.bf16.mxu0 0
        %2689 = vmatpush1.bf16.msra.mxu0 0
        %2690 = vmatprep.subr.bf16.mxu0 0
        %2691 = vmatpush1.bf16.msra.mxu0 0
        %2692 = vmatprep.subr.bf16.mxu0 0
        %2693 = vmatpush1.bf16.msra.mxu0 0
        %2694 = vmatprep.subr.bf16.mxu0 0
        %2695 = vmatpush1.bf16.msra.mxu0 0
        %2696 = vmatprep.subr.bf16.mxu0 0
        %2697 = vmatpush1.bf16.msra.mxu0 0
        %2698 = vmatprep.subr.bf16.mxu0 0
        %2699 = vmatpush1.bf16.msra.mxu0 0
        %2700 = vmatprep.subr.bf16.mxu0 0
        %2701 = vmatpush1.bf16.msra.mxu0 0
        %2702 = vmatprep.subr.bf16.mxu0 0
        %2703 = vmatpush1.bf16.msra.mxu0 0
        %2704 = vmatprep.subr.bf16.mxu0 0
        %2705 = vmatpush1.bf16.msra.mxu0 0
        %2706 = vmatprep.subr.bf16.mxu0 0
        %2707 = vmatpush1.bf16.msra.mxu0 0
        %2708 = vmatprep.subr.bf16.mxu0 0
        %2709 = vmatpush1.bf16.msra.mxu0 0
        %2710 = vmatprep.subr.bf16.mxu0 0
        %2711 = vmatpush1.bf16.msra.mxu0 0
        %2712 = vmatprep.subr.bf16.mxu0 0
        %2713 = vmatpush1.bf16.msra.mxu0 0
        %2714 = vmatprep.subr.bf16.mxu0 0
        %2715 = vmatpush1.bf16.msra.mxu0 0
        %2716 = vmatprep.mubr.bf16.mxu0 0
        %2717 = vmatmul.mubr.bf16.gmra.mrb[0].mxu0 %v2679
        %v2718 = vpop.f32.mrb[0].mxu0
        %v2719 = vadd.f32 0.0, %v2718
        %v2720 = vpop.f32.mrb[0].mxu0
        %v2721 = vpop.f32.mrb[0].mxu0
        %v2722 = vpop.f32.mrb[0].mxu0
        %2723 = vdwg.mxu0
        %2726 = vrot.lane.b32.xlu0 %v2671, 8
        %v2727 = vpop.permute.xlu0 %2726
        %2728 = vrot.lane.b32.xlu0 %v2719, 8
        %v2729 = vpop.permute.xlu0 %2728
        %2732 = vst.msk [vmem:[#allocation3] sm:$0xff] %vm1554, %v2727
        %2733 = vst.msk [vmem:[#allocation3 + $0x8] sm:$0xff] %vm1554, %v2729
        %2734 = vrot.lane.b32.xlu0 %v2282, 112
        %v2735 = vpop.permute.xlu0 %2734
        %2736 = vrot.lane.b32.xlu0 %v2288, 112
        %v2737 = vpop.permute.xlu0 %2736
        %v2739 = vsel %vm1108, %v2735, 0
        %v2742 = vsel %vm1108, %v2737, 0
        %2744 = vmatprep.subr.bf16.mxu0 0
        %2745 = vmatpush1.bf16.xpose.msra.mxu0 %v2742
        %2746 = vmatprep.subr.bf16.mxu0 0
        %2747 = vmatpush1.bf16.xpose.msra.mxu0 0
        %2748 = vmatprep.subr.bf16.mxu0 0
        %2749 = vmatpush1.bf16.xpose.msra.mxu0 0
        %2750 = vmatprep.subr.bf16.mxu0 0
        %2751 = vmatpush1.bf16.xpose.msra.mxu0 0
        %2752 = vmatprep.subr.bf16.mxu0 0
        %2753 = vmatpush1.bf16.xpose.msra.mxu0 0
        %2754 = vmatprep.subr.bf16.mxu0 0
        %2755 = vmatpush1.bf16.xpose.msra.mxu0 0
        %2756 = vmatprep.subr.bf16.mxu0 0
        %2757 = vmatpush1.bf16.xpose.msra.mxu0 0
        %2758 = vmatprep.subr.bf16.mxu0 0
        %2759 = vmatpush1.bf16.xpose.msra.mxu0 0
        %2760 = vmatprep.subr.bf16.mxu0 0
        %2761 = vmatpush1.bf16.xpose.msra.mxu0 0
        %2762 = vmatprep.subr.bf16.mxu0 0
        %2763 = vmatpush1.bf16.xpose.msra.mxu0 0
        %2764 = vmatprep.subr.bf16.mxu0 0
        %2765 = vmatpush1.bf16.xpose.msra.mxu0 0
        %2766 = vmatprep.subr.bf16.mxu0 0
        %2767 = vmatpush1.bf16.xpose.msra.mxu0 0
        %2768 = vmatprep.subr.bf16.mxu0 0
        %2769 = vmatpush1.bf16.xpose.msra.mxu0 0
        %2770 = vmatprep.subr.bf16.mxu0 0
        %2771 = vmatpush1.bf16.xpose.msra.mxu0 0
        %2772 = vmatprep.subr.bf16.mxu0 0
        %2773 = vmatpush1.bf16.xpose.msra.mxu0 0
        %2774 = vmatprep.subr.bf16.mxu0 0
        %2775 = vmatpush1.bf16.xpose.msra.mxu0 0
        %2776 = vmatprep.mubr.bf16.mxu0 0
        %2777 = vmatmul.mubr.bf16.gmra.mrb[0].mxu0 %v2739
        %v2778 = vpop.f32.mrb[0].mxu0
        %v2779 = vadd.f32 0.0, %v2778
        %v2780 = vpop.f32.mrb[0].mxu0
        %v2781 = vpop.f32.mrb[0].mxu0
        %v2782 = vpop.f32.mrb[0].mxu0
        %2783 = vdwg.mxu0
        %2784 = vrot.lane.b32.xlu0 %v2283, 112
        %v2785 = vpop.permute.xlu0 %2784
        %2786 = vrot.lane.b32.xlu0 %v2289, 112
        %v2787 = vpop.permute.xlu0 %2786
        %v2789 = vsel %vm1108, %v2785, 0
        %v2792 = vsel %vm1108, %v2787, 0
        %2794 = vmatprep.subr.bf16.mxu0 0
        %2795 = vmatpush1.bf16.xpose.msra.mxu0 %v2792
        %2796 = vmatprep.subr.bf16.mxu0 0
        %2797 = vmatpush1.bf16.xpose.msra.mxu0 0
        %2798 = vmatprep.subr.bf16.mxu0 0
        %2799 = vmatpush1.bf16.xpose.msra.mxu0 0
        %2800 = vmatprep.subr.bf16.mxu0 0
        %2801 = vmatpush1.bf16.xpose.msra.mxu0 0
        %2802 = vmatprep.subr.bf16.mxu0 0
        %2803 = vmatpush1.bf16.xpose.msra.mxu0 0
        %2804 = vmatprep.subr.bf16.mxu0 0
        %2805 = vmatpush1.bf16.xpose.msra.mxu0 0
        %2806 = vmatprep.subr.bf16.mxu0 0
        %2807 = vmatpush1.bf16.xpose.msra.mxu0 0
        %2808 = vmatprep.subr.bf16.mxu0 0
        %2809 = vmatpush1.bf16.xpose.msra.mxu0 0
        %2810 = vmatprep.subr.bf16.mxu0 0
        %2811 = vmatpush1.bf16.xpose.msra.mxu0 0
        %2812 = vmatprep.subr.bf16.mxu0 0
        %2813 = vmatpush1.bf16.xpose.msra.mxu0 0
        %2814 = vmatprep.subr.bf16.mxu0 0
        %2815 = vmatpush1.bf16.xpose.msra.mxu0 0
        %2816 = vmatprep.subr.bf16.mxu0 0
        %2817 = vmatpush1.bf16.xpose.msra.mxu0 0
        %2818 = vmatprep.subr.bf16.mxu0 0
        %2819 = vmatpush1.bf16.xpose.msra.mxu0 0
        %2820 = vmatprep.subr.bf16.mxu0 0
        %2821 = vmatpush1.bf16.xpose.msra.mxu0 0
        %2822 = vmatprep.subr.bf16.mxu0 0
        %2823 = vmatpush1.bf16.xpose.msra.mxu0 0
        %2824 = vmatprep.subr.bf16.mxu0 0
        %2825 = vmatpush1.bf16.xpose.msra.mxu0 0
        %2826 = vmatprep.mubr.bf16.mxu0 0
        %2827 = vmatmul.mubr.bf16.gmra.mrb[0].mxu0 %v2789
        %v2828 = vpop.f32.mrb[0].mxu0
        %v2829 = vadd.f32 0.0, %v2828
        %v2830 = vpop.f32.mrb[0].mxu0
        %v2831 = vpop.f32.mrb[0].mxu0
        %v2832 = vpop.f32.mrb[0].mxu0
        %2833 = vdwg.mxu0
        %v2834 = vsel %vm1108, %v2779, -inf
        %2835 = vmax.xlane.f32.xlu0 %v2834
        %v2836 = vpop.xlane.xlu0 %2835
        %v2837 = vsel %vm1108, %v2829, -inf
        %2838 = vmax.xlane.f32.xlu0 %v2837
        %v2839 = vpop.xlane.xlu0 %2838
        %v2840 = vsub.f32 %v2779, %v2836
        %v2841 = vsub.f32 %v2829, %v2839
        %v2842 = vmul.f32 %v2840, 1.442695
        %v2843 = vpow.pop %v2842
        %v2844 = vmul.f32 %v2841, 1.442695
        %v2845 = vpow.pop %v2844
        %v2846 = vsel %vm1108, %v2843, 0.0
        %2847 = vadd.xlane.f32.xlu0 %v2846
        %v2848 = vpop.xlane.xlu0 %2847
        %v2849 = vsel %vm1108, %v2845, 0.0
        %2850 = vadd.xlane.f32.xlu0 %v2849
        %v2851 = vpop.xlane.xlu0 %2850
        %v2852 = vrcp.pop %v2848
        %v2853 = vrcp.pop %v2851
        %v2854 = vmul.f32 %v2843, %v2852
        %v2855 = vmul.f32 %v2845, %v2853
        %v2856 = vpack.c.bf16 %v2854, %v2854
        %v2857 = vpack.c.bf16 %v2855, %v2855
        %2858 = vrot.lane.b32.xlu0 %v2288, 80
        %v2859 = vpop.permute.xlu0 %2858
        %v2861 = vsel %vm1108, %v2856, 0
        %v2864 = vsel %vm1232, %v2859, 0
        %2866 = vmatprep.subr.bf16.mxu0 0
        %2867 = vmatpush1.bf16.msra.mxu0 %v2864
        %2868 = vmatprep.subr.bf16.mxu0 0
        %2869 = vmatpush1.bf16.msra.mxu0 0
        %2870 = vmatprep.subr.bf16.mxu0 0
        %2871 = vmatpush1.bf16.msra.mxu0 0
        %2872 = vmatprep.subr.bf16.mxu0 0
        %2873 = vmatpush1.bf16.msra.mxu0 0
        %2874 = vmatprep.subr.bf16.mxu0 0
        %2875 = vmatpush1.bf16.msra.mxu0 0
        %2876 = vmatprep.subr.bf16.mxu0 0
        %2877 = vmatpush1.bf16.msra.mxu0 0
        %2878 = vmatprep.subr.bf16.mxu0 0
        %2879 = vmatpush1.bf16.msra.mxu0 0
        %2880 = vmatprep.subr.bf16.mxu0 0
        %2881 = vmatpush1.bf16.msra.mxu0 0
        %2882 = vmatprep.subr.bf16.mxu0 0
        %2883 = vmatpush1.bf16.msra.mxu0 0
        %2884 = vmatprep.subr.bf16.mxu0 0
        %2885 = vmatpush1.bf16.msra.mxu0 0
        %2886 = vmatprep.subr.bf16.mxu0 0
        %2887 = vmatpush1.bf16.msra.mxu0 0
        %2888 = vmatprep.subr.bf16.mxu0 0
        %2889 = vmatpush1.bf16.msra.mxu0 0
        %2890 = vmatprep.subr.bf16.mxu0 0
        %2891 = vmatpush1.bf16.msra.mxu0 0
        %2892 = vmatprep.subr.bf16.mxu0 0
        %2893 = vmatpush1.bf16.msra.mxu0 0
        %2894 = vmatprep.subr.bf16.mxu0 0
        %2895 = vmatpush1.bf16.msra.mxu0 0
        %2896 = vmatprep.subr.bf16.mxu0 0
        %2897 = vmatpush1.bf16.msra.mxu0 0
        %2898 = vmatprep.mubr.bf16.mxu0 0
        %2899 = vmatmul.mubr.bf16.gmra.mrb[0].mxu0 %v2861
        %v2900 = vpop.f32.mrb[0].mxu0
        %v2901 = vadd.f32 0.0, %v2900
        %v2902 = vpop.f32.mrb[0].mxu0
        %v2903 = vpop.f32.mrb[0].mxu0
        %v2904 = vpop.f32.mrb[0].mxu0
        %2905 = vdwg.mxu0
        %2906 = vrot.lane.b32.xlu0 %v2289, 80
        %v2907 = vpop.permute.xlu0 %2906
        %v2909 = vsel %vm1108, %v2857, 0
        %v2912 = vsel %vm1232, %v2907, 0
        %2914 = vmatprep.subr.bf16.mxu0 0
        %2915 = vmatpush1.bf16.msra.mxu0 %v2912
        %2916 = vmatprep.subr.bf16.mxu0 0
        %2917 = vmatpush1.bf16.msra.mxu0 0
        %2918 = vmatprep.subr.bf16.mxu0 0
        %2919 = vmatpush1.bf16.msra.mxu0 0
        %2920 = vmatprep.subr.bf16.mxu0 0
        %2921 = vmatpush1.bf16.msra.mxu0 0
        %2922 = vmatprep.subr.bf16.mxu0 0
        %2923 = vmatpush1.bf16.msra.mxu0 0
        %2924 = vmatprep.subr.bf16.mxu0 0
        %2925 = vmatpush1.bf16.msra.mxu0 0
        %2926 = vmatprep.subr.bf16.mxu0 0
        %2927 = vmatpush1.bf16.msra.mxu0 0
        %2928 = vmatprep.subr.bf16.mxu0 0
        %2929 = vmatpush1.bf16.msra.mxu0 0
        %2930 = vmatprep.subr.bf16.mxu0 0
        %2931 = vmatpush1.bf16.msra.mxu0 0
        %2932 = vmatprep.subr.bf16.mxu0 0
        %2933 = vmatpush1.bf16.msra.mxu0 0
        %2934 = vmatprep.subr.bf16.mxu0 0
        %2935 = vmatpush1.bf16.msra.mxu0 0
        %2936 = vmatprep.subr.bf16.mxu0 0
        %2937 = vmatpush1.bf16.msra.mxu0 0
        %2938 = vmatprep.subr.bf16.mxu0 0
        %2939 = vmatpush1.bf16.msra.mxu0 0
        %2940 = vmatprep.subr.bf16.mxu0 0
        %2941 = vmatpush1.bf16.msra.mxu0 0
        %2942 = vmatprep.subr.bf16.mxu0 0
        %2943 = vmatpush1.bf16.msra.mxu0 0
        %2944 = vmatprep.subr.bf16.mxu0 0
        %2945 = vmatpush1.bf16.msra.mxu0 0
        %2946 = vmatprep.mubr.bf16.mxu0 0
        %2947 = vmatmul.mubr.bf16.gmra.mrb[0].mxu0 %v2909
        %v2948 = vpop.f32.mrb[0].mxu0
        %v2949 = vadd.f32 0.0, %v2948
        %v2950 = vpop.f32.mrb[0].mxu0
        %v2951 = vpop.f32.mrb[0].mxu0
        %v2952 = vpop.f32.mrb[0].mxu0
        %2953 = vdwg.mxu0
        %2956 = vrot.lane.b32.xlu0 %v2901, 16
        %v2957 = vpop.permute.xlu0 %2956
        %2958 = vrot.lane.b32.xlu0 %v2949, 16
        %v2959 = vpop.permute.xlu0 %2958
        %2962 = vst.msk [vmem:[#allocation3] sm:$0xff] %vm1785, %v2957
        %2963 = vst.msk [vmem:[#allocation3 + $0x8] sm:$0xff] %vm1785, %v2959
        %2964 = vrot.lane.b32.xlu0 %v2282, 104
        %v2965 = vpop.permute.xlu0 %2964
        %2966 = vrot.lane.b32.xlu0 %v2288, 104
        %v2967 = vpop.permute.xlu0 %2966
        %v2969 = vsel %vm1108, %v2965, 0
        %v2972 = vsel %vm1108, %v2967, 0
        %2974 = vmatprep.subr.bf16.mxu0 0
        %2975 = vmatpush1.bf16.xpose.msra.mxu0 %v2972
        %2976 = vmatprep.subr.bf16.mxu0 0
        %2977 = vmatpush1.bf16.xpose.msra.mxu0 0
        %2978 = vmatprep.subr.bf16.mxu0 0
        %2979 = vmatpush1.bf16.xpose.msra.mxu0 0
        %2980 = vmatprep.subr.bf16.mxu0 0
        %2981 = vmatpush1.bf16.xpose.msra.mxu0 0
        %2982 = vmatprep.subr.bf16.mxu0 0
        %2983 = vmatpush1.bf16.xpose.msra.mxu0 0
        %2984 = vmatprep.subr.bf16.mxu0 0
        %2985 = vmatpush1.bf16.xpose.msra.mxu0 0
        %2986 = vmatprep.subr.bf16.mxu0 0
        %2987 = vmatpush1.bf16.xpose.msra.mxu0 0
        %2988 = vmatprep.subr.bf16.mxu0 0
        %2989 = vmatpush1.bf16.xpose.msra.mxu0 0
        %2990 = vmatprep.subr.bf16.mxu0 0
        %2991 = vmatpush1.bf16.xpose.msra.mxu0 0
        %2992 = vmatprep.subr.bf16.mxu0 0
        %2993 = vmatpush1.bf16.xpose.msra.mxu0 0
        %2994 = vmatprep.subr.bf16.mxu0 0
        %2995 = vmatpush1.bf16.xpose.msra.mxu0 0
        %2996 = vmatprep.subr.bf16.mxu0 0
        %2997 = vmatpush1.bf16.xpose.msra.mxu0 0
        %2998 = vmatprep.subr.bf16.mxu0 0
        %2999 = vmatpush1.bf16.xpose.msra.mxu0 0
        %3000 = vmatprep.subr.bf16.mxu0 0
        %3001 = vmatpush1.bf16.xpose.msra.mxu0 0
        %3002 = vmatprep.subr.bf16.mxu0 0
        %3003 = vmatpush1.bf16.xpose.msra.mxu0 0
        %3004 = vmatprep.subr.bf16.mxu0 0
        %3005 = vmatpush1.bf16.xpose.msra.mxu0 0
        %3006 = vmatprep.mubr.bf16.mxu0 0
        %3007 = vmatmul.mubr.bf16.gmra.mrb[0].mxu0 %v2969
        %v3008 = vpop.f32.mrb[0].mxu0
        %v3009 = vadd.f32 0.0, %v3008
        %v3010 = vpop.f32.mrb[0].mxu0
        %v3011 = vpop.f32.mrb[0].mxu0
        %v3012 = vpop.f32.mrb[0].mxu0
        %3013 = vdwg.mxu0
        %3014 = vrot.lane.b32.xlu0 %v2283, 104
        %v3015 = vpop.permute.xlu0 %3014
        %3016 = vrot.lane.b32.xlu0 %v2289, 104
        %v3017 = vpop.permute.xlu0 %3016
        %v3019 = vsel %vm1108, %v3015, 0
        %v3022 = vsel %vm1108, %v3017, 0
        %3024 = vmatprep.subr.bf16.mxu0 0
        %3025 = vmatpush1.bf16.xpose.msra.mxu0 %v3022
        %3026 = vmatprep.subr.bf16.mxu0 0
        %3027 = vmatpush1.bf16.xpose.msra.mxu0 0
        %3028 = vmatprep.subr.bf16.mxu0 0
        %3029 = vmatpush1.bf16.xpose.msra.mxu0 0
        %3030 = vmatprep.subr.bf16.mxu0 0
        %3031 = vmatpush1.bf16.xpose.msra.mxu0 0
        %3032 = vmatprep.subr.bf16.mxu0 0
        %3033 = vmatpush1.bf16.xpose.msra.mxu0 0
        %3034 = vmatprep.subr.bf16.mxu0 0
        %3035 = vmatpush1.bf16.xpose.msra.mxu0 0
        %3036 = vmatprep.subr.bf16.mxu0 0
        %3037 = vmatpush1.bf16.xpose.msra.mxu0 0
        %3038 = vmatprep.subr.bf16.mxu0 0
        %3039 = vmatpush1.bf16.xpose.msra.mxu0 0
        %3040 = vmatprep.subr.bf16.mxu0 0
        %3041 = vmatpush1.bf16.xpose.msra.mxu0 0
        %3042 = vmatprep.subr.bf16.mxu0 0
        %3043 = vmatpush1.bf16.xpose.msra.mxu0 0
        %3044 = vmatprep.subr.bf16.mxu0 0
        %3045 = vmatpush1.bf16.xpose.msra.mxu0 0
        %3046 = vmatprep.subr.bf16.mxu0 0
        %3047 = vmatpush1.bf16.xpose.msra.mxu0 0
        %3048 = vmatprep.subr.bf16.mxu0 0
        %3049 = vmatpush1.bf16.xpose.msra.mxu0 0
        %3050 = vmatprep.subr.bf16.mxu0 0
        %3051 = vmatpush1.bf16.xpose.msra.mxu0 0
        %3052 = vmatprep.subr.bf16.mxu0 0
        %3053 = vmatpush1.bf16.xpose.msra.mxu0 0
        %3054 = vmatprep.subr.bf16.mxu0 0
        %3055 = vmatpush1.bf16.xpose.msra.mxu0 0
        %3056 = vmatprep.mubr.bf16.mxu0 0
        %3057 = vmatmul.mubr.bf16.gmra.mrb[0].mxu0 %v3019
        %v3058 = vpop.f32.mrb[0].mxu0
        %v3059 = vadd.f32 0.0, %v3058
        %v3060 = vpop.f32.mrb[0].mxu0
        %v3061 = vpop.f32.mrb[0].mxu0
        %v3062 = vpop.f32.mrb[0].mxu0
        %3063 = vdwg.mxu0
        %v3064 = vsel %vm1108, %v3009, -inf
        %3065 = vmax.xlane.f32.xlu0 %v3064
        %v3066 = vpop.xlane.xlu0 %3065
        %v3067 = vsel %vm1108, %v3059, -inf
        %3068 = vmax.xlane.f32.xlu0 %v3067
        %v3069 = vpop.xlane.xlu0 %3068
        %v3070 = vsub.f32 %v3009, %v3066
        %v3071 = vsub.f32 %v3059, %v3069
        %v3072 = vmul.f32 %v3070, 1.442695
        %v3073 = vpow.pop %v3072
        %v3074 = vmul.f32 %v3071, 1.442695
        %v3075 = vpow.pop %v3074
        %v3076 = vsel %vm1108, %v3073, 0.0
        %3077 = vadd.xlane.f32.xlu0 %v3076
        %v3078 = vpop.xlane.xlu0 %3077
        %v3079 = vsel %vm1108, %v3075, 0.0
        %3080 = vadd.xlane.f32.xlu0 %v3079
        %v3081 = vpop.xlane.xlu0 %3080
        %v3082 = vrcp.pop %v3078
        %v3083 = vrcp.pop %v3081
        %v3084 = vmul.f32 %v3073, %v3082
        %v3085 = vmul.f32 %v3075, %v3083
        %v3086 = vpack.c.bf16 %v3084, %v3084
        %v3087 = vpack.c.bf16 %v3085, %v3085
        %3088 = vrot.lane.b32.xlu0 %v2288, 72
        %v3089 = vpop.permute.xlu0 %3088
        %v3091 = vsel %vm1108, %v3086, 0
        %v3094 = vsel %vm1232, %v3089, 0
        %3096 = vmatprep.subr.bf16.mxu0 0
        %3097 = vmatpush1.bf16.msra.mxu0 %v3094
        %3098 = vmatprep.subr.bf16.mxu0 0
        %3099 = vmatpush1.bf16.msra.mxu0 0
        %3100 = vmatprep.subr.bf16.mxu0 0
        %3101 = vmatpush1.bf16.msra.mxu0 0
        %3102 = vmatprep.subr.bf16.mxu0 0
        %3103 = vmatpush1.bf16.msra.mxu0 0
        %3104 = vmatprep.subr.bf16.mxu0 0
        %3105 = vmatpush1.bf16.msra.mxu0 0
        %3106 = vmatprep.subr.bf16.mxu0 0
        %3107 = vmatpush1.bf16.msra.mxu0 0
        %3108 = vmatprep.subr.bf16.mxu0 0
        %3109 = vmatpush1.bf16.msra.mxu0 0
        %3110 = vmatprep.subr.bf16.mxu0 0
        %3111 = vmatpush1.bf16.msra.mxu0 0
        %3112 = vmatprep.subr.bf16.mxu0 0
        %3113 = vmatpush1.bf16.msra.mxu0 0
        %3114 = vmatprep.subr.bf16.mxu0 0
        %3115 = vmatpush1.bf16.msra.mxu0 0
        %3116 = vmatprep.subr.bf16.mxu0 0
        %3117 = vmatpush1.bf16.msra.mxu0 0
        %3118 = vmatprep.subr.bf16.mxu0 0
        %3119 = vmatpush1.bf16.msra.mxu0 0
        %3120 = vmatprep.subr.bf16.mxu0 0
        %3121 = vmatpush1.bf16.msra.mxu0 0
        %3122 = vmatprep.subr.bf16.mxu0 0
        %3123 = vmatpush1.bf16.msra.mxu0 0
        %3124 = vmatprep.subr.bf16.mxu0 0
        %3125 = vmatpush1.bf16.msra.mxu0 0
        %3126 = vmatprep.subr.bf16.mxu0 0
        %3127 = vmatpush1.bf16.msra.mxu0 0
        %3128 = vmatprep.mubr.bf16.mxu0 0
        %3129 = vmatmul.mubr.bf16.gmra.mrb[0].mxu0 %v3091
        %v3130 = vpop.f32.mrb[0].mxu0
        %v3131 = vadd.f32 0.0, %v3130
        %v3132 = vpop.f32.mrb[0].mxu0
        %v3133 = vpop.f32.mrb[0].mxu0
        %v3134 = vpop.f32.mrb[0].mxu0
        %3135 = vdwg.mxu0
        %3136 = vrot.lane.b32.xlu0 %v2289, 72
        %v3137 = vpop.permute.xlu0 %3136
        %v3139 = vsel %vm1108, %v3087, 0
        %v3142 = vsel %vm1232, %v3137, 0
        %3144 = vmatprep.subr.bf16.mxu0 0
        %3145 = vmatpush1.bf16.msra.mxu0 %v3142
        %3146 = vmatprep.subr.bf16.mxu0 0
        %3147 = vmatpush1.bf16.msra.mxu0 0
        %3148 = vmatprep.subr.bf16.mxu0 0
        %3149 = vmatpush1.bf16.msra.mxu0 0
        %3150 = vmatprep.subr.bf16.mxu0 0
        %3151 = vmatpush1.bf16.msra.mxu0 0
        %3152 = vmatprep.subr.bf16.mxu0 0
        %3153 = vmatpush1.bf16.msra.mxu0 0
        %3154 = vmatprep.subr.bf16.mxu0 0
        %3155 = vmatpush1.bf16.msra.mxu0 0
        %3156 = vmatprep.subr.bf16.mxu0 0
        %3157 = vmatpush1.bf16.msra.mxu0 0
        %3158 = vmatprep.subr.bf16.mxu0 0
        %3159 = vmatpush1.bf16.msra.mxu0 0
        %3160 = vmatprep.subr.bf16.mxu0 0
        %3161 = vmatpush1.bf16.msra.mxu0 0
        %3162 = vmatprep.subr.bf16.mxu0 0
        %3163 = vmatpush1.bf16.msra.mxu0 0
        %3164 = vmatprep.subr.bf16.mxu0 0
        %3165 = vmatpush1.bf16.msra.mxu0 0
        %3166 = vmatprep.subr.bf16.mxu0 0
        %3167 = vmatpush1.bf16.msra.mxu0 0
        %3168 = vmatprep.subr.bf16.mxu0 0
        %3169 = vmatpush1.bf16.msra.mxu0 0
        %3170 = vmatprep.subr.bf16.mxu0 0
        %3171 = vmatpush1.bf16.msra.mxu0 0
        %3172 = vmatprep.subr.bf16.mxu0 0
        %3173 = vmatpush1.bf16.msra.mxu0 0
        %3174 = vmatprep.subr.bf16.mxu0 0
        %3175 = vmatpush1.bf16.msra.mxu0 0
        %3176 = vmatprep.mubr.bf16.mxu0 0
        %3177 = vmatmul.mubr.bf16.gmra.mrb[0].mxu0 %v3139
        %v3178 = vpop.f32.mrb[0].mxu0
        %v3179 = vadd.f32 0.0, %v3178
        %v3180 = vpop.f32.mrb[0].mxu0
        %v3181 = vpop.f32.mrb[0].mxu0
        %v3182 = vpop.f32.mrb[0].mxu0
        %3183 = vdwg.mxu0
        %3186 = vrot.lane.b32.xlu0 %v3131, 24
        %v3187 = vpop.permute.xlu0 %3186
        %3188 = vrot.lane.b32.xlu0 %v3179, 24
        %v3189 = vpop.permute.xlu0 %3188
        %3192 = vst.msk [vmem:[#allocation3] sm:$0xff] %vm2016, %v3187
        %3193 = vst.msk [vmem:[#allocation3 + $0x8] sm:$0xff] %vm2016, %v3189
        %v3194 = vld [vmem:[#allocation3] sm:$0xff]
        %v3195 = vld [vmem:[#allocation3 + $0x8] sm:$0xff]
        %v3196 = vpack.c.bf16 %v3195, %v3194
        %v3197 = vld [vmem:[%s986] sm:$0xf]
        %v3198 = vld [vmem:[%s986 + $0x4] sm:$0xf]
        %v3199 = vld [vmem:[%s986 + $0x8] sm:$0xf]
        %v3200 = vld [vmem:[%s986 + $0xc] sm:$0xf]
        %v3201 = vld [vmem:[%s989] sm:$0x1]
        %v3203 = vlaneseq
        %v3204 = vshrl.u32 %v3203, 7
        %v3205 = vsub.s32 0, %v3204
        %v3206 = vrot.slane %v3201, %v3205
        %v3212 = vunpack.c.l.b16 %v3197
        %v3213 = vunpack.c.l.b16 %v3198
        %v3214 = vunpack.c.l.b16 %v3199
        %v3215 = vunpack.c.l.b16 %v3200
        %v3216 = vpack.c.b16 %v3213, %v3212
        %v3217 = vpack.c.b16 %v3215, %v3214
        %v3221 = vsel %vm1055, %v3196, 0
        %3223 = vmatprep.subr.bf16.mxu0 0
        %3224 = vmatpush1.bf16.msra.mxu0 %v3216
        %3225 = vmatprep.subr.bf16.mxu0 0
        %3226 = vmatpush1.bf16.msra.mxu0 %v3217
        %3227 = vmatprep.subr.bf16.mxu0 0
        %3228 = vmatpush1.bf16.msra.mxu0 0
        %3229 = vmatprep.subr.bf16.mxu0 0
        %3230 = vmatpush1.bf16.msra.mxu0 0
        %3231 = vmatprep.subr.bf16.mxu0 0
        %3232 = vmatpush1.bf16.msra.mxu0 0
        %3233 = vmatprep.subr.bf16.mxu0 0
        %3234 = vmatpush1.bf16.msra.mxu0 0
        %3235 = vmatprep.subr.bf16.mxu0 0
        %3236 = vmatpush1.bf16.msra.mxu0 0
        %3237 = vmatprep.subr.bf16.mxu0 0
        %3238 = vmatpush1.bf16.msra.mxu0 0
        %3239 = vmatprep.subr.bf16.mxu0 0
        %3240 = vmatpush1.bf16.msra.mxu0 0
        %3241 = vmatprep.subr.bf16.mxu0 0
        %3242 = vmatpush1.bf16.msra.mxu0 0
        %3243 = vmatprep.subr.bf16.mxu0 0
        %3244 = vmatpush1.bf16.msra.mxu0 0
        %3245 = vmatprep.subr.bf16.mxu0 0
        %3246 = vmatpush1.bf16.msra.mxu0 0
        %3247 = vmatprep.subr.bf16.mxu0 0
        %3248 = vmatpush1.bf16.msra.mxu0 0
        %3249 = vmatprep.subr.bf16.mxu0 0
        %3250 = vmatpush1.bf16.msra.mxu0 0
        %3251 = vmatprep.subr.bf16.mxu0 0
        %3252 = vmatpush1.bf16.msra.mxu0 0
        %3253 = vmatprep.subr.bf16.mxu0 0
        %3254 = vmatpush1.bf16.msra.mxu0 0
        %3255 = vmatprep.mubr.bf16.mxu0 0
        %3256 = vmatmul.mubr.bf16.gmra.mrb[0].mxu0 %v3221
        %v3257 = vpop.f32.mrb[0].mxu0
        %v3258 = vadd.f32 %v3206, %v3257
        %v3259 = vpop.f32.mrb[0].mxu0
        %v3260 = vpop.f32.mrb[0].mxu0
        %v3261 = vadd.f32 %v3206, %v3260
        %v3262 = vpop.f32.mrb[0].mxu0
        %3263 = vdwg.mxu0
        %v3264 = vadd.f32 %v2134, %v3258
        %v3265 = vadd.f32 %v2135, %v3261
        %v3266 = vld [vmem:[%s1009] sm:$0x1]
        %v3267 = vld [vmem:[%s1012] sm:$0x1]
        %v3268 = vsel %vm1055, %v3264, 0.0
        %3269 = vadd.xlane.f32.xlu0 %v3268
        %v3270 = vpop.xlane.xlu0 %3269
        %v3271 = vsel %vm1055, %v3265, 0.0
        %3272 = vadd.xlane.f32.xlu0 %v3271
        %v3273 = vpop.xlane.xlu0 %3272
        %v3274 = vmul.f32 %v3270, %v2099
        %v3275 = vmul.f32 %v3273, %v2099
        %v3276 = vsub.f32 %v3264, %v3274
        %v3277 = vsub.f32 %v3265, %v3275
        %v3278 = vmul.f32 %v3276, %v3276
        %v3279 = vmul.f32 %v3277, %v3277
        %v3280 = vsel %vm1055, %v3278, 0.0
        %3281 = vadd.xlane.f32.xlu0 %v3280
        %v3282 = vpop.xlane.xlu0 %3281
        %v3283 = vsel %vm1055, %v3279, 0.0
        %3284 = vadd.xlane.f32.xlu0 %v3283
        %v3285 = vpop.xlane.xlu0 %3284
        %v3286 = vmul.f32 %v3282, %v2099
        %v3287 = vmul.f32 %v3285, %v2099
        %v3288 = vadd.f32 %v3286, 1e-05
        %v3289 = vadd.f32 %v3287, 1e-05
        %v3290 = vrsqrt.pop %v3288
        %v3291 = vrsqrt.pop %v3289
        %v3292 = vmul.f32 %v3276, %v3290
        %v3293 = vmul.f32 %v3277, %v3291
        %v3295 = vlaneseq
        %v3296 = vshrl.u32 %v3295, 7
        %v3297 = vsub.s32 0, %v3296
        %v3298 = vrot.slane %v3266, %v3297
        %v3300 = vmul.f32 %v3292, %v3298
        %v3301 = vmul.f32 %v3293, %v3298
        %v3303 = vlaneseq
        %v3304 = vshrl.u32 %v3303, 7
        %v3305 = vsub.s32 0, %v3304
        %v3306 = vrot.slane %v3267, %v3305
        %v3308 = vadd.f32 %v3300, %v3306
        %v3309 = vadd.f32 %v3301, %v3306
        %v3310 = vpack.c.bf16 %v3309, %v3308
        %v3311 = vld [vmem:[%s825] sm:$0xf]
        %v3312 = vld [vmem:[%s825 + $0x4] sm:$0xf]
        %v3313 = vld [vmem:[%s825 + $0x8] sm:$0xf]
        %v3314 = vld [vmem:[%s825 + $0xc] sm:$0xf]
        %v3315 = vld [vmem:[%s992] sm:$0x1]
        %v3317 = vlaneseq
        %v3318 = vshrl.u32 %v3317, 7
        %v3319 = vsub.s32 0, %v3318
        %v3320 = vrot.slane %v3315, %v3319
        %v3326 = vunpack.c.l.b16 %v3311
        %v3327 = vunpack.c.l.b16 %v3312
        %v3328 = vunpack.c.l.b16 %v3313
        %v3329 = vunpack.c.l.b16 %v3314
        %v3330 = vpack.c.b16 %v3327, %v3326
        %v3331 = vpack.c.b16 %v3329, %v3328
        %v3335 = vsel %vm1055, %v3310, 0
        %3337 = vmatprep.subr.bf16.mxu0 0
        %3338 = vmatpush1.bf16.msra.mxu0 %v3330
        %3339 = vmatprep.subr.bf16.mxu0 0
        %3340 = vmatpush1.bf16.msra.mxu0 %v3331
        %3341 = vmatprep.subr.bf16.mxu0 0
        %3342 = vmatpush1.bf16.msra.mxu0 0
        %3343 = vmatprep.subr.bf16.mxu0 0
        %3344 = vmatpush1.bf16.msra.mxu0 0
        %3345 = vmatprep.subr.bf16.mxu0 0
        %3346 = vmatpush1.bf16.msra.mxu0 0
        %3347 = vmatprep.subr.bf16.mxu0 0
        %3348 = vmatpush1.bf16.msra.mxu0 0
        %3349 = vmatprep.subr.bf16.mxu0 0
        %3350 = vmatpush1.bf16.msra.mxu0 0
        %3351 = vmatprep.subr.bf16.mxu0 0
        %3352 = vmatpush1.bf16.msra.mxu0 0
        %3353 = vmatprep.subr.bf16.mxu0 0
        %3354 = vmatpush1.bf16.msra.mxu0 0
        %3355 = vmatprep.subr.bf16.mxu0 0
        %3356 = vmatpush1.bf16.msra.mxu0 0
        %3357 = vmatprep.subr.bf16.mxu0 0
        %3358 = vmatpush1.bf16.msra.mxu0 0
        %3359 = vmatprep.subr.bf16.mxu0 0
        %3360 = vmatpush1.bf16.msra.mxu0 0
        %3361 = vmatprep.subr.bf16.mxu0 0
        %3362 = vmatpush1.bf16.msra.mxu0 0
        %3363 = vmatprep.subr.bf16.mxu0 0
        %3364 = vmatpush1.bf16.msra.mxu0 0
        %3365 = vmatprep.subr.bf16.mxu0 0
        %3366 = vmatpush1.bf16.msra.mxu0 0
        %3367 = vmatprep.subr.bf16.mxu0 0
        %3368 = vmatpush1.bf16.msra.mxu0 0
        %3369 = vmatprep.mubr.bf16.mxu0 0
        %3370 = vmatmul.mubr.bf16.gmra.mrb[0].mxu0 %v3335
        %v3371 = vpop.f32.mrb[0].mxu0
        %v3372 = vadd.f32 %v3320, %v3371
        %v3373 = vpop.f32.mrb[0].mxu0
        %v3374 = vpop.f32.mrb[0].mxu0
        %v3375 = vadd.f32 %v3320, %v3374
        %v3376 = vpop.f32.mrb[0].mxu0
        %3377 = vdwg.mxu0
        %v3378 = vmax.f32 %v3372, 0.0
        %v3379 = vmax.f32 %v3375, 0.0
        %v3380 = vpack.c.bf16 %v3379, %v3378
        %v3381 = vld [vmem:[%s997] sm:$0xf]
        %v3382 = vld [vmem:[%s997 + $0x4] sm:$0xf]
        %v3383 = vld [vmem:[%s997 + $0x8] sm:$0xf]
        %v3384 = vld [vmem:[%s997 + $0xc] sm:$0xf]
        %v3385 = vld [vmem:[%s997 + $0x10] sm:$0xf]
        %v3386 = vld [vmem:[%s997 + $0x14] sm:$0xf]
        %v3387 = vld [vmem:[%s997 + $0x18] sm:$0xf]
        %v3388 = vld [vmem:[%s997 + $0x1c] sm:$0xf]
        %v3389 = vld [vmem:[%s997 + $0x20] sm:$0xf]
        %v3390 = vld [vmem:[%s997 + $0x24] sm:$0xf]
        %v3391 = vld [vmem:[%s997 + $0x28] sm:$0xf]
        %v3392 = vld [vmem:[%s997 + $0x2c] sm:$0xf]
        %v3393 = vld [vmem:[%s997 + $0x30] sm:$0xf]
        %v3394 = vld [vmem:[%s997 + $0x34] sm:$0xf]
        %v3395 = vld [vmem:[%s997 + $0x38] sm:$0xf]
        %v3396 = vld [vmem:[%s997 + $0x3c] sm:$0xf]
        %v3413 = vunpack.c.l.b16 %v3381
        %v3414 = vunpack.c.l.b16 %v3382
        %v3415 = vunpack.c.l.b16 %v3383
        %v3416 = vunpack.c.l.b16 %v3384
        %v3417 = vunpack.c.l.b16 %v3385
        %v3418 = vunpack.c.l.b16 %v3386
        %v3419 = vunpack.c.l.b16 %v3387
        %v3420 = vunpack.c.l.b16 %v3388
        %v3421 = vunpack.c.l.b16 %v3389
        %v3422 = vunpack.c.l.b16 %v3390
        %v3423 = vunpack.c.l.b16 %v3391
        %v3424 = vunpack.c.l.b16 %v3392
        %v3425 = vunpack.c.l.b16 %v3393
        %v3426 = vunpack.c.l.b16 %v3394
        %v3427 = vunpack.c.l.b16 %v3395
        %v3428 = vunpack.c.l.b16 %v3396
        %v3429 = vpack.c.b16 %v3414, %v3413
        %v3430 = vpack.c.b16 %v3416, %v3415
        %v3431 = vpack.c.b16 %v3418, %v3417
        %v3432 = vpack.c.b16 %v3420, %v3419
        %v3433 = vpack.c.b16 %v3422, %v3421
        %v3434 = vpack.c.b16 %v3424, %v3423
        %v3435 = vpack.c.b16 %v3426, %v3425
        %v3436 = vpack.c.b16 %v3428, %v3427
        %3445 = vmatprep.subr.bf16.mxu0 0
        %3446 = vmatpush1.bf16.msra.mxu0 %v3429
        %3447 = vmatprep.subr.bf16.mxu0 0
        %3448 = vmatpush1.bf16.msra.mxu0 %v3430
        %3449 = vmatprep.subr.bf16.mxu0 0
        %3450 = vmatpush1.bf16.msra.mxu0 %v3431
        %3451 = vmatprep.subr.bf16.mxu0 0
        %3452 = vmatpush1.bf16.msra.mxu0 %v3432
        %3453 = vmatprep.subr.bf16.mxu0 0
        %3454 = vmatpush1.bf16.msra.mxu0 %v3433
        %3455 = vmatprep.subr.bf16.mxu0 0
        %3456 = vmatpush1.bf16.msra.mxu0 %v3434
        %3457 = vmatprep.subr.bf16.mxu0 0
        %3458 = vmatpush1.bf16.msra.mxu0 %v3435
        %3459 = vmatprep.subr.bf16.mxu0 0
        %3460 = vmatpush1.bf16.msra.mxu0 %v3436
        %3461 = vmatprep.subr.bf16.mxu0 0
        %3462 = vmatpush1.bf16.msra.mxu0 0
        %3463 = vmatprep.subr.bf16.mxu0 0
        %3464 = vmatpush1.bf16.msra.mxu0 0
        %3465 = vmatprep.subr.bf16.mxu0 0
        %3466 = vmatpush1.bf16.msra.mxu0 0
        %3467 = vmatprep.subr.bf16.mxu0 0
        %3468 = vmatpush1.bf16.msra.mxu0 0
        %3469 = vmatprep.subr.bf16.mxu0 0
        %3470 = vmatpush1.bf16.msra.mxu0 0
        %3471 = vmatprep.subr.bf16.mxu0 0
        %3472 = vmatpush1.bf16.msra.mxu0 0
        %3473 = vmatprep.subr.bf16.mxu0 0
        %3474 = vmatpush1.bf16.msra.mxu0 0
        %3475 = vmatprep.subr.bf16.mxu0 0
        %3476 = vmatpush1.bf16.msra.mxu0 0
        %3477 = vmatprep.mubr.bf16.mxu0 0
        %3478 = vmatmul.mubr.bf16.gmra.mrb[0].mxu0 %v3380
        %v3479 = vpop.f32.mrb[0].mxu0
        %v3480 = vadd.f32 0.0, %v3479
        %v3481 = vpop.f32.mrb[0].mxu0
        %v3482 = vpop.f32.mrb[0].mxu0
        %v3483 = vadd.f32 0.0, %v3482
        %v3484 = vpop.f32.mrb[0].mxu0
        %3485 = vdwg.mxu0
        %v3486 = vadd.f32 %v3308, %v3480
        %v3487 = vadd.f32 %v3309, %v3483
        %v3488 = vld [vmem:[%s1000] sm:$0x1]
        %v3490 = vlaneseq
        %v3491 = vshrl.u32 %v3490, 7
        %v3492 = vsub.s32 0, %v3491
        %v3493 = vrot.slane %v3488, %v3492
        %v3495 = vadd.f32 %v3486, %v3493
        %v3496 = vadd.f32 %v3487, %v3493
        %v3497 = vld [vmem:[%s1015] sm:$0x1]
        %v3498 = vld [vmem:[%s1018] sm:$0x1]
        %v3499 = vsel %vm1055, %v3495, 0.0
        %3500 = vadd.xlane.f32.xlu0 %v3499
        %v3501 = vpop.xlane.xlu0 %3500
        %v3502 = vsel %vm1055, %v3496, 0.0
        %3503 = vadd.xlane.f32.xlu0 %v3502
        %v3504 = vpop.xlane.xlu0 %3503
        %v3505 = vmul.f32 %v3501, %v2099
        %v3506 = vmul.f32 %v3504, %v2099
        %v3507 = vsub.f32 %v3495, %v3505
        %v3508 = vsub.f32 %v3496, %v3506
        %v3509 = vmul.f32 %v3507, %v3507
        %v3510 = vmul.f32 %v3508, %v3508
        %v3511 = vsel %vm1055, %v3509, 0.0
        %3512 = vadd.xlane.f32.xlu0 %v3511
        %v3513 = vpop.xlane.xlu0 %3512
        %v3514 = vsel %vm1055, %v3510, 0.0
        %3515 = vadd.xlane.f32.xlu0 %v3514
        %v3516 = vpop.xlane.xlu0 %3515
        %v3517 = vmul.f32 %v3513, %v2099
        %v3518 = vmul.f32 %v3516, %v2099
        %v3519 = vadd.f32 %v3517, 1e-05
        %v3520 = vadd.f32 %v3518, 1e-05
        %v3521 = vrsqrt.pop %v3519
        %v3522 = vrsqrt.pop %v3520
        %v3523 = vmul.f32 %v3507, %v3521
        %v3524 = vmul.f32 %v3508, %v3522
        %v3526 = vlaneseq
        %v3527 = vshrl.u32 %v3526, 7
        %v3528 = vsub.s32 0, %v3527
        %v3529 = vrot.slane %v3497, %v3528
        %v3531 = vmul.f32 %v3523, %v3529
        %v3532 = vmul.f32 %v3524, %v3529
        %v3534 = vlaneseq
        %v3535 = vshrl.u32 %v3534, 7
        %v3536 = vsub.s32 0, %v3535
        %v3537 = vrot.slane %v3498, %v3536
        %v3539 = vadd.f32 %v3531, %v3537
        %v3540 = vadd.f32 %v3532, %v3537
        %3541 = vst.msk [vmem:[#allocation2] sm:$0xff] %vm1055, %v3539
        %3542 = vst.msk [vmem:[#allocation2 + $0x8] sm:$0xff] %vm1055, %v3540
        %p3543 = scmp.eq.s32.totalorder %s36, 1
        // Predicated region
        $region125: #{tpu_custom_call.1} parent=107 // pred_check
          %p3544 = pneg %p3543
        $region126: #{tpu_custom_call.1} parent=107 // pred_check_branch
          %3546 = sbr.rel (%p3544) target = $region128
        $region127: #{tpu_custom_call.1} parent=107 // pred_region
          %3547 = vst.msk [vmem:[#allocation11] sm:$0xff] %vm1055, %v3539
          %3548 = vst.msk [vmem:[#allocation11 + $0x8] sm:$0xff] %vm1055, %v3540
        $region128: #{tpu_custom_call.1} parent=107 // pred_fallthru
          _
        // Predicated region
        $region129: #{tpu_custom_call.1} parent=107 // pred_check
          %p3549 = pneg %p611
        $region130: #{tpu_custom_call.1} parent=107 // pred_check_branch
          %3551 = sbr.rel (%p3549) target = $region132
        $region131: #{tpu_custom_call.1} parent=107 // pred_region
          %s3553 = ssub.s32 256, 256
          %3554 = vsyncadd [#allocation7], %s3553
          %s3555 = sshll.u32 [#allocation11], 4
          %s3556 = int_to_ptr.vmem [resolvable:$true] %s3555
          %3561 = dma.vmem_to_hbm [thread:$0]  %s3556, 256, %s22, [#allocation7], 128, 128, 8
        $region132: #{tpu_custom_call.1} parent=107 // pred_fallthru
          _
        // Predicated region
        $region133: #{tpu_custom_call.1} parent=107 // pred_check
          %p3562 = pneg %p611
        $region134: #{tpu_custom_call.1} parent=107 // pred_check_branch
          %3564 = sbr.rel (%p3562) target = $region136
        $region135: #{tpu_custom_call.1} parent=107 // pred_region
          %3565 = dma.done [#allocation7], 256
        $region136: #{tpu_custom_call.1} parent=107 // pred_fallthru
          _
      $region108: #{tpu_custom_call.1} parent=5 // pred_fallthru
        _
      %p3566 = scmp.le.s32.totalorder 2, %s31
      // Predicated region
      $region137: #{tpu_custom_call.1} parent=5 // pred_check
        %p3567 = pneg %p3566
      $region138: #{tpu_custom_call.1} parent=5 // pred_check_branch
        %3569 = sbr.rel (%p3567) target = $region140
      $region139: #{tpu_custom_call.1} parent=5 // pred_region
        %s3570 = ssub.s32 %s31, 2
      $region140: #{tpu_custom_call.1} parent=5 // pred_fallthru
        _
    $region6: #{tpu_custom_call.1} parent=1 // loop_footer
      %s35 = sadd.s32 1, %s31
    $region7: #{tpu_custom_call.1} parent=1 // loop_footer_branch
      %30 = sbr.rel target = $region3
    $region8: #{tpu_custom_call.1} parent=1 // loop_exit
      _
    %3571 = vsyncpa [#allocation6], 1
    %s3572 = scalar_lea.sflag [#allocation6], 1
    %3573 = vsyncpa %s3572, 1
    %3574 = vsyncpa [#allocation9], 1
    %3575 = vsyncpa [#allocation7], 1
    %s3576 = scalar_lea.sflag [#allocation7], 1
    %3577 = vsyncpa %s3576, 1

</llo_original>
